<compile_context>
chip_gen: v7x
topology: tpu7x:2x2x1
jax: 0.10.0
libtpu: 0.0.40
codegen_flags: <defaults>
</compile_context>

<pallas_src>
import functools
import math

import jax
import jax.numpy as jnp
import numpy as np
from jax import lax
from jax.experimental import pallas as pl
from jax.experimental.pallas import tpu as pltpu

# ---- configuration (consistent with the module's constructor) ----
INPUT_SIZE = 16
HIDDEN = 32
NHEAD = 8
HEAD_DIM = HIDDEN // NHEAD
DFF = 2048            # PyTorch TransformerEncoderLayer default dim_feedforward
SEQ = 8
BATCH = 2
LN_EPS = 1e-5         # PyTorch default layer_norm_eps
NEG_BIG = -1e30
TARGET_ROWS = 256     # rows per grid block when many batches are folded in


def _layer_norm(x, w, b):
    mu = jnp.mean(x, axis=-1, keepdims=True)
    xc = x - mu
    var = jnp.mean(xc * xc, axis=-1, keepdims=True)
    return xc * lax.rsqrt(var + LN_EPS) * w + b


def critic_kernel(x_ref,
                  fc0_w_ref, fc0_b_ref,
                  in_w_ref, in_b_ref,
                  out_w_ref, out_b_ref,
                  ln1_w_ref, ln1_b_ref,
                  ff1_w_ref, ff1_b_ref,
                  ff2_w_ref, ff2_b_ref,
                  ln2_w_ref, ln2_b_ref,
                  fc1_w_ref, fc1_b_ref,
                  kv_sel_ref, attn_bias_ref, head_sum_ref, chan_bcast_ref,
                  o_ref,
                  *, nrows, nhead):
    x = x_ref[...]                                                       # (n, Din)

    # fc0: Linear(input_size -> hidden); weight pre-transposed to (Din, H).
    h = jnp.dot(x, fc0_w_ref[...],
                preferred_element_type=jnp.float32) + fc0_b_ref[...]     # (n, H)

    # ---- fused multi-head self-attention (all heads, one softmax) ----
    # 1/sqrt(head_dim) is already baked into the q columns of in_w / in_b.
    qkv = jnp.dot(h, in_w_ref[...],
                  preferred_element_type=jnp.float32) + in_b_ref[...]    # (n, 3H)
    q = qkv[:, 0 * HIDDEN:1 * HIDDEN]
    k = qkv[:, 1 * HIDDEN:2 * HIDDEN]
    v = qkv[:, 2 * HIDDEN:3 * HIDDEN]

    # Block-diagonal K / V: row h*n+m holds only head h's channels of token m.
    kv_sel = kv_sel_ref[...]                                             # (8n, H) 0/1
    k_bd = jnp.tile(k, (nhead, 1)) * kv_sel                              # (8n, H)
    v_bd = jnp.tile(v, (nhead, 1)) * kv_sel                              # (8n, H)

    # scores[r, h*n+m] = q_h[r] . k_h[m]  -> lane-dense (n, 8n)
    scores = jnp.einsum("nc,rc->nr", q, k_bd,
                        preferred_element_type=jnp.float32)
    scores = scores + attn_bias_ref[...]                                 # cross-batch mask
    # Single per-row max is a valid stabilizer (softmax is shift-invariant per head block).
    scores = scores - jnp.max(scores, axis=-1, keepdims=True)
    p = jnp.exp(scores)                                                  # unnormalized

    ctx = jnp.dot(p, v_bd, preferred_element_type=jnp.float32)           # (n, H)
    den = jnp.dot(p, head_sum_ref[...],
                  preferred_element_type=jnp.float32)                    # (n, nhead)
    inv = pl.reciprocal(den, approx=True)
    ctx = ctx * jnp.dot(inv, chan_bcast_ref[...],
                        preferred_element_type=jnp.float32)              # per-head normalize

    attn = jnp.dot(ctx, out_w_ref[...],
                   preferred_element_type=jnp.float32) + out_b_ref[...]

    # residual + norm1 (norm_first=False, i.e. post-norm)
    h1 = _layer_norm(h + attn, ln1_w_ref[...], ln1_b_ref[...])

    # ---- feed-forward: linear1 -> relu -> linear2 (bf16 weights, f32 acc) ----
    ff = jnp.dot(h1.astype(jnp.bfloat16), ff1_w_ref[...],
                 preferred_element_type=jnp.float32) + ff1_b_ref[...]    # (n, DFF)
    ff = jnp.maximum(ff, 0.0)
    ff = jnp.dot(ff.astype(jnp.bfloat16), ff2_w_ref[...],
                 preferred_element_type=jnp.float32) + ff2_b_ref[...]    # (n, H)

    # residual + norm2
    h2 = _layer_norm(h1 + ff, ln2_w_ref[...], ln2_b_ref[...])

    # fc1: Linear(hidden -> 1) emitted as one lane-dense (1, n) row via the MXU.
    out = jnp.einsum("oc,nc->on", fc1_w_ref[...], h2,
                     preferred_element_type=jnp.float32) + fc1_b_ref[...]
    o_ref[...] = out.reshape(1, 1, nrows).astype(o_ref.dtype)


def _pick_batches_per_block(batch, seq):
    max_bpb = max(1, TARGET_ROWS // seq)
    if batch <= max_bpb:
        return batch
    return max(d for d in range(1, max_bpb + 1) if batch % d == 0)


def critic_net_forward(x, params):
    B, S, Din = x.shape
    H = HIDDEN
    f32, bf16 = jnp.float32, jnp.bfloat16

    bpb = _pick_batches_per_block(B, S)        # batches per grid block
    nblk = B // bpb
    n = bpb * S                                # rows per grid block
    R = NHEAD * n                              # block-diagonal K/V rows

    # ---- constants precomputed outside the kernel (no in-kernel iota/cmp/select) ----
    row_batch = np.arange(n) // S
    col_batch = (np.arange(R) % n) // S
    attn_bias = np.where(row_batch[:, None] == col_batch[None, :],
                         0.0, NEG_BIG).astype(np.float32)                          # (n, R)
    head_of_row = np.arange(R) // n
    chan_head = np.arange(H) // HEAD_DIM
    kv_sel = (head_of_row[:, None] == chan_head[None, :]).astype(np.float32)       # (R, H)
    head_sum = (head_of_row[:, None] == np.arange(NHEAD)[None, :]).astype(np.float32)  # (R, NHEAD)
    chan_bcast = (np.arange(NHEAD)[:, None] == chan_head[None, :]).astype(np.float32)  # (NHEAD, H)

    # Bake 1/sqrt(head_dim) into the q columns of the in_proj weight/bias.
    q_scale = np.concatenate([np.full(H, 1.0 / math.sqrt(HEAD_DIM)),
                              np.ones(2 * H)]).astype(np.float32)                  # (3H,)
    in_w_t = params["in_w"].T.astype(f32) * q_scale[None, :]
    in_b_s = params["in_b"].astype(f32) * q_scale[None, :]

    weights = (
        params["fc0_w"].T.astype(f32), params["fc0_b"].astype(f32),
        in_w_t, in_b_s,
        params["out_w"].T.astype(f32), params["out_b"].astype(f32),
        params["ln1_w"].astype(f32), params["ln1_b"].astype(f32),
        params["ff1_w"].T.astype(bf16), params["ff1_b"].astype(f32),
        params["ff2_w"].T.astype(bf16), params["ff2_b"].astype(f32),
        params["ln2_w"].astype(f32), params["ln2_b"].astype(f32),
        params["fc1_w"].astype(f32), params["fc1_b"].reshape(1, 1).astype(f32),
    )
    consts = (jnp.asarray(kv_sel), jnp.asarray(attn_bias),
              jnp.asarray(head_sum), jnp.asarray(chan_bcast))

    row_blk = lambda i: (i, 0)
    const2 = lambda i: (0, 0)

    in_specs = [
        pl.BlockSpec((n, Din), row_blk),          # x rows for this batch block
        pl.BlockSpec((Din, H), const2),           # fc0_w
        pl.BlockSpec((1, H), const2),             # fc0_b
        pl.BlockSpec((H, 3 * H), const2),         # in_w
        pl.BlockSpec((1, 3 * H), const2),         # in_b
        pl.BlockSpec((H, H), const2),             # out_w
        pl.BlockSpec((1, H), const2),             # out_b
        pl.BlockSpec((1, H), const2),             # ln1_w
        pl.BlockSpec((1, H), const2),             # ln1_b
        pl.BlockSpec((H, DFF), const2),           # ff1_w (bf16)
        pl.BlockSpec((1, DFF), const2),           # ff1_b
        pl.BlockSpec((DFF, H), const2),           # ff2_w (bf16)
        pl.BlockSpec((1, H), const2),             # ff2_b
        pl.BlockSpec((1, H), const2),             # ln2_w
        pl.BlockSpec((1, H), const2),             # ln2_b
        pl.BlockSpec((1, H), const2),             # fc1_w
        pl.BlockSpec((1, 1), const2),             # fc1_b
        pl.BlockSpec((R, H), const2),             # kv_sel
        pl.BlockSpec((n, R), const2),             # attn_bias
        pl.BlockSpec((R, NHEAD), const2),         # head_sum
        pl.BlockSpec((NHEAD, H), const2),         # chan_bcast
    ]
    out_spec = pl.BlockSpec((1, 1, n), lambda i: (i, 0, 0))

    kernel = functools.partial(critic_kernel, nrows=n, nhead=NHEAD)
    out3 = pl.pallas_call(
        kernel,
        grid=(nblk,),
        in_specs=in_specs,
        out_specs=out_spec,
        out_shape=jax.ShapeDtypeStruct((nblk, 1, n), jnp.float32),
        compiler_params=pltpu.CompilerParams(
            dimension_semantics=("parallel",)),
    )(x.reshape(B * S, Din).astype(f32), *weights, *consts)

    return out3.reshape(B, S, 1)


def init_params(key):
    """Deterministic synthetic parameters (PyTorch-Linear-style uniform init)."""
    ks = jax.random.split(key, 8)

    def lin(k, out_dim, in_dim):
        bound = 1.0 / (in_dim ** 0.5)
        kw, kb = jax.random.split(k)
        w = jax.random.uniform(kw, (out_dim, in_dim), jnp.float32, -bound, bound)
        b = jax.random.uniform(kb, (1, out_dim), jnp.float32, -bound, bound)
        return w, b

    p = {}
    p["fc0_w"], p["fc0_b"] = lin(ks[0], HIDDEN, INPUT_SIZE)
    p["in_w"], p["in_b"] = lin(ks[1], 3 * HIDDEN, HIDDEN)      # qkv in_proj
    p["out_w"], p["out_b"] = lin(ks[2], HIDDEN, HIDDEN)        # attn out_proj
    p["ff1_w"], p["ff1_b"] = lin(ks[3], DFF, HIDDEN)           # linear1
    p["ff2_w"], p["ff2_b"] = lin(ks[4], HIDDEN, DFF)           # linear2
    p["fc1_w"], p["fc1_b"] = lin(ks[5], 1, HIDDEN)
    p["ln1_w"] = jnp.ones((1, HIDDEN), jnp.float32)
    p["ln1_b"] = jnp.zeros((1, HIDDEN), jnp.float32)
    p["ln2_w"] = jnp.ones((1, HIDDEN), jnp.float32)
    p["ln2_b"] = jnp.zeros((1, HIDDEN), jnp.float32)
    return p


if __name__ == "__main__":
    key = jax.random.PRNGKey(0)
    kx, kp = jax.random.split(key)
    x = jax.random.normal(kx, (BATCH, SEQ, INPUT_SIZE), jnp.float32)
    params = init_params(kp)

    out = critic_net_forward(x, params)
    out = jax.block_until_ready(out)
    assert out.shape == (BATCH, SEQ, 1), out.shape
    assert bool(jnp.all(jnp.isfinite(out)))
    print("KERNEL_OK")
</pallas_src>

<mosaic_0001>
module attributes {stable_mosaic.version = 11 : i64} {
  func.func @critic_kernel(%arg0: i32, %arg1: memref<16x16xf32, #tpu.memory_space<vmem>>, %arg2: memref<16x32xf32, #tpu.memory_space<vmem>>, %arg3: memref<1x32xf32, #tpu.memory_space<vmem>>, %arg4: memref<32x96xf32, #tpu.memory_space<vmem>>, %arg5: memref<1x96xf32, #tpu.memory_space<vmem>>, %arg6: memref<32x32xf32, #tpu.memory_space<vmem>>, %arg7: memref<1x32xf32, #tpu.memory_space<vmem>>, %arg8: memref<1x32xf32, #tpu.memory_space<vmem>>, %arg9: memref<1x32xf32, #tpu.memory_space<vmem>>, %arg10: memref<32x2048xbf16, #tpu.memory_space<vmem>>, %arg11: memref<1x2048xf32, #tpu.memory_space<vmem>>, %arg12: memref<2048x32xbf16, #tpu.memory_space<vmem>>, %arg13: memref<1x32xf32, #tpu.memory_space<vmem>>, %arg14: memref<1x32xf32, #tpu.memory_space<vmem>>, %arg15: memref<1x32xf32, #tpu.memory_space<vmem>>, %arg16: memref<1x32xf32, #tpu.memory_space<vmem>>, %arg17: memref<1x1xf32, #tpu.memory_space<vmem>>, %arg18: memref<128x32xf32, #tpu.memory_space<vmem>>, %arg19: memref<16x128xf32, #tpu.memory_space<vmem>>, %arg20: memref<128x8xf32, #tpu.memory_space<vmem>>, %arg21: memref<8x32xf32, #tpu.memory_space<vmem>>, %arg22: memref<1x1x16xf32, #tpu.memory_space<vmem>>) attributes {dimension_semantics = [#tpu.dimension_semantics<parallel>], iteration_bounds = array<i64: 1>, scalar_prefetch = 0 : i64, scratch_operands = 0 : i64, tpu.core_type = #tpu.core_type<tc>, window_params = [{transform_indices = @transform_0, window_bounds = array<i64: 16, 16>}, {pipeline_mode = #tpu.pipeline_mode<synchronous>, transform_indices = @transform_1, window_bounds = array<i64: 16, 32>}, {pipeline_mode = #tpu.pipeline_mode<synchronous>, transform_indices = @transform_2, window_bounds = array<i64: 1, 32>}, {pipeline_mode = #tpu.pipeline_mode<synchronous>, transform_indices = @transform_3, window_bounds = array<i64: 32, 96>}, {pipeline_mode = #tpu.pipeline_mode<synchronous>, transform_indices = @transform_4, window_bounds = array<i64: 1, 96>}, {pipeline_mode = #tpu.pipeline_mode<synchronous>, transform_indices = @transform_5, window_bounds = array<i64: 32, 32>}, {pipeline_mode = #tpu.pipeline_mode<synchronous>, transform_indices = @transform_6, window_bounds = array<i64: 1, 32>}, {pipeline_mode = #tpu.pipeline_mode<synchronous>, transform_indices = @transform_7, window_bounds = array<i64: 1, 32>}, {pipeline_mode = #tpu.pipeline_mode<synchronous>, transform_indices = @transform_8, window_bounds = array<i64: 1, 32>}, {pipeline_mode = #tpu.pipeline_mode<synchronous>, transform_indices = @transform_9, window_bounds = array<i64: 32, 2048>}, {pipeline_mode = #tpu.pipeline_mode<synchronous>, transform_indices = @transform_10, window_bounds = array<i64: 1, 2048>}, {pipeline_mode = #tpu.pipeline_mode<synchronous>, transform_indices = @transform_11, window_bounds = array<i64: 2048, 32>}, {pipeline_mode = #tpu.pipeline_mode<synchronous>, transform_indices = @transform_12, window_bounds = array<i64: 1, 32>}, {pipeline_mode = #tpu.pipeline_mode<synchronous>, transform_indices = @transform_13, window_bounds = array<i64: 1, 32>}, {pipeline_mode = #tpu.pipeline_mode<synchronous>, transform_indices = @transform_14, window_bounds = array<i64: 1, 32>}, {pipeline_mode = #tpu.pipeline_mode<synchronous>, transform_indices = @transform_15, window_bounds = array<i64: 1, 32>}, {pipeline_mode = #tpu.pipeline_mode<synchronous>, transform_indices = @transform_16, window_bounds = array<i64: 1, 1>}, {pipeline_mode = #tpu.pipeline_mode<synchronous>, transform_indices = @transform_17, window_bounds = array<i64: 128, 32>}, {pipeline_mode = #tpu.pipeline_mode<synchronous>, transform_indices = @transform_18, window_bounds = array<i64: 16, 128>}, {pipeline_mode = #tpu.pipeline_mode<synchronous>, transform_indices = @transform_19, window_bounds = array<i64: 128, 8>}, {pipeline_mode = #tpu.pipeline_mode<synchronous>, transform_indices = @transform_20, window_bounds = array<i64: 8, 32>}, {transform_indices = @transform_21, window_bounds = array<i64: 1, 1, 16>}]} {
    %c0 = arith.constant 0 : index
    %c0_0 = arith.constant 0 : index
    %0 = vector.load %arg1[%c0, %c0_0] : memref<16x16xf32, #tpu.memory_space<vmem>>, vector<16x16xf32>
    %c0_1 = arith.constant 0 : index
    %c0_2 = arith.constant 0 : index
    %1 = vector.load %arg2[%c0_1, %c0_2] : memref<16x32xf32, #tpu.memory_space<vmem>>, vector<16x32xf32>
    %cst = arith.constant dense<0.000000e+00> : vector<16x32xf32>
    %2 = tpu.matmul %0, %1, %cst {dimension_numbers = #tpu.dot_dimension_numbers<[1], [0], [0], [1], [0, 0, 1, 1], [], []>} : vector<16x16xf32>, vector<16x32xf32>, vector<16x32xf32> -> vector<16x32xf32>
    %c0_3 = arith.constant 0 : index
    %c0_4 = arith.constant 0 : index
    %3 = vector.load %arg3[%c0_3, %c0_4] : memref<1x32xf32, #tpu.memory_space<vmem>>, vector<1x32xf32>
    %4 = vector.broadcast %3 : vector<1x32xf32> to vector<16x32xf32>
    %5 = arith.addf %2, %4 : vector<16x32xf32>
    %c0_5 = arith.constant 0 : index
    %c0_6 = arith.constant 0 : index
    %6 = vector.load %arg4[%c0_5, %c0_6] : memref<32x96xf32, #tpu.memory_space<vmem>>, vector<32x96xf32>
    %cst_7 = arith.constant dense<0.000000e+00> : vector<16x96xf32>
    %7 = tpu.matmul %5, %6, %cst_7 {dimension_numbers = #tpu.dot_dimension_numbers<[1], [0], [0], [1], [0, 0, 1, 1], [], []>} : vector<16x32xf32>, vector<32x96xf32>, vector<16x96xf32> -> vector<16x96xf32>
    %c0_8 = arith.constant 0 : index
    %c0_9 = arith.constant 0 : index
    %8 = vector.load %arg5[%c0_8, %c0_9] : memref<1x96xf32, #tpu.memory_space<vmem>>, vector<1x96xf32>
    %9 = vector.broadcast %8 : vector<1x96xf32> to vector<16x96xf32>
    %10 = arith.addf %7, %9 : vector<16x96xf32>
    %11 = vector.extract_strided_slice %10 {offsets = [0, 0], sizes = [16, 32], strides = [1, 1]} : vector<16x96xf32> to vector<16x32xf32>
    %12 = vector.extract_strided_slice %10 {offsets = [0, 32], sizes = [16, 32], strides = [1, 1]} : vector<16x96xf32> to vector<16x32xf32>
    %13 = vector.extract_strided_slice %10 {offsets = [0, 64], sizes = [16, 32], strides = [1, 1]} : vector<16x96xf32> to vector<16x32xf32>
    %c0_10 = arith.constant 0 : index
    %c0_11 = arith.constant 0 : index
    %14 = vector.load %arg18[%c0_10, %c0_11] : memref<128x32xf32, #tpu.memory_space<vmem>>, vector<128x32xf32>
    %15 = tpu.concatenate %12, %12, %12, %12, %12, %12, %12, %12 in 0 : vector<16x32xf32>, vector<16x32xf32>, vector<16x32xf32>, vector<16x32xf32>, vector<16x32xf32>, vector<16x32xf32>, vector<16x32xf32>, vector<16x32xf32> -> vector<128x32xf32>
    %16 = arith.mulf %15, %14 : vector<128x32xf32>
    %17 = tpu.concatenate %13, %13, %13, %13, %13, %13, %13, %13 in 0 : vector<16x32xf32>, vector<16x32xf32>, vector<16x32xf32>, vector<16x32xf32>, vector<16x32xf32>, vector<16x32xf32>, vector<16x32xf32>, vector<16x32xf32> -> vector<128x32xf32>
    %18 = arith.mulf %17, %14 : vector<128x32xf32>
    "tpu.trace_start"() <{level = 10 : i32, message = "nc,rc->nr"}> : () -> ()
    %cst_12 = arith.constant dense<0.000000e+00> : vector<16x128xf32>
    %19 = tpu.matmul %11, %16, %cst_12 {dimension_numbers = #tpu.dot_dimension_numbers<[1], [1], [0], [0], [0, 0, 1, 0], [], []>} : vector<16x32xf32>, vector<128x32xf32>, vector<16x128xf32> -> vector<16x128xf32>
    "tpu.trace_stop"() : () -> ()
    %c0_13 = arith.constant 0 : index
    %c0_14 = arith.constant 0 : index
    %20 = vector.load %arg19[%c0_13, %c0_14] : memref<16x128xf32, #tpu.memory_space<vmem>>, vector<16x128xf32>
    %21 = arith.addf %19, %20 : vector<16x128xf32>
    %cst_15 = arith.constant dense<0xFF800000> : vector<16xf32>
    %22 = vector.multi_reduction <maximumf>, %21, %cst_15 [1] : vector<16x128xf32> to vector<16xf32>
    %23 = vector.shape_cast %22 : vector<16xf32> to vector<16x1xf32>
    %24 = vector.broadcast %23 : vector<16x1xf32> to vector<16x128xf32>
    %25 = arith.subf %21, %24 : vector<16x128xf32>
    %26 = math.exp %25 : vector<16x128xf32>
    %cst_16 = arith.constant dense<0.000000e+00> : vector<16x32xf32>
    %27 = tpu.matmul %26, %18, %cst_16 {dimension_numbers = #tpu.dot_dimension_numbers<[1], [0], [0], [1], [0, 0, 1, 1], [], []>} : vector<16x128xf32>, vector<128x32xf32>, vector<16x32xf32> -> vector<16x32xf32>
    %c0_17 = arith.constant 0 : index
    %c0_18 = arith.constant 0 : index
    %28 = vector.load %arg20[%c0_17, %c0_18] : memref<128x8xf32, #tpu.memory_space<vmem>>, vector<128x8xf32>
    %cst_19 = arith.constant dense<0.000000e+00> : vector<16x8xf32>
    %29 = tpu.matmul %26, %28, %cst_19 {dimension_numbers = #tpu.dot_dimension_numbers<[1], [0], [0], [1], [0, 0, 1, 1], [], []>} : vector<16x128xf32>, vector<128x8xf32>, vector<16x8xf32> -> vector<16x8xf32>
    %30 = tpu.reciprocal %29 {approx = true} : vector<16x8xf32> -> vector<16x8xf32>
    %c0_20 = arith.constant 0 : index
    %c0_21 = arith.constant 0 : index
    %31 = vector.load %arg21[%c0_20, %c0_21] : memref<8x32xf32, #tpu.memory_space<vmem>>, vector<8x32xf32>
    %cst_22 = arith.constant dense<0.000000e+00> : vector<16x32xf32>
    %32 = tpu.matmul %30, %31, %cst_22 {dimension_numbers = #tpu.dot_dimension_numbers<[1], [0], [0], [1], [0, 0, 1, 1], [], []>} : vector<16x8xf32>, vector<8x32xf32>, vector<16x32xf32> -> vector<16x32xf32>
    %33 = arith.mulf %27, %32 : vector<16x32xf32>
    %c0_23 = arith.constant 0 : index
    %c0_24 = arith.constant 0 : index
    %34 = vector.load %arg6[%c0_23, %c0_24] : memref<32x32xf32, #tpu.memory_space<vmem>>, vector<32x32xf32>
    %cst_25 = arith.constant dense<0.000000e+00> : vector<16x32xf32>
    %35 = tpu.matmul %33, %34, %cst_25 {dimension_numbers = #tpu.dot_dimension_numbers<[1], [0], [0], [1], [0, 0, 1, 1], [], []>} : vector<16x32xf32>, vector<32x32xf32>, vector<16x32xf32> -> vector<16x32xf32>
    %c0_26 = arith.constant 0 : index
    %c0_27 = arith.constant 0 : index
    %36 = vector.load %arg7[%c0_26, %c0_27] : memref<1x32xf32, #tpu.memory_space<vmem>>, vector<1x32xf32>
    %37 = vector.broadcast %36 : vector<1x32xf32> to vector<16x32xf32>
    %38 = arith.addf %35, %37 : vector<16x32xf32>
    %39 = arith.addf %5, %38 : vector<16x32xf32>
    %c0_28 = arith.constant 0 : index
    %c0_29 = arith.constant 0 : index
    %40 = vector.load %arg8[%c0_28, %c0_29] : memref<1x32xf32, #tpu.memory_space<vmem>>, vector<1x32xf32>
    %c0_30 = arith.constant 0 : index
    %c0_31 = arith.constant 0 : index
    %41 = vector.load %arg9[%c0_30, %c0_31] : memref<1x32xf32, #tpu.memory_space<vmem>>, vector<1x32xf32>
    %cst_32 = arith.constant dense<0.000000e+00> : vector<16xf32>
    %42 = vector.multi_reduction <add>, %39, %cst_32 [1] : vector<16x32xf32> to vector<16xf32>
    %43 = vector.shape_cast %42 : vector<16xf32> to vector<16x1xf32>
    %cst_33 = arith.constant 3.200000e+01 : f32
    %44 = vector.broadcast %cst_33 : f32 to vector<16x1xf32>
    %45 = arith.divf %43, %44 : vector<16x1xf32>
    %46 = vector.broadcast %45 : vector<16x1xf32> to vector<16x32xf32>
    %47 = arith.subf %39, %46 : vector<16x32xf32>
    %48 = arith.mulf %47, %47 : vector<16x32xf32>
    %cst_34 = arith.constant dense<0.000000e+00> : vector<16xf32>
    %49 = vector.multi_reduction <add>, %48, %cst_34 [1] : vector<16x32xf32> to vector<16xf32>
    %50 = vector.shape_cast %49 : vector<16xf32> to vector<16x1xf32>
    %cst_35 = arith.constant 3.200000e+01 : f32
    %51 = vector.broadcast %cst_35 : f32 to vector<16x1xf32>
    %52 = arith.divf %50, %51 : vector<16x1xf32>
    %cst_36 = arith.constant 9.99999974E-6 : f32
    %53 = vector.broadcast %cst_36 : f32 to vector<16x1xf32>
    %54 = arith.addf %52, %53 : vector<16x1xf32>
    %55 = math.rsqrt %54 : vector<16x1xf32>
    %56 = vector.broadcast %55 : vector<16x1xf32> to vector<16x32xf32>
    %57 = arith.mulf %47, %56 : vector<16x32xf32>
    %58 = vector.broadcast %40 : vector<1x32xf32> to vector<16x32xf32>
    %59 = arith.mulf %57, %58 : vector<16x32xf32>
    %60 = vector.broadcast %41 : vector<1x32xf32> to vector<16x32xf32>
    %61 = arith.addf %59, %60 : vector<16x32xf32>
    %62 = arith.truncf %61 : vector<16x32xf32> to vector<16x32xbf16>
    %c0_37 = arith.constant 0 : index
    %c0_38 = arith.constant 0 : index
    %63 = vector.load %arg10[%c0_37, %c0_38] : memref<32x2048xbf16, #tpu.memory_space<vmem>>, vector<32x2048xbf16>
    %cst_39 = arith.constant dense<0.000000e+00> : vector<16x2048xf32>
    %64 = tpu.matmul %62, %63, %cst_39 {dimension_numbers = #tpu.dot_dimension_numbers<[1], [0], [0], [1], [0, 0, 1, 1], [], []>} : vector<16x32xbf16>, vector<32x2048xbf16>, vector<16x2048xf32> -> vector<16x2048xf32>
    %c0_40 = arith.constant 0 : index
    %c0_41 = arith.constant 0 : index
    %65 = vector.load %arg11[%c0_40, %c0_41] : memref<1x2048xf32, #tpu.memory_space<vmem>>, vector<1x2048xf32>
    %66 = vector.broadcast %65 : vector<1x2048xf32> to vector<16x2048xf32>
    %67 = arith.addf %64, %66 : vector<16x2048xf32>
    %cst_42 = arith.constant 0.000000e+00 : f32
    %68 = vector.broadcast %cst_42 : f32 to vector<16x2048xf32>
    %69 = arith.maximumf %67, %68 : vector<16x2048xf32>
    %70 = arith.truncf %69 : vector<16x2048xf32> to vector<16x2048xbf16>
    %c0_43 = arith.constant 0 : index
    %c0_44 = arith.constant 0 : index
    %71 = vector.load %arg12[%c0_43, %c0_44] : memref<2048x32xbf16, #tpu.memory_space<vmem>>, vector<2048x32xbf16>
    %cst_45 = arith.constant dense<0.000000e+00> : vector<16x32xf32>
    %72 = tpu.matmul %70, %71, %cst_45 {dimension_numbers = #tpu.dot_dimension_numbers<[1], [0], [0], [1], [0, 0, 1, 1], [], []>} : vector<16x2048xbf16>, vector<2048x32xbf16>, vector<16x32xf32> -> vector<16x32xf32>
    %c0_46 = arith.constant 0 : index
    %c0_47 = arith.constant 0 : index
    %73 = vector.load %arg13[%c0_46, %c0_47] : memref<1x32xf32, #tpu.memory_space<vmem>>, vector<1x32xf32>
    %74 = vector.broadcast %73 : vector<1x32xf32> to vector<16x32xf32>
    %75 = arith.addf %72, %74 : vector<16x32xf32>
    %76 = arith.addf %61, %75 : vector<16x32xf32>
    %c0_48 = arith.constant 0 : index
    %c0_49 = arith.constant 0 : index
    %77 = vector.load %arg14[%c0_48, %c0_49] : memref<1x32xf32, #tpu.memory_space<vmem>>, vector<1x32xf32>
    %c0_50 = arith.constant 0 : index
    %c0_51 = arith.constant 0 : index
    %78 = vector.load %arg15[%c0_50, %c0_51] : memref<1x32xf32, #tpu.memory_space<vmem>>, vector<1x32xf32>
    %cst_52 = arith.constant dense<0.000000e+00> : vector<16xf32>
    %79 = vector.multi_reduction <add>, %76, %cst_52 [1] : vector<16x32xf32> to vector<16xf32>
    %80 = vector.shape_cast %79 : vector<16xf32> to vector<16x1xf32>
    %cst_53 = arith.constant 3.200000e+01 : f32
    %81 = vector.broadcast %cst_53 : f32 to vector<16x1xf32>
    %82 = arith.divf %80, %81 : vector<16x1xf32>
    %83 = vector.broadcast %82 : vector<16x1xf32> to vector<16x32xf32>
    %84 = arith.subf %76, %83 : vector<16x32xf32>
    %85 = arith.mulf %84, %84 : vector<16x32xf32>
    %cst_54 = arith.constant dense<0.000000e+00> : vector<16xf32>
    %86 = vector.multi_reduction <add>, %85, %cst_54 [1] : vector<16x32xf32> to vector<16xf32>
    %87 = vector.shape_cast %86 : vector<16xf32> to vector<16x1xf32>
    %cst_55 = arith.constant 3.200000e+01 : f32
    %88 = vector.broadcast %cst_55 : f32 to vector<16x1xf32>
    %89 = arith.divf %87, %88 : vector<16x1xf32>
    %cst_56 = arith.constant 9.99999974E-6 : f32
    %90 = vector.broadcast %cst_56 : f32 to vector<16x1xf32>
    %91 = arith.addf %89, %90 : vector<16x1xf32>
    %92 = math.rsqrt %91 : vector<16x1xf32>
    %93 = vector.broadcast %92 : vector<16x1xf32> to vector<16x32xf32>
    %94 = arith.mulf %84, %93 : vector<16x32xf32>
    %95 = vector.broadcast %77 : vector<1x32xf32> to vector<16x32xf32>
    %96 = arith.mulf %94, %95 : vector<16x32xf32>
    %97 = vector.broadcast %78 : vector<1x32xf32> to vector<16x32xf32>
    %98 = arith.addf %96, %97 : vector<16x32xf32>
    %c0_57 = arith.constant 0 : index
    %c0_58 = arith.constant 0 : index
    %99 = vector.load %arg16[%c0_57, %c0_58] : memref<1x32xf32, #tpu.memory_space<vmem>>, vector<1x32xf32>
    "tpu.trace_start"() <{level = 10 : i32, message = "oc,nc->on"}> : () -> ()
    %cst_59 = arith.constant dense<0.000000e+00> : vector<1x16xf32>
    %100 = tpu.matmul %99, %98, %cst_59 {dimension_numbers = #tpu.dot_dimension_numbers<[1], [1], [0], [0], [0, 0, 1, 0], [], []>} : vector<1x32xf32>, vector<16x32xf32>, vector<1x16xf32> -> vector<1x16xf32>
    "tpu.trace_stop"() : () -> ()
    %c0_60 = arith.constant 0 : index
    %c0_61 = arith.constant 0 : index
    %101 = vector.load %arg17[%c0_60, %c0_61] : memref<1x1xf32, #tpu.memory_space<vmem>>, vector<1x1xf32>
    %102 = vector.broadcast %101 : vector<1x1xf32> to vector<1x16xf32>
    %103 = arith.addf %100, %102 : vector<1x16xf32>
    %104 = vector.shape_cast %103 : vector<1x16xf32> to vector<1x1x16xf32>
    %c0_62 = arith.constant 0 : index
    %c0_63 = arith.constant 0 : index
    %c0_64 = arith.constant 0 : index
    %105 = vector.load %arg22[%c0_62, %c0_63, %c0_64] : memref<1x1x16xf32, #tpu.memory_space<vmem>>, vector<1x1x16xf32>
    tpu.vector_store %arg22[%c0_62, %c0_63, %c0_64], %104 {strides = array<i32>} : memref<1x1x16xf32, #tpu.memory_space<vmem>>, vector<1x1x16xf32>,
    return
  }
  func.func @transform_0(%arg0: i32) -> (i32, i32) {
    %c0_i32 = arith.constant 0 : i32
    %c0_i32_0 = arith.constant 0 : i32
    return %arg0, %c0_i32 : i32, i32
  }
  func.func @transform_1(%arg0: i32) -> (i32, i32) {
    %c0_i32 = arith.constant 0 : i32
    %c0_i32_0 = arith.constant 0 : i32
    %c0_i32_1 = arith.constant 0 : i32
    return %c0_i32, %c0_i32_0 : i32, i32
  }
  func.func @transform_2(%arg0: i32) -> (i32, i32) {
    %c0_i32 = arith.constant 0 : i32
    %c0_i32_0 = arith.constant 0 : i32
    %c0_i32_1 = arith.constant 0 : i32
    return %c0_i32, %c0_i32_0 : i32, i32
  }
  func.func @transform_3(%arg0: i32) -> (i32, i32) {
    %c0_i32 = arith.constant 0 : i32
    %c0_i32_0 = arith.constant 0 : i32
    %c0_i32_1 = arith.constant 0 : i32
    return %c0_i32, %c0_i32_0 : i32, i32
  }
  func.func @transform_4(%arg0: i32) -> (i32, i32) {
    %c0_i32 = arith.constant 0 : i32
    %c0_i32_0 = arith.constant 0 : i32
    %c0_i32_1 = arith.constant 0 : i32
    return %c0_i32, %c0_i32_0 : i32, i32
  }
  func.func @transform_5(%arg0: i32) -> (i32, i32) {
    %c0_i32 = arith.constant 0 : i32
    %c0_i32_0 = arith.constant 0 : i32
    %c0_i32_1 = arith.constant 0 : i32
    return %c0_i32, %c0_i32_0 : i32, i32
  }
  func.func @transform_6(%arg0: i32) -> (i32, i32) {
    %c0_i32 = arith.constant 0 : i32
    %c0_i32_0 = arith.constant 0 : i32
    %c0_i32_1 = arith.constant 0 : i32
    return %c0_i32, %c0_i32_0 : i32, i32
  }
  func.func @transform_7(%arg0: i32) -> (i32, i32) {
    %c0_i32 = arith.constant 0 : i32
    %c0_i32_0 = arith.constant 0 : i32
    %c0_i32_1 = arith.constant 0 : i32
    return %c0_i32, %c0_i32_0 : i32, i32
  }
  func.func @transform_8(%arg0: i32) -> (i32, i32) {
    %c0_i32 = arith.constant 0 : i32
    %c0_i32_0 = arith.constant 0 : i32
    %c0_i32_1 = arith.constant 0 : i32
    return %c0_i32, %c0_i32_0 : i32, i32
  }
  func.func @transform_9(%arg0: i32) -> (i32, i32) {
    %c0_i32 = arith.constant 0 : i32
    %c0_i32_0 = arith.constant 0 : i32
    %c0_i32_1 = arith.constant 0 : i32
    return %c0_i32, %c0_i32_0 : i32, i32
  }
  func.func @transform_10(%arg0: i32) -> (i32, i32) {
    %c0_i32 = arith.constant 0 : i32
    %c0_i32_0 = arith.constant 0 : i32
    %c0_i32_1 = arith.constant 0 : i32
    return %c0_i32, %c0_i32_0 : i32, i32
  }
  func.func @transform_11(%arg0: i32) -> (i32, i32) {
    %c0_i32 = arith.constant 0 : i32
    %c0_i32_0 = arith.constant 0 : i32
    %c0_i32_1 = arith.constant 0 : i32
    return %c0_i32, %c0_i32_0 : i32, i32
  }
  func.func @transform_12(%arg0: i32) -> (i32, i32) {
    %c0_i32 = arith.constant 0 : i32
    %c0_i32_0 = arith.constant 0 : i32
    %c0_i32_1 = arith.constant 0 : i32
    return %c0_i32, %c0_i32_0 : i32, i32
  }
  func.func @transform_13(%arg0: i32) -> (i32, i32) {
    %c0_i32 = arith.constant 0 : i32
    %c0_i32_0 = arith.constant 0 : i32
    %c0_i32_1 = arith.constant 0 : i32
    return %c0_i32, %c0_i32_0 : i32, i32
  }
  func.func @transform_14(%arg0: i32) -> (i32, i32) {
    %c0_i32 = arith.constant 0 : i32
    %c0_i32_0 = arith.constant 0 : i32
    %c0_i32_1 = arith.constant 0 : i32
    return %c0_i32, %c0_i32_0 : i32, i32
  }
  func.func @transform_15(%arg0: i32) -> (i32, i32) {
    %c0_i32 = arith.constant 0 : i32
    %c0_i32_0 = arith.constant 0 : i32
    %c0_i32_1 = arith.constant 0 : i32
    return %c0_i32, %c0_i32_0 : i32, i32
  }
  func.func @transform_16(%arg0: i32) -> (i32, i32) {
    %c0_i32 = arith.constant 0 : i32
    %c0_i32_0 = arith.constant 0 : i32
    %c0_i32_1 = arith.constant 0 : i32
    return %c0_i32, %c0_i32_0 : i32, i32
  }
  func.func @transform_17(%arg0: i32) -> (i32, i32) {
    %c0_i32 = arith.constant 0 : i32
    %c0_i32_0 = arith.constant 0 : i32
    %c0_i32_1 = arith.constant 0 : i32
    return %c0_i32, %c0_i32_0 : i32, i32
  }
  func.func @transform_18(%arg0: i32) -> (i32, i32) {
    %c0_i32 = arith.constant 0 : i32
    %c0_i32_0 = arith.constant 0 : i32
    %c0_i32_1 = arith.constant 0 : i32
    return %c0_i32, %c0_i32_0 : i32, i32
  }
  func.func @transform_19(%arg0: i32) -> (i32, i32) {
    %c0_i32 = arith.constant 0 : i32
    %c0_i32_0 = arith.constant 0 : i32
    %c0_i32_1 = arith.constant 0 : i32
    return %c0_i32, %c0_i32_0 : i32, i32
  }
  func.func @transform_20(%arg0: i32) -> (i32, i32) {
    %c0_i32 = arith.constant 0 : i32
    %c0_i32_0 = arith.constant 0 : i32
    %c0_i32_1 = arith.constant 0 : i32
    return %c0_i32, %c0_i32_0 : i32, i32
  }
  func.func @transform_21(%arg0: i32) -> (i32, i32, i32) {
    %c0_i32 = arith.constant 0 : i32
    %c0_i32_0 = arith.constant 0 : i32
    %c0_i32_1 = arith.constant 0 : i32
    return %arg0, %c0_i32, %c0_i32_0 : i32, i32, i32
  }
}

</mosaic_0001>

<llo_original>
// kernel: tpu_custom_call.1
$region0: #{tpu_custom_call.1}
  #allocation0 [shape = 'u32[]', space=smem, size = 0x4, offset = 0x4, fixed_abs, tag = 'smem constant byte address 0x4 - core index']
  #allocation1 [shape = 'u32[144,128]{1,0:T(1,128)}', space=vmem, size = 0x12000, scoped, tag = 'internal scratch']
  #allocation2 [shape = 'f32[1,1]{1,0:T(1,128)S(1)}', space=vmem, size = 0x200, scoped, tag = 'scoped memory for tpu_custom_call.1']
  %s0 = inlined_call_operand.vmem [shape: f32[16,16], index: 0, kind: input, shape index: {}]
  %s1 = inlined_call_operand.vmem [shape: f32[16,32], index: 1, kind: input, shape index: {}]
  %s2 = inlined_call_operand.vmem [shape: f32[1,32], index: 2, kind: input, shape index: {}]
  %s3 = inlined_call_operand.vmem [shape: f32[32,96], index: 3, kind: input, shape index: {}]
  %s4 = inlined_call_operand.vmem [shape: f32[1,96], index: 4, kind: input, shape index: {}]
  %s5 = inlined_call_operand.vmem [shape: f32[32,32], index: 5, kind: input, shape index: {}]
  %s6 = inlined_call_operand.vmem [shape: f32[1,32], index: 6, kind: input, shape index: {}]
  %s7 = inlined_call_operand.vmem [shape: f32[1,32], index: 7, kind: input, shape index: {}]
  %s8 = inlined_call_operand.vmem [shape: f32[1,32], index: 8, kind: input, shape index: {}]
  %s9 = inlined_call_operand.vmem [shape: bf16[32,2048], index: 9, kind: input, shape index: {}]
  %s10 = inlined_call_operand.vmem [shape: f32[1,2048], index: 10, kind: input, shape index: {}]
  %s11 = inlined_call_operand.vmem [shape: bf16[2048,32], index: 11, kind: input, shape index: {}]
  %s12 = inlined_call_operand.vmem [shape: f32[1,32], index: 12, kind: input, shape index: {}]
  %s13 = inlined_call_operand.vmem [shape: f32[1,32], index: 13, kind: input, shape index: {}]
  %s14 = inlined_call_operand.vmem [shape: f32[1,32], index: 14, kind: input, shape index: {}]
  %s15 = inlined_call_operand.vmem [shape: f32[1,32], index: 15, kind: input, shape index: {}]
  %s16 = inlined_call_operand.<no memory space> [shape: f32[1,1], index: 16, kind: input, shape index: {}]
  %s17 = inlined_call_operand.vmem [shape: f32[128,32], index: 17, kind: input, shape index: {}]
  %s18 = inlined_call_operand.vmem [shape: f32[16,128], index: 18, kind: input, shape index: {}]
  %s19 = inlined_call_operand.vmem [shape: f32[128,8], index: 19, kind: input, shape index: {}]
  %s20 = inlined_call_operand.vmem [shape: f32[8,32], index: 20, kind: input, shape index: {}]
  %s21 = inlined_call_operand.hbm [shape: f32[1,1,16], index: 21, kind: output, shape index: {}]
  %s22 = sld [smem:[#allocation0]]
  $region94: #{tpu_custom_call.1} parent=0
    _
  %s24 = ssub.s32 1, %s22
  %s25 = scalar_select 0, %s24, %s22
  %v26 = vstv %s16
  %27 = vst [vmem:[#allocation2] sm:$0x1] %v26
  $region1: #{tpu_custom_call.1} parent=0
    #allocation3 [shape = 'u8[512]{0}', space=vmem, size = 0x400, scoped, tag = 'output window, operand 0, single buffered']
    #allocation4 [shape = 's32[1]{0}', space=sflag, size = 0x4, scoped, tag = 'scoped memory for tpu_custom_call.1']
    %28 = vsyncpa [#allocation4], 0
    // Predicated region
    $region2: #{tpu_custom_call.1} parent=1 // pred_check
      _
    $region3: #{tpu_custom_call.1} parent=1 // pred_check_branch
      %30 = sbr.rel (0) target = $region5
    $region4: #{tpu_custom_call.1} parent=1 // pred_region
      _
    $region5: #{tpu_custom_call.1} parent=1 // pred_fallthru
      _
    // Predicated region
    $region6: #{tpu_custom_call.1} parent=1 // pred_check
      _
    $region7: #{tpu_custom_call.1} parent=1 // pred_check_branch
      %32 = sbr.rel (0) target = $region9
    $region8: #{tpu_custom_call.1} parent=1 // pred_region
      _
    $region9: #{tpu_custom_call.1} parent=1 // pred_fallthru
      _
    // Predicated region
    $region10: #{tpu_custom_call.1} parent=1 // pred_check
      _
    $region11: #{tpu_custom_call.1} parent=1 // pred_check_branch
      %34 = sbr.rel (0) target = $region13
    $region12: #{tpu_custom_call.1} parent=1 // pred_region
      _
    $region13: #{tpu_custom_call.1} parent=1 // pred_fallthru
      _
    // Predicated region
    $region14: #{tpu_custom_call.1} parent=1 // pred_check
      _
    $region15: #{tpu_custom_call.1} parent=1 // pred_check_branch
      %36 = sbr.rel (0) target = $region17
    $region16: #{tpu_custom_call.1} parent=1 // pred_region
      _
    $region17: #{tpu_custom_call.1} parent=1 // pred_fallthru
      _
    // Predicated region
    $region18: #{tpu_custom_call.1} parent=1 // pred_check
      _
    $region19: #{tpu_custom_call.1} parent=1 // pred_check_branch
      %38 = sbr.rel (0) target = $region21
    $region20: #{tpu_custom_call.1} parent=1 // pred_region
      _
    $region21: #{tpu_custom_call.1} parent=1 // pred_fallthru
      _
    // Predicated region
    $region22: #{tpu_custom_call.1} parent=1 // pred_check
      _
    $region23: #{tpu_custom_call.1} parent=1 // pred_check_branch
      %40 = sbr.rel (0) target = $region25
    $region24: #{tpu_custom_call.1} parent=1 // pred_region
      _
    $region25: #{tpu_custom_call.1} parent=1 // pred_fallthru
      _
    // Predicated region
    $region26: #{tpu_custom_call.1} parent=1 // pred_check
      _
    $region27: #{tpu_custom_call.1} parent=1 // pred_check_branch
      %42 = sbr.rel (0) target = $region29
    $region28: #{tpu_custom_call.1} parent=1 // pred_region
      _
    $region29: #{tpu_custom_call.1} parent=1 // pred_fallthru
      _
    // Predicated region
    $region30: #{tpu_custom_call.1} parent=1 // pred_check
      _
    $region31: #{tpu_custom_call.1} parent=1 // pred_check_branch
      %44 = sbr.rel (0) target = $region33
    $region32: #{tpu_custom_call.1} parent=1 // pred_region
      _
    $region33: #{tpu_custom_call.1} parent=1 // pred_fallthru
      _
    // Predicated region
    $region34: #{tpu_custom_call.1} parent=1 // pred_check
      _
    $region35: #{tpu_custom_call.1} parent=1 // pred_check_branch
      %46 = sbr.rel (0) target = $region37
    $region36: #{tpu_custom_call.1} parent=1 // pred_region
      _
    $region37: #{tpu_custom_call.1} parent=1 // pred_fallthru
      _
    // Predicated region
    $region38: #{tpu_custom_call.1} parent=1 // pred_check
      _
    $region39: #{tpu_custom_call.1} parent=1 // pred_check_branch
      %48 = sbr.rel (0) target = $region41
    $region40: #{tpu_custom_call.1} parent=1 // pred_region
      _
    $region41: #{tpu_custom_call.1} parent=1 // pred_fallthru
      _
    // Predicated region
    $region42: #{tpu_custom_call.1} parent=1 // pred_check
      _
    $region43: #{tpu_custom_call.1} parent=1 // pred_check_branch
      %50 = sbr.rel (0) target = $region45
    $region44: #{tpu_custom_call.1} parent=1 // pred_region
      _
    $region45: #{tpu_custom_call.1} parent=1 // pred_fallthru
      _
    // Predicated region
    $region46: #{tpu_custom_call.1} parent=1 // pred_check
      _
    $region47: #{tpu_custom_call.1} parent=1 // pred_check_branch
      %52 = sbr.rel (0) target = $region49
    $region48: #{tpu_custom_call.1} parent=1 // pred_region
      _
    $region49: #{tpu_custom_call.1} parent=1 // pred_fallthru
      _
    // Predicated region
    $region50: #{tpu_custom_call.1} parent=1 // pred_check
      _
    $region51: #{tpu_custom_call.1} parent=1 // pred_check_branch
      %54 = sbr.rel (0) target = $region53
    $region52: #{tpu_custom_call.1} parent=1 // pred_region
      _
    $region53: #{tpu_custom_call.1} parent=1 // pred_fallthru
      _
    // Predicated region
    $region54: #{tpu_custom_call.1} parent=1 // pred_check
      _
    $region55: #{tpu_custom_call.1} parent=1 // pred_check_branch
      %56 = sbr.rel (0) target = $region57
    $region56: #{tpu_custom_call.1} parent=1 // pred_region
      _
    $region57: #{tpu_custom_call.1} parent=1 // pred_fallthru
      _
    // Predicated region
    $region58: #{tpu_custom_call.1} parent=1 // pred_check
      _
    $region59: #{tpu_custom_call.1} parent=1 // pred_check_branch
      %58 = sbr.rel (0) target = $region61
    $region60: #{tpu_custom_call.1} parent=1 // pred_region
      _
    $region61: #{tpu_custom_call.1} parent=1 // pred_fallthru
      _
    // Predicated region
    $region62: #{tpu_custom_call.1} parent=1 // pred_check
      _
    $region63: #{tpu_custom_call.1} parent=1 // pred_check_branch
      %60 = sbr.rel (0) target = $region65
    $region64: #{tpu_custom_call.1} parent=1 // pred_region
      _
    $region65: #{tpu_custom_call.1} parent=1 // pred_fallthru
      _
    // Predicated region
    $region66: #{tpu_custom_call.1} parent=1 // pred_check
      _
    $region67: #{tpu_custom_call.1} parent=1 // pred_check_branch
      %62 = sbr.rel (0) target = $region69
    $region68: #{tpu_custom_call.1} parent=1 // pred_region
      _
    $region69: #{tpu_custom_call.1} parent=1 // pred_fallthru
      _
    // Predicated region
    $region70: #{tpu_custom_call.1} parent=1 // pred_check
      _
    $region71: #{tpu_custom_call.1} parent=1 // pred_check_branch
      %64 = sbr.rel (0) target = $region73
    $region72: #{tpu_custom_call.1} parent=1 // pred_region
      _
    $region73: #{tpu_custom_call.1} parent=1 // pred_fallthru
      _
    // Predicated region
    $region74: #{tpu_custom_call.1} parent=1 // pred_check
      _
    $region75: #{tpu_custom_call.1} parent=1 // pred_check_branch
      %66 = sbr.rel (0) target = $region77
    $region76: #{tpu_custom_call.1} parent=1 // pred_region
      _
    $region77: #{tpu_custom_call.1} parent=1 // pred_fallthru
      _
    // Predicated region
    $region78: #{tpu_custom_call.1} parent=1 // pred_check
      _
    $region79: #{tpu_custom_call.1} parent=1 // pred_check_branch
      %68 = sbr.rel (0) target = $region81
    $region80: #{tpu_custom_call.1} parent=1 // pred_region
      _
    $region81: #{tpu_custom_call.1} parent=1 // pred_fallthru
      _
    // Predicated region
    $region82: #{tpu_custom_call.1} parent=1 // pred_check
      _
    $region83: #{tpu_custom_call.1} parent=1 // pred_check_branch
      %70 = sbr.rel (0) target = $region85
    $region84: #{tpu_custom_call.1} parent=1 // pred_region
      _
    $region85: #{tpu_custom_call.1} parent=1 // pred_fallthru
      _
    %v72 = vld [vmem:[%s0] sm:$0xff]
    %v73 = vld [vmem:[%s0 + $0x8] sm:$0xff]
    %v74 = vld [vmem:[%s1] sm:$0xff]
    %v75 = vld [vmem:[%s1 + $0x8] sm:$0xff]
    %v76 = vld [vmem:[%s2] sm:$0x1]
    %v78 = vlaneseq
    %v79 = vshrl.u32 %v78, 7
    %v80 = vsub.s32 0, %v79
    %v81 = vrot.slane %v76, %v80
    %vm83 = vcmask 130048
    %v85 = vsel %vm83, %v72, 0
    %v88 = vsel %vm83, %v73, 0
    %90 = vmatprep.subr.mxu0 0.0
    %91 = vmatpush1.msra.mxu0 %v74
    %92 = vmatprep.subr.mxu0 0.0
    %93 = vmatpush1.msra.mxu0 %v75
    %94 = vmatprep.subr.mxu0 0.0
    %95 = vmatpush1.msra.mxu0 0.0
    %96 = vmatprep.subr.mxu0 0.0
    %97 = vmatpush1.msra.mxu0 0.0
    %98 = vmatprep.subr.mxu0 0.0
    %99 = vmatpush1.msra.mxu0 0.0
    %100 = vmatprep.subr.mxu0 0.0
    %101 = vmatpush1.msra.mxu0 0.0
    %102 = vmatprep.subr.mxu0 0.0
    %103 = vmatpush1.msra.mxu0 0.0
    %104 = vmatprep.subr.mxu0 0.0
    %105 = vmatpush1.msra.mxu0 0.0
    %106 = vmatprep.subr.mxu0 0.0
    %107 = vmatpush1.msra.mxu0 0.0
    %108 = vmatprep.subr.mxu0 0.0
    %109 = vmatpush1.msra.mxu0 0.0
    %110 = vmatprep.subr.mxu0 0.0
    %111 = vmatpush1.msra.mxu0 0.0
    %112 = vmatprep.subr.mxu0 0.0
    %113 = vmatpush1.msra.mxu0 0.0
    %114 = vmatprep.subr.mxu0 0.0
    %115 = vmatpush1.msra.mxu0 0.0
    %116 = vmatprep.subr.mxu0 0.0
    %117 = vmatpush1.msra.mxu0 0.0
    %118 = vmatprep.subr.mxu0 0.0
    %119 = vmatpush1.msra.mxu0 0.0
    %120 = vmatprep.subr.mxu0 0.0
    %121 = vmatpush1.msra.mxu0 0.0
    %122 = vmatprep.subr.mxu0 0.0
    %123 = vmatpush1.msra.mxu0 0.0
    %124 = vmatprep.subr.mxu0 0.0
    %125 = vmatpush1.msra.mxu0 0.0
    %126 = vmatprep.subr.mxu0 0.0
    %127 = vmatpush1.msra.mxu0 0.0
    %128 = vmatprep.subr.mxu0 0.0
    %129 = vmatpush1.msra.mxu0 0.0
    %130 = vmatprep.subr.mxu0 0.0
    %131 = vmatpush1.msra.mxu0 0.0
    %132 = vmatprep.subr.mxu0 0.0
    %133 = vmatpush1.msra.mxu0 0.0
    %134 = vmatprep.subr.mxu0 0.0
    %135 = vmatpush1.msra.mxu0 0.0
    %136 = vmatprep.subr.mxu0 0.0
    %137 = vmatpush1.msra.mxu0 0.0
    %138 = vmatprep.subr.mxu0 0.0
    %139 = vmatpush1.msra.mxu0 0.0
    %140 = vmatprep.subr.mxu0 0.0
    %141 = vmatpush1.msra.mxu0 0.0
    %142 = vmatprep.subr.mxu0 0.0
    %143 = vmatpush1.msra.mxu0 0.0
    %144 = vmatprep.subr.mxu0 0.0
    %145 = vmatpush1.msra.mxu0 0.0
    %146 = vmatprep.subr.mxu0 0.0
    %147 = vmatpush1.msra.mxu0 0.0
    %148 = vmatprep.subr.mxu0 0.0
    %149 = vmatpush1.msra.mxu0 0.0
    %150 = vmatprep.subr.mxu0 0.0
    %151 = vmatpush1.msra.mxu0 0.0
    %152 = vmatprep.subr.mxu0 0.0
    %153 = vmatpush1.msra.mxu0 0.0
    %154 = vmatprep.mubr.f32.mxu0 0.0
    %155 = vmatmul.mubr.f32.gmra.mrb[0].mxu0 %v85
    %v156 = vpop.f32.mrb[0].mxu0
    %v157 = vadd.f32 %v81, %v156
    %v158 = vpop.f32.mrb[0].mxu0
    %159 = vmatprep.mubr.f32.mxu0 0.0
    %160 = vmatmul.mubr.f32.gmra.mrb[0].mxu0 %v88
    %v161 = vpop.f32.mrb[0].mxu0
    %v162 = vadd.f32 %v81, %v161
    %v163 = vpop.f32.mrb[0].mxu0
    %164 = vdwg.mxu0
    %v165 = vld [vmem:[%s3] sm:$0xff]
    %v166 = vld [vmem:[%s3 + $0x8] sm:$0xff]
    %v167 = vld [vmem:[%s3 + $0x10] sm:$0xff]
    %v168 = vld [vmem:[%s3 + $0x18] sm:$0xff]
    %v169 = vld [vmem:[%s4] sm:$0x1]
    %v171 = vlaneseq
    %v172 = vshrl.u32 %v171, 7
    %v173 = vsub.s32 0, %v172
    %v174 = vrot.slane %v169, %v173
    %vm176 = vcmask 261120
    %v178 = vsel %vm176, %v157, 0
    %v181 = vsel %vm176, %v162, 0
    %183 = vmatprep.subr.mxu0 0.0
    %184 = vmatpush1.msra.mxu0 %v165
    %185 = vmatprep.subr.mxu0 0.0
    %186 = vmatpush1.msra.mxu0 %v166
    %187 = vmatprep.subr.mxu0 0.0
    %188 = vmatpush1.msra.mxu0 %v167
    %189 = vmatprep.subr.mxu0 0.0
    %190 = vmatpush1.msra.mxu0 %v168
    %191 = vmatprep.subr.mxu0 0.0
    %192 = vmatpush1.msra.mxu0 0.0
    %193 = vmatprep.subr.mxu0 0.0
    %194 = vmatpush1.msra.mxu0 0.0
    %195 = vmatprep.subr.mxu0 0.0
    %196 = vmatpush1.msra.mxu0 0.0
    %197 = vmatprep.subr.mxu0 0.0
    %198 = vmatpush1.msra.mxu0 0.0
    %199 = vmatprep.subr.mxu0 0.0
    %200 = vmatpush1.msra.mxu0 0.0
    %201 = vmatprep.subr.mxu0 0.0
    %202 = vmatpush1.msra.mxu0 0.0
    %203 = vmatprep.subr.mxu0 0.0
    %204 = vmatpush1.msra.mxu0 0.0
    %205 = vmatprep.subr.mxu0 0.0
    %206 = vmatpush1.msra.mxu0 0.0
    %207 = vmatprep.subr.mxu0 0.0
    %208 = vmatpush1.msra.mxu0 0.0
    %209 = vmatprep.subr.mxu0 0.0
    %210 = vmatpush1.msra.mxu0 0.0
    %211 = vmatprep.subr.mxu0 0.0
    %212 = vmatpush1.msra.mxu0 0.0
    %213 = vmatprep.subr.mxu0 0.0
    %214 = vmatpush1.msra.mxu0 0.0
    %215 = vmatprep.subr.mxu0 0.0
    %216 = vmatpush1.msra.mxu0 0.0
    %217 = vmatprep.subr.mxu0 0.0
    %218 = vmatpush1.msra.mxu0 0.0
    %219 = vmatprep.subr.mxu0 0.0
    %220 = vmatpush1.msra.mxu0 0.0
    %221 = vmatprep.subr.mxu0 0.0
    %222 = vmatpush1.msra.mxu0 0.0
    %223 = vmatprep.subr.mxu0 0.0
    %224 = vmatpush1.msra.mxu0 0.0
    %225 = vmatprep.subr.mxu0 0.0
    %226 = vmatpush1.msra.mxu0 0.0
    %227 = vmatprep.subr.mxu0 0.0
    %228 = vmatpush1.msra.mxu0 0.0
    %229 = vmatprep.subr.mxu0 0.0
    %230 = vmatpush1.msra.mxu0 0.0
    %231 = vmatprep.subr.mxu0 0.0
    %232 = vmatpush1.msra.mxu0 0.0
    %233 = vmatprep.subr.mxu0 0.0
    %234 = vmatpush1.msra.mxu0 0.0
    %235 = vmatprep.subr.mxu0 0.0
    %236 = vmatpush1.msra.mxu0 0.0
    %237 = vmatprep.subr.mxu0 0.0
    %238 = vmatpush1.msra.mxu0 0.0
    %239 = vmatprep.subr.mxu0 0.0
    %240 = vmatpush1.msra.mxu0 0.0
    %241 = vmatprep.subr.mxu0 0.0
    %242 = vmatpush1.msra.mxu0 0.0
    %243 = vmatprep.subr.mxu0 0.0
    %244 = vmatpush1.msra.mxu0 0.0
    %245 = vmatprep.subr.mxu0 0.0
    %246 = vmatpush1.msra.mxu0 0.0
    %247 = vmatprep.mubr.f32.mxu0 0.0
    %248 = vmatmul.mubr.f32.gmra.mrb[0].mxu0 %v178
    %v249 = vpop.f32.mrb[0].mxu0
    %v250 = vadd.f32 %v174, %v249
    %v251 = vpop.f32.mrb[0].mxu0
    %252 = vmatprep.mubr.f32.mxu0 0.0
    %253 = vmatmul.mubr.f32.gmra.mrb[0].mxu0 %v181
    %v254 = vpop.f32.mrb[0].mxu0
    %v255 = vadd.f32 %v174, %v254
    %v256 = vpop.f32.mrb[0].mxu0
    %257 = vdwg.mxu0
    %v258 = vld [vmem:[%s17] sm:$0xff]
    %v259 = vld [vmem:[%s17 + $0x8] sm:$0xff]
    %v260 = vld [vmem:[%s17 + $0x10] sm:$0xff]
    %v261 = vld [vmem:[%s17 + $0x18] sm:$0xff]
    %v262 = vld [vmem:[%s17 + $0x20] sm:$0xff]
    %v263 = vld [vmem:[%s17 + $0x28] sm:$0xff]
    %v264 = vld [vmem:[%s17 + $0x30] sm:$0xff]
    %v265 = vld [vmem:[%s17 + $0x38] sm:$0xff]
    %v266 = vld [vmem:[%s17 + $0x40] sm:$0xff]
    %v267 = vld [vmem:[%s17 + $0x48] sm:$0xff]
    %v268 = vld [vmem:[%s17 + $0x50] sm:$0xff]
    %v269 = vld [vmem:[%s17 + $0x58] sm:$0xff]
    %v270 = vld [vmem:[%s17 + $0x60] sm:$0xff]
    %v271 = vld [vmem:[%s17 + $0x68] sm:$0xff]
    %v272 = vld [vmem:[%s17 + $0x70] sm:$0xff]
    %v273 = vld [vmem:[%s17 + $0x78] sm:$0xff]
    %290 = vrot.lane.b32.xlu0 %v258, 32
    %v291 = vpop.permute.xlu0 %290
    %292 = vrot.lane.b32.xlu0 %v259, 32
    %v293 = vpop.permute.xlu0 %292
    %294 = vrot.lane.b32.xlu0 %v260, 32
    %v295 = vpop.permute.xlu0 %294
    %296 = vrot.lane.b32.xlu0 %v261, 32
    %v297 = vpop.permute.xlu0 %296
    %298 = vrot.lane.b32.xlu0 %v262, 32
    %v299 = vpop.permute.xlu0 %298
    %300 = vrot.lane.b32.xlu0 %v263, 32
    %v301 = vpop.permute.xlu0 %300
    %302 = vrot.lane.b32.xlu0 %v264, 32
    %v303 = vpop.permute.xlu0 %302
    %304 = vrot.lane.b32.xlu0 %v265, 32
    %v305 = vpop.permute.xlu0 %304
    %306 = vrot.lane.b32.xlu0 %v266, 32
    %v307 = vpop.permute.xlu0 %306
    %308 = vrot.lane.b32.xlu0 %v267, 32
    %v309 = vpop.permute.xlu0 %308
    %310 = vrot.lane.b32.xlu0 %v268, 32
    %v311 = vpop.permute.xlu0 %310
    %312 = vrot.lane.b32.xlu0 %v269, 32
    %v313 = vpop.permute.xlu0 %312
    %314 = vrot.lane.b32.xlu0 %v270, 32
    %v315 = vpop.permute.xlu0 %314
    %316 = vrot.lane.b32.xlu0 %v271, 32
    %v317 = vpop.permute.xlu0 %316
    %318 = vrot.lane.b32.xlu0 %v272, 32
    %v319 = vpop.permute.xlu0 %318
    %320 = vrot.lane.b32.xlu0 %v273, 32
    %v321 = vpop.permute.xlu0 %320
    %v338 = vmul.f32 %v250, %v291
    %v339 = vmul.f32 %v255, %v293
    %v340 = vmul.f32 %v250, %v295
    %v341 = vmul.f32 %v255, %v297
    %v342 = vmul.f32 %v250, %v299
    %v343 = vmul.f32 %v255, %v301
    %v344 = vmul.f32 %v250, %v303
    %v345 = vmul.f32 %v255, %v305
    %v346 = vmul.f32 %v250, %v307
    %v347 = vmul.f32 %v255, %v309
    %v348 = vmul.f32 %v250, %v311
    %v349 = vmul.f32 %v255, %v313
    %v350 = vmul.f32 %v250, %v315
    %v351 = vmul.f32 %v255, %v317
    %v352 = vmul.f32 %v250, %v319
    %v353 = vmul.f32 %v255, %v321
    %354 = vrot.lane.b32.xlu0 %v258, 64
    %v355 = vpop.permute.xlu0 %354
    %356 = vrot.lane.b32.xlu0 %v259, 64
    %v357 = vpop.permute.xlu0 %356
    %358 = vrot.lane.b32.xlu0 %v260, 64
    %v359 = vpop.permute.xlu0 %358
    %360 = vrot.lane.b32.xlu0 %v261, 64
    %v361 = vpop.permute.xlu0 %360
    %362 = vrot.lane.b32.xlu0 %v262, 64
    %v363 = vpop.permute.xlu0 %362
    %364 = vrot.lane.b32.xlu0 %v263, 64
    %v365 = vpop.permute.xlu0 %364
    %366 = vrot.lane.b32.xlu0 %v264, 64
    %v367 = vpop.permute.xlu0 %366
    %368 = vrot.lane.b32.xlu0 %v265, 64
    %v369 = vpop.permute.xlu0 %368
    %370 = vrot.lane.b32.xlu0 %v266, 64
    %v371 = vpop.permute.xlu0 %370
    %372 = vrot.lane.b32.xlu0 %v267, 64
    %v373 = vpop.permute.xlu0 %372
    %374 = vrot.lane.b32.xlu0 %v268, 64
    %v375 = vpop.permute.xlu0 %374
    %376 = vrot.lane.b32.xlu0 %v269, 64
    %v377 = vpop.permute.xlu0 %376
    %378 = vrot.lane.b32.xlu0 %v270, 64
    %v379 = vpop.permute.xlu0 %378
    %380 = vrot.lane.b32.xlu0 %v271, 64
    %v381 = vpop.permute.xlu0 %380
    %382 = vrot.lane.b32.xlu0 %v272, 64
    %v383 = vpop.permute.xlu0 %382
    %384 = vrot.lane.b32.xlu0 %v273, 64
    %v385 = vpop.permute.xlu0 %384
    %v402 = vmul.f32 %v250, %v355
    %v403 = vmul.f32 %v255, %v357
    %v404 = vmul.f32 %v250, %v359
    %v405 = vmul.f32 %v255, %v361
    %v406 = vmul.f32 %v250, %v363
    %v407 = vmul.f32 %v255, %v365
    %v408 = vmul.f32 %v250, %v367
    %v409 = vmul.f32 %v255, %v369
    %v410 = vmul.f32 %v250, %v371
    %v411 = vmul.f32 %v255, %v373
    %v412 = vmul.f32 %v250, %v375
    %v413 = vmul.f32 %v255, %v377
    %v414 = vmul.f32 %v250, %v379
    %v415 = vmul.f32 %v255, %v381
    %v416 = vmul.f32 %v250, %v383
    %v417 = vmul.f32 %v255, %v385
    %v418 = vld [vmem:[%s18] sm:$0xff]
    %v419 = vld [vmem:[%s18 + $0x8] sm:$0xff]
    %436 = vrot.lane.b32.xlu0 %v338, 96
    %v437 = vpop.permute.xlu0 %436
    %438 = vrot.lane.b32.xlu0 %v339, 96
    %v439 = vpop.permute.xlu0 %438
    %440 = vrot.lane.b32.xlu0 %v340, 96
    %v441 = vpop.permute.xlu0 %440
    %442 = vrot.lane.b32.xlu0 %v341, 96
    %v443 = vpop.permute.xlu0 %442
    %444 = vrot.lane.b32.xlu0 %v342, 96
    %v445 = vpop.permute.xlu0 %444
    %446 = vrot.lane.b32.xlu0 %v343, 96
    %v447 = vpop.permute.xlu0 %446
    %448 = vrot.lane.b32.xlu0 %v344, 96
    %v449 = vpop.permute.xlu0 %448
    %450 = vrot.lane.b32.xlu0 %v345, 96
    %v451 = vpop.permute.xlu0 %450
    %452 = vrot.lane.b32.xlu0 %v346, 96
    %v453 = vpop.permute.xlu0 %452
    %454 = vrot.lane.b32.xlu0 %v347, 96
    %v455 = vpop.permute.xlu0 %454
    %456 = vrot.lane.b32.xlu0 %v348, 96
    %v457 = vpop.permute.xlu0 %456
    %458 = vrot.lane.b32.xlu0 %v349, 96
    %v459 = vpop.permute.xlu0 %458
    %460 = vrot.lane.b32.xlu0 %v350, 96
    %v461 = vpop.permute.xlu0 %460
    %462 = vrot.lane.b32.xlu0 %v351, 96
    %v463 = vpop.permute.xlu0 %462
    %464 = vrot.lane.b32.xlu0 %v352, 96
    %v465 = vpop.permute.xlu0 %464
    %466 = vrot.lane.b32.xlu0 %v353, 96
    %v467 = vpop.permute.xlu0 %466
    %v469 = vsel %vm176, %v250, 0
    %v472 = vsel %vm176, %v255, 0
    %v474 = vsel %vm176, %v437, 0
    %v476 = vsel %vm176, %v439, 0
    %v478 = vsel %vm176, %v441, 0
    %v480 = vsel %vm176, %v443, 0
    %v482 = vsel %vm176, %v445, 0
    %v484 = vsel %vm176, %v447, 0
    %v486 = vsel %vm176, %v449, 0
    %v488 = vsel %vm176, %v451, 0
    %v490 = vsel %vm176, %v453, 0
    %v492 = vsel %vm176, %v455, 0
    %v494 = vsel %vm176, %v457, 0
    %v496 = vsel %vm176, %v459, 0
    %v498 = vsel %vm176, %v461, 0
    %v500 = vsel %vm176, %v463, 0
    %v502 = vsel %vm176, %v465, 0
    %v504 = vsel %vm176, %v467, 0
    %506 = vmatprep.subr.mxu0 0.0
    %507 = vmatpush1.xpose.msra.mxu0 %v474
    %508 = vmatprep.subr.mxu0 0.0
    %509 = vmatpush1.xpose.msra.mxu0 %v476
    %510 = vmatprep.subr.mxu0 0.0
    %511 = vmatpush1.xpose.msra.mxu0 %v478
    %512 = vmatprep.subr.mxu0 0.0
    %513 = vmatpush1.xpose.msra.mxu0 %v480
    %514 = vmatprep.subr.mxu0 0.0
    %515 = vmatpush1.xpose.msra.mxu0 %v482
    %516 = vmatprep.subr.mxu0 0.0
    %517 = vmatpush1.xpose.msra.mxu0 %v484
    %518 = vmatprep.subr.mxu0 0.0
    %519 = vmatpush1.xpose.msra.mxu0 %v486
    %520 = vmatprep.subr.mxu0 0.0
    %521 = vmatpush1.xpose.msra.mxu0 %v488
    %522 = vmatprep.subr.mxu0 0.0
    %523 = vmatpush1.xpose.msra.mxu0 %v490
    %524 = vmatprep.subr.mxu0 0.0
    %525 = vmatpush1.xpose.msra.mxu0 %v492
    %526 = vmatprep.subr.mxu0 0.0
    %527 = vmatpush1.xpose.msra.mxu0 %v494
    %528 = vmatprep.subr.mxu0 0.0
    %529 = vmatpush1.xpose.msra.mxu0 %v496
    %530 = vmatprep.subr.mxu0 0.0
    %531 = vmatpush1.xpose.msra.mxu0 %v498
    %532 = vmatprep.subr.mxu0 0.0
    %533 = vmatpush1.xpose.msra.mxu0 %v500
    %534 = vmatprep.subr.mxu0 0.0
    %535 = vmatpush1.xpose.msra.mxu0 %v502
    %536 = vmatprep.subr.mxu0 0.0
    %537 = vmatpush1.xpose.msra.mxu0 %v504
    %538 = vmatprep.subr.mxu0 0.0
    %539 = vmatpush1.xpose.msra.mxu0 0.0
    %540 = vmatprep.subr.mxu0 0.0
    %541 = vmatpush1.xpose.msra.mxu0 0.0
    %542 = vmatprep.subr.mxu0 0.0
    %543 = vmatpush1.xpose.msra.mxu0 0.0
    %544 = vmatprep.subr.mxu0 0.0
    %545 = vmatpush1.xpose.msra.mxu0 0.0
    %546 = vmatprep.subr.mxu0 0.0
    %547 = vmatpush1.xpose.msra.mxu0 0.0
    %548 = vmatprep.subr.mxu0 0.0
    %549 = vmatpush1.xpose.msra.mxu0 0.0
    %550 = vmatprep.subr.mxu0 0.0
    %551 = vmatpush1.xpose.msra.mxu0 0.0
    %552 = vmatprep.subr.mxu0 0.0
    %553 = vmatpush1.xpose.msra.mxu0 0.0
    %554 = vmatprep.subr.mxu0 0.0
    %555 = vmatpush1.xpose.msra.mxu0 0.0
    %556 = vmatprep.subr.mxu0 0.0
    %557 = vmatpush1.xpose.msra.mxu0 0.0
    %558 = vmatprep.subr.mxu0 0.0
    %559 = vmatpush1.xpose.msra.mxu0 0.0
    %560 = vmatprep.subr.mxu0 0.0
    %561 = vmatpush1.xpose.msra.mxu0 0.0
    %562 = vmatprep.subr.mxu0 0.0
    %563 = vmatpush1.xpose.msra.mxu0 0.0
    %564 = vmatprep.subr.mxu0 0.0
    %565 = vmatpush1.xpose.msra.mxu0 0.0
    %566 = vmatprep.subr.mxu0 0.0
    %567 = vmatpush1.xpose.msra.mxu0 0.0
    %568 = vmatprep.subr.mxu0 0.0
    %569 = vmatpush1.xpose.msra.mxu0 0.0
    %570 = vmatprep.mubr.f32.mxu0 0.0
    %571 = vmatmul.mubr.f32.gmra.mrb[0].mxu0 %v469
    %v572 = vpop.f32.mrb[0].mxu0
    %v573 = vadd.f32 %v418, %v572
    %v574 = vpop.f32.mrb[0].mxu0
    %575 = vmatprep.mubr.f32.mxu0 0.0
    %576 = vmatmul.mubr.f32.gmra.mrb[0].mxu0 %v472
    %v577 = vpop.f32.mrb[0].mxu0
    %v578 = vadd.f32 %v419, %v577
    %v579 = vpop.f32.mrb[0].mxu0
    %580 = vdwg.mxu0
    %581 = vmax.xlane.f32.xlu0 %v573
    %v582 = vpop.xlane.xlu0 %581
    %583 = vmax.xlane.f32.xlu0 %v578
    %v584 = vpop.xlane.xlu0 %583
    %v585 = vsub.f32 %v573, %v582
    %v586 = vsub.f32 %v578, %v584
    %v587 = vmul.f32 %v585, 1.442695
    %v588 = vpow.pop %v587
    %v589 = vmul.f32 %v586, 1.442695
    %v590 = vpow.pop %v589
    %607 = vrot.lane.b32.xlu0 %v402, 64
    %v608 = vpop.permute.xlu0 %607
    %609 = vrot.lane.b32.xlu0 %v403, 64
    %v610 = vpop.permute.xlu0 %609
    %611 = vrot.lane.b32.xlu0 %v404, 64
    %v612 = vpop.permute.xlu0 %611
    %613 = vrot.lane.b32.xlu0 %v405, 64
    %v614 = vpop.permute.xlu0 %613
    %615 = vrot.lane.b32.xlu0 %v406, 64
    %v616 = vpop.permute.xlu0 %615
    %617 = vrot.lane.b32.xlu0 %v407, 64
    %v618 = vpop.permute.xlu0 %617
    %619 = vrot.lane.b32.xlu0 %v408, 64
    %v620 = vpop.permute.xlu0 %619
    %621 = vrot.lane.b32.xlu0 %v409, 64
    %v622 = vpop.permute.xlu0 %621
    %623 = vrot.lane.b32.xlu0 %v410, 64
    %v624 = vpop.permute.xlu0 %623
    %625 = vrot.lane.b32.xlu0 %v411, 64
    %v626 = vpop.permute.xlu0 %625
    %627 = vrot.lane.b32.xlu0 %v412, 64
    %v628 = vpop.permute.xlu0 %627
    %629 = vrot.lane.b32.xlu0 %v413, 64
    %v630 = vpop.permute.xlu0 %629
    %631 = vrot.lane.b32.xlu0 %v414, 64
    %v632 = vpop.permute.xlu0 %631
    %633 = vrot.lane.b32.xlu0 %v415, 64
    %v634 = vpop.permute.xlu0 %633
    %635 = vrot.lane.b32.xlu0 %v416, 64
    %v636 = vpop.permute.xlu0 %635
    %637 = vrot.lane.b32.xlu0 %v417, 64
    %v638 = vpop.permute.xlu0 %637
    %655 = vmatprep.subr.mxu0 0.0
    %656 = vmatpush1.msra.mxu0 %v608
    %657 = vmatprep.subr.mxu0 0.0
    %658 = vmatpush1.msra.mxu0 %v610
    %659 = vmatprep.subr.mxu0 0.0
    %660 = vmatpush1.msra.mxu0 %v612
    %661 = vmatprep.subr.mxu0 0.0
    %662 = vmatpush1.msra.mxu0 %v614
    %663 = vmatprep.subr.mxu0 0.0
    %664 = vmatpush1.msra.mxu0 %v616
    %665 = vmatprep.subr.mxu0 0.0
    %666 = vmatpush1.msra.mxu0 %v618
    %667 = vmatprep.subr.mxu0 0.0
    %668 = vmatpush1.msra.mxu0 %v620
    %669 = vmatprep.subr.mxu0 0.0
    %670 = vmatpush1.msra.mxu0 %v622
    %671 = vmatprep.subr.mxu0 0.0
    %672 = vmatpush1.msra.mxu0 %v624
    %673 = vmatprep.subr.mxu0 0.0
    %674 = vmatpush1.msra.mxu0 %v626
    %675 = vmatprep.subr.mxu0 0.0
    %676 = vmatpush1.msra.mxu0 %v628
    %677 = vmatprep.subr.mxu0 0.0
    %678 = vmatpush1.msra.mxu0 %v630
    %679 = vmatprep.subr.mxu0 0.0
    %680 = vmatpush1.msra.mxu0 %v632
    %681 = vmatprep.subr.mxu0 0.0
    %682 = vmatpush1.msra.mxu0 %v634
    %683 = vmatprep.subr.mxu0 0.0
    %684 = vmatpush1.msra.mxu0 %v636
    %685 = vmatprep.subr.mxu0 0.0
    %686 = vmatpush1.msra.mxu0 %v638
    %687 = vmatprep.subr.mxu0 0.0
    %688 = vmatpush1.msra.mxu0 0.0
    %689 = vmatprep.subr.mxu0 0.0
    %690 = vmatpush1.msra.mxu0 0.0
    %691 = vmatprep.subr.mxu0 0.0
    %692 = vmatpush1.msra.mxu0 0.0
    %693 = vmatprep.subr.mxu0 0.0
    %694 = vmatpush1.msra.mxu0 0.0
    %695 = vmatprep.subr.mxu0 0.0
    %696 = vmatpush1.msra.mxu0 0.0
    %697 = vmatprep.subr.mxu0 0.0
    %698 = vmatpush1.msra.mxu0 0.0
    %699 = vmatprep.subr.mxu0 0.0
    %700 = vmatpush1.msra.mxu0 0.0
    %701 = vmatprep.subr.mxu0 0.0
    %702 = vmatpush1.msra.mxu0 0.0
    %703 = vmatprep.subr.mxu0 0.0
    %704 = vmatpush1.msra.mxu0 0.0
    %705 = vmatprep.subr.mxu0 0.0
    %706 = vmatpush1.msra.mxu0 0.0
    %707 = vmatprep.subr.mxu0 0.0
    %708 = vmatpush1.msra.mxu0 0.0
    %709 = vmatprep.subr.mxu0 0.0
    %710 = vmatpush1.msra.mxu0 0.0
    %711 = vmatprep.subr.mxu0 0.0
    %712 = vmatpush1.msra.mxu0 0.0
    %713 = vmatprep.subr.mxu0 0.0
    %714 = vmatpush1.msra.mxu0 0.0
    %715 = vmatprep.subr.mxu0 0.0
    %716 = vmatpush1.msra.mxu0 0.0
    %717 = vmatprep.subr.mxu0 0.0
    %718 = vmatpush1.msra.mxu0 0.0
    %719 = vmatprep.mubr.f32.mxu0 0.0
    %720 = vmatmul.mubr.f32.gmra.mrb[0].mxu0 %v588
    %v721 = vpop.f32.mrb[0].mxu0
    %v722 = vadd.f32 0.0, %v721
    %v723 = vpop.f32.mrb[0].mxu0
    %724 = vmatprep.mubr.f32.mxu0 0.0
    %725 = vmatmul.mubr.f32.gmra.mrb[0].mxu0 %v590
    %v726 = vpop.f32.mrb[0].mxu0
    %v727 = vadd.f32 0.0, %v726
    %v728 = vpop.f32.mrb[0].mxu0
    %729 = vdwg.mxu0
    %v730 = vld [vmem:[%s19] sm:$0xff]
    %v731 = vld [vmem:[%s19 + $0x8] sm:$0xff]
    %v732 = vld [vmem:[%s19 + $0x10] sm:$0xff]
    %v733 = vld [vmem:[%s19 + $0x18] sm:$0xff]
    %v734 = vld [vmem:[%s19 + $0x20] sm:$0xff]
    %v735 = vld [vmem:[%s19 + $0x28] sm:$0xff]
    %v736 = vld [vmem:[%s19 + $0x30] sm:$0xff]
    %v737 = vld [vmem:[%s19 + $0x38] sm:$0xff]
    %v738 = vld [vmem:[%s19 + $0x40] sm:$0xff]
    %v739 = vld [vmem:[%s19 + $0x48] sm:$0xff]
    %v740 = vld [vmem:[%s19 + $0x50] sm:$0xff]
    %v741 = vld [vmem:[%s19 + $0x58] sm:$0xff]
    %v742 = vld [vmem:[%s19 + $0x60] sm:$0xff]
    %v743 = vld [vmem:[%s19 + $0x68] sm:$0xff]
    %v744 = vld [vmem:[%s19 + $0x70] sm:$0xff]
    %v745 = vld [vmem:[%s19 + $0x78] sm:$0xff]
    %746 = vmatprep.subr.mxu0 0.0
    %747 = vmatpush1.msra.mxu0 %v730
    %748 = vmatprep.subr.mxu0 0.0
    %749 = vmatpush1.msra.mxu0 %v731
    %750 = vmatprep.subr.mxu0 0.0
    %751 = vmatpush1.msra.mxu0 %v732
    %752 = vmatprep.subr.mxu0 0.0
    %753 = vmatpush1.msra.mxu0 %v733
    %754 = vmatprep.subr.mxu0 0.0
    %755 = vmatpush1.msra.mxu0 %v734
    %756 = vmatprep.subr.mxu0 0.0
    %757 = vmatpush1.msra.mxu0 %v735
    %758 = vmatprep.subr.mxu0 0.0
    %759 = vmatpush1.msra.mxu0 %v736
    %760 = vmatprep.subr.mxu0 0.0
    %761 = vmatpush1.msra.mxu0 %v737
    %762 = vmatprep.subr.mxu0 0.0
    %763 = vmatpush1.msra.mxu0 %v738
    %764 = vmatprep.subr.mxu0 0.0
    %765 = vmatpush1.msra.mxu0 %v739
    %766 = vmatprep.subr.mxu0 0.0
    %767 = vmatpush1.msra.mxu0 %v740
    %768 = vmatprep.subr.mxu0 0.0
    %769 = vmatpush1.msra.mxu0 %v741
    %770 = vmatprep.subr.mxu0 0.0
    %771 = vmatpush1.msra.mxu0 %v742
    %772 = vmatprep.subr.mxu0 0.0
    %773 = vmatpush1.msra.mxu0 %v743
    %774 = vmatprep.subr.mxu0 0.0
    %775 = vmatpush1.msra.mxu0 %v744
    %776 = vmatprep.subr.mxu0 0.0
    %777 = vmatpush1.msra.mxu0 %v745
    %778 = vmatprep.subr.mxu0 0.0
    %779 = vmatpush1.msra.mxu0 0.0
    %780 = vmatprep.subr.mxu0 0.0
    %781 = vmatpush1.msra.mxu0 0.0
    %782 = vmatprep.subr.mxu0 0.0
    %783 = vmatpush1.msra.mxu0 0.0
    %784 = vmatprep.subr.mxu0 0.0
    %785 = vmatpush1.msra.mxu0 0.0
    %786 = vmatprep.subr.mxu0 0.0
    %787 = vmatpush1.msra.mxu0 0.0
    %788 = vmatprep.subr.mxu0 0.0
    %789 = vmatpush1.msra.mxu0 0.0
    %790 = vmatprep.subr.mxu0 0.0
    %791 = vmatpush1.msra.mxu0 0.0
    %792 = vmatprep.subr.mxu0 0.0
    %793 = vmatpush1.msra.mxu0 0.0
    %794 = vmatprep.subr.mxu0 0.0
    %795 = vmatpush1.msra.mxu0 0.0
    %796 = vmatprep.subr.mxu0 0.0
    %797 = vmatpush1.msra.mxu0 0.0
    %798 = vmatprep.subr.mxu0 0.0
    %799 = vmatpush1.msra.mxu0 0.0
    %800 = vmatprep.subr.mxu0 0.0
    %801 = vmatpush1.msra.mxu0 0.0
    %802 = vmatprep.subr.mxu0 0.0
    %803 = vmatpush1.msra.mxu0 0.0
    %804 = vmatprep.subr.mxu0 0.0
    %805 = vmatpush1.msra.mxu0 0.0
    %806 = vmatprep.subr.mxu0 0.0
    %807 = vmatpush1.msra.mxu0 0.0
    %808 = vmatprep.subr.mxu0 0.0
    %809 = vmatpush1.msra.mxu0 0.0
    %810 = vmatprep.mubr.f32.mxu0 0.0
    %811 = vmatmul.mubr.f32.gmra.mrb[0].mxu0 %v588
    %v812 = vpop.f32.mrb[0].mxu0
    %v813 = vadd.f32 0.0, %v812
    %v814 = vpop.f32.mrb[0].mxu0
    %815 = vmatprep.mubr.f32.mxu0 0.0
    %816 = vmatmul.mubr.f32.gmra.mrb[0].mxu0 %v590
    %v817 = vpop.f32.mrb[0].mxu0
    %v818 = vadd.f32 0.0, %v817
    %v819 = vpop.f32.mrb[0].mxu0
    %820 = vdwg.mxu0
    %v821 = vrcp.pop %v813
    %v822 = vrcp.pop %v818
    %v823 = vld [vmem:[%s20] sm:$0xff]
    %vm824 = vcmask 64512
    %v826 = vsel %vm824, %v821, 0
    %v829 = vsel %vm824, %v822, 0
    %831 = vmatprep.subr.mxu0 0.0
    %832 = vmatpush1.msra.mxu0 %v823
    %833 = vmatprep.subr.mxu0 0.0
    %834 = vmatpush1.msra.mxu0 0.0
    %835 = vmatprep.subr.mxu0 0.0
    %836 = vmatpush1.msra.mxu0 0.0
    %837 = vmatprep.subr.mxu0 0.0
    %838 = vmatpush1.msra.mxu0 0.0
    %839 = vmatprep.subr.mxu0 0.0
    %840 = vmatpush1.msra.mxu0 0.0
    %841 = vmatprep.subr.mxu0 0.0
    %842 = vmatpush1.msra.mxu0 0.0
    %843 = vmatprep.subr.mxu0 0.0
    %844 = vmatpush1.msra.mxu0 0.0
    %845 = vmatprep.subr.mxu0 0.0
    %846 = vmatpush1.msra.mxu0 0.0
    %847 = vmatprep.subr.mxu0 0.0
    %848 = vmatpush1.msra.mxu0 0.0
    %849 = vmatprep.subr.mxu0 0.0
    %850 = vmatpush1.msra.mxu0 0.0
    %851 = vmatprep.subr.mxu0 0.0
    %852 = vmatpush1.msra.mxu0 0.0
    %853 = vmatprep.subr.mxu0 0.0
    %854 = vmatpush1.msra.mxu0 0.0
    %855 = vmatprep.subr.mxu0 0.0
    %856 = vmatpush1.msra.mxu0 0.0
    %857 = vmatprep.subr.mxu0 0.0
    %858 = vmatpush1.msra.mxu0 0.0
    %859 = vmatprep.subr.mxu0 0.0
    %860 = vmatpush1.msra.mxu0 0.0
    %861 = vmatprep.subr.mxu0 0.0
    %862 = vmatpush1.msra.mxu0 0.0
    %863 = vmatprep.subr.mxu0 0.0
    %864 = vmatpush1.msra.mxu0 0.0
    %865 = vmatprep.subr.mxu0 0.0
    %866 = vmatpush1.msra.mxu0 0.0
    %867 = vmatprep.subr.mxu0 0.0
    %868 = vmatpush1.msra.mxu0 0.0
    %869 = vmatprep.subr.mxu0 0.0
    %870 = vmatpush1.msra.mxu0 0.0
    %871 = vmatprep.subr.mxu0 0.0
    %872 = vmatpush1.msra.mxu0 0.0
    %873 = vmatprep.subr.mxu0 0.0
    %874 = vmatpush1.msra.mxu0 0.0
    %875 = vmatprep.subr.mxu0 0.0
    %876 = vmatpush1.msra.mxu0 0.0
    %877 = vmatprep.subr.mxu0 0.0
    %878 = vmatpush1.msra.mxu0 0.0
    %879 = vmatprep.subr.mxu0 0.0
    %880 = vmatpush1.msra.mxu0 0.0
    %881 = vmatprep.subr.mxu0 0.0
    %882 = vmatpush1.msra.mxu0 0.0
    %883 = vmatprep.subr.mxu0 0.0
    %884 = vmatpush1.msra.mxu0 0.0
    %885 = vmatprep.subr.mxu0 0.0
    %886 = vmatpush1.msra.mxu0 0.0
    %887 = vmatprep.subr.mxu0 0.0
    %888 = vmatpush1.msra.mxu0 0.0
    %889 = vmatprep.subr.mxu0 0.0
    %890 = vmatpush1.msra.mxu0 0.0
    %891 = vmatprep.subr.mxu0 0.0
    %892 = vmatpush1.msra.mxu0 0.0
    %893 = vmatprep.subr.mxu0 0.0
    %894 = vmatpush1.msra.mxu0 0.0
    %895 = vmatprep.mubr.f32.mxu0 0.0
    %896 = vmatmul.mubr.f32.gmra.mrb[0].mxu0 %v826
    %v897 = vpop.f32.mrb[0].mxu0
    %v898 = vadd.f32 0.0, %v897
    %v899 = vpop.f32.mrb[0].mxu0
    %900 = vmatprep.mubr.f32.mxu0 0.0
    %901 = vmatmul.mubr.f32.gmra.mrb[0].mxu0 %v829
    %v902 = vpop.f32.mrb[0].mxu0
    %v903 = vadd.f32 0.0, %v902
    %v904 = vpop.f32.mrb[0].mxu0
    %905 = vdwg.mxu0
    %v906 = vmul.f32 %v722, %v898
    %v907 = vmul.f32 %v727, %v903
    %v908 = vld [vmem:[%s5] sm:$0xff]
    %v909 = vld [vmem:[%s5 + $0x8] sm:$0xff]
    %v910 = vld [vmem:[%s5 + $0x10] sm:$0xff]
    %v911 = vld [vmem:[%s5 + $0x18] sm:$0xff]
    %v912 = vld [vmem:[%s6] sm:$0x1]
    %v914 = vlaneseq
    %v915 = vshrl.u32 %v914, 7
    %v916 = vsub.s32 0, %v915
    %v917 = vrot.slane %v912, %v916
    %v920 = vsel %vm176, %v906, 0
    %v923 = vsel %vm176, %v907, 0
    %925 = vmatprep.subr.mxu0 0.0
    %926 = vmatpush1.msra.mxu0 %v908
    %927 = vmatprep.subr.mxu0 0.0
    %928 = vmatpush1.msra.mxu0 %v909
    %929 = vmatprep.subr.mxu0 0.0
    %930 = vmatpush1.msra.mxu0 %v910
    %931 = vmatprep.subr.mxu0 0.0
    %932 = vmatpush1.msra.mxu0 %v911
    %933 = vmatprep.subr.mxu0 0.0
    %934 = vmatpush1.msra.mxu0 0.0
    %935 = vmatprep.subr.mxu0 0.0
    %936 = vmatpush1.msra.mxu0 0.0
    %937 = vmatprep.subr.mxu0 0.0
    %938 = vmatpush1.msra.mxu0 0.0
    %939 = vmatprep.subr.mxu0 0.0
    %940 = vmatpush1.msra.mxu0 0.0
    %941 = vmatprep.subr.mxu0 0.0
    %942 = vmatpush1.msra.mxu0 0.0
    %943 = vmatprep.subr.mxu0 0.0
    %944 = vmatpush1.msra.mxu0 0.0
    %945 = vmatprep.subr.mxu0 0.0
    %946 = vmatpush1.msra.mxu0 0.0
    %947 = vmatprep.subr.mxu0 0.0
    %948 = vmatpush1.msra.mxu0 0.0
    %949 = vmatprep.subr.mxu0 0.0
    %950 = vmatpush1.msra.mxu0 0.0
    %951 = vmatprep.subr.mxu0 0.0
    %952 = vmatpush1.msra.mxu0 0.0
    %953 = vmatprep.subr.mxu0 0.0
    %954 = vmatpush1.msra.mxu0 0.0
    %955 = vmatprep.subr.mxu0 0.0
    %956 = vmatpush1.msra.mxu0 0.0
    %957 = vmatprep.subr.mxu0 0.0
    %958 = vmatpush1.msra.mxu0 0.0
    %959 = vmatprep.subr.mxu0 0.0
    %960 = vmatpush1.msra.mxu0 0.0
    %961 = vmatprep.subr.mxu0 0.0
    %962 = vmatpush1.msra.mxu0 0.0
    %963 = vmatprep.subr.mxu0 0.0
    %964 = vmatpush1.msra.mxu0 0.0
    %965 = vmatprep.subr.mxu0 0.0
    %966 = vmatpush1.msra.mxu0 0.0
    %967 = vmatprep.subr.mxu0 0.0
    %968 = vmatpush1.msra.mxu0 0.0
    %969 = vmatprep.subr.mxu0 0.0
    %970 = vmatpush1.msra.mxu0 0.0
    %971 = vmatprep.subr.mxu0 0.0
    %972 = vmatpush1.msra.mxu0 0.0
    %973 = vmatprep.subr.mxu0 0.0
    %974 = vmatpush1.msra.mxu0 0.0
    %975 = vmatprep.subr.mxu0 0.0
    %976 = vmatpush1.msra.mxu0 0.0
    %977 = vmatprep.subr.mxu0 0.0
    %978 = vmatpush1.msra.mxu0 0.0
    %979 = vmatprep.subr.mxu0 0.0
    %980 = vmatpush1.msra.mxu0 0.0
    %981 = vmatprep.subr.mxu0 0.0
    %982 = vmatpush1.msra.mxu0 0.0
    %983 = vmatprep.subr.mxu0 0.0
    %984 = vmatpush1.msra.mxu0 0.0
    %985 = vmatprep.subr.mxu0 0.0
    %986 = vmatpush1.msra.mxu0 0.0
    %987 = vmatprep.subr.mxu0 0.0
    %988 = vmatpush1.msra.mxu0 0.0
    %989 = vmatprep.mubr.f32.mxu0 0.0
    %990 = vmatmul.mubr.f32.gmra.mrb[0].mxu0 %v920
    %v991 = vpop.f32.mrb[0].mxu0
    %v992 = vadd.f32 %v917, %v991
    %v993 = vpop.f32.mrb[0].mxu0
    %994 = vmatprep.mubr.f32.mxu0 0.0
    %995 = vmatmul.mubr.f32.gmra.mrb[0].mxu0 %v923
    %v996 = vpop.f32.mrb[0].mxu0
    %v997 = vadd.f32 %v917, %v996
    %v998 = vpop.f32.mrb[0].mxu0
    %999 = vdwg.mxu0
    %v1000 = vadd.f32 %v157, %v992
    %v1001 = vadd.f32 %v162, %v997
    %v1002 = vld [vmem:[%s7] sm:$0x1]
    %v1003 = vld [vmem:[%s8] sm:$0x1]
    %v1004 = vsel %vm176, %v1000, 0.0
    %1005 = vadd.xlane.f32.xlu0 %v1004
    %v1006 = vpop.xlane.xlu0 %1005
    %v1007 = vsel %vm176, %v1001, 0.0
    %1008 = vadd.xlane.f32.xlu0 %v1007
    %v1009 = vpop.xlane.xlu0 %1008
    %v1010 = vrcp.pop 32.0
    %v1011 = vmul.f32 %v1006, %v1010
    %v1012 = vmul.f32 %v1009, %v1010
    %v1013 = vsub.f32 %v1000, %v1011
    %v1014 = vsub.f32 %v1001, %v1012
    %v1015 = vmul.f32 %v1013, %v1013
    %v1016 = vmul.f32 %v1014, %v1014
    %v1017 = vsel %vm176, %v1015, 0.0
    %1018 = vadd.xlane.f32.xlu0 %v1017
    %v1019 = vpop.xlane.xlu0 %1018
    %v1020 = vsel %vm176, %v1016, 0.0
    %1021 = vadd.xlane.f32.xlu0 %v1020
    %v1022 = vpop.xlane.xlu0 %1021
    %v1023 = vmul.f32 %v1019, %v1010
    %v1024 = vmul.f32 %v1022, %v1010
    %v1025 = vadd.f32 %v1023, 1e-05
    %v1026 = vadd.f32 %v1024, 1e-05
    %v1027 = vrsqrt.pop %v1025
    %v1028 = vrsqrt.pop %v1026
    %v1029 = vmul.f32 %v1013, %v1027
    %v1030 = vmul.f32 %v1014, %v1028
    %v1032 = vlaneseq
    %v1033 = vshrl.u32 %v1032, 7
    %v1034 = vsub.s32 0, %v1033
    %v1035 = vrot.slane %v1002, %v1034
    %v1037 = vmul.f32 %v1029, %v1035
    %v1038 = vmul.f32 %v1030, %v1035
    %v1040 = vlaneseq
    %v1041 = vshrl.u32 %v1040, 7
    %v1042 = vsub.s32 0, %v1041
    %v1043 = vrot.slane %v1003, %v1042
    %v1045 = vadd.f32 %v1037, %v1043
    %v1046 = vadd.f32 %v1038, %v1043
    %v1047 = vpack.c.bf16 %v1046, %v1045
    %v1048 = vld [vmem:[%s9] sm:$0xff]
    %v1049 = vld [vmem:[%s9 + $0x8] sm:$0xff]
    %v1050 = vld [vmem:[%s9 + $0x10] sm:$0xff]
    %v1051 = vld [vmem:[%s9 + $0x18] sm:$0xff]
    %v1052 = vld [vmem:[%s9 + $0x20] sm:$0xff]
    %v1053 = vld [vmem:[%s9 + $0x28] sm:$0xff]
    %v1054 = vld [vmem:[%s9 + $0x30] sm:$0xff]
    %v1055 = vld [vmem:[%s9 + $0x38] sm:$0xff]
    %v1056 = vld [vmem:[%s9 + $0x40] sm:$0xff]
    %v1057 = vld [vmem:[%s9 + $0x48] sm:$0xff]
    %v1058 = vld [vmem:[%s9 + $0x50] sm:$0xff]
    %v1059 = vld [vmem:[%s9 + $0x58] sm:$0xff]
    %v1060 = vld [vmem:[%s9 + $0x60] sm:$0xff]
    %v1061 = vld [vmem:[%s9 + $0x68] sm:$0xff]
    %v1062 = vld [vmem:[%s9 + $0x70] sm:$0xff]
    %v1063 = vld [vmem:[%s9 + $0x78] sm:$0xff]
    %v1064 = vld [vmem:[%s9 + $0x80] sm:$0xff]
    %v1065 = vld [vmem:[%s9 + $0x88] sm:$0xff]
    %v1066 = vld [vmem:[%s9 + $0x90] sm:$0xff]
    %v1067 = vld [vmem:[%s9 + $0x98] sm:$0xff]
    %v1068 = vld [vmem:[%s9 + $0xa0] sm:$0xff]
    %v1069 = vld [vmem:[%s9 + $0xa8] sm:$0xff]
    %v1070 = vld [vmem:[%s9 + $0xb0] sm:$0xff]
    %v1071 = vld [vmem:[%s9 + $0xb8] sm:$0xff]
    %v1072 = vld [vmem:[%s9 + $0xc0] sm:$0xff]
    %v1073 = vld [vmem:[%s9 + $0xc8] sm:$0xff]
    %v1074 = vld [vmem:[%s9 + $0xd0] sm:$0xff]
    %v1075 = vld [vmem:[%s9 + $0xd8] sm:$0xff]
    %v1076 = vld [vmem:[%s9 + $0xe0] sm:$0xff]
    %v1077 = vld [vmem:[%s9 + $0xe8] sm:$0xff]
    %v1078 = vld [vmem:[%s9 + $0xf0] sm:$0xff]
    %v1079 = vld [vmem:[%s9 + $0xf8] sm:$0xff]
    %v1080 = vld [vmem:[%s10] sm:$0xff]
    %v1081 = vld [vmem:[%s10 + $0x8] sm:$0xff]
    %v1084 = vlaneseq
    %v1085 = vshrl.u32 %v1084, 7
    %v1086 = vsub.s32 0, %v1085
    %v1087 = vrot.slane %v1080, %v1086
    %v1088 = vlaneseq
    %v1089 = vshrl.u32 %v1088, 7
    %v1090 = vsub.s32 1, %v1089
    %v1091 = vrot.slane %v1080, %v1090
    %v1092 = vlaneseq
    %v1093 = vshrl.u32 %v1092, 7
    %v1094 = vsub.s32 2, %v1093
    %v1095 = vrot.slane %v1080, %v1094
    %v1096 = vlaneseq
    %v1097 = vshrl.u32 %v1096, 7
    %v1098 = vsub.s32 3, %v1097
    %v1099 = vrot.slane %v1080, %v1098
    %v1100 = vlaneseq
    %v1101 = vshrl.u32 %v1100, 7
    %v1102 = vsub.s32 4, %v1101
    %v1103 = vrot.slane %v1080, %v1102
    %v1104 = vlaneseq
    %v1105 = vshrl.u32 %v1104, 7
    %v1106 = vsub.s32 5, %v1105
    %v1107 = vrot.slane %v1080, %v1106
    %v1108 = vlaneseq
    %v1109 = vshrl.u32 %v1108, 7
    %v1110 = vsub.s32 6, %v1109
    %v1111 = vrot.slane %v1080, %v1110
    %v1112 = vlaneseq
    %v1113 = vshrl.u32 %v1112, 7
    %v1114 = vsub.s32 7, %v1113
    %v1115 = vrot.slane %v1080, %v1114
    %v1116 = vlaneseq
    %v1117 = vshrl.u32 %v1116, 7
    %v1118 = vsub.s32 0, %v1117
    %v1119 = vrot.slane %v1081, %v1118
    %v1120 = vlaneseq
    %v1121 = vshrl.u32 %v1120, 7
    %v1122 = vsub.s32 1, %v1121
    %v1123 = vrot.slane %v1081, %v1122
    %v1124 = vlaneseq
    %v1125 = vshrl.u32 %v1124, 7
    %v1126 = vsub.s32 2, %v1125
    %v1127 = vrot.slane %v1081, %v1126
    %v1128 = vlaneseq
    %v1129 = vshrl.u32 %v1128, 7
    %v1130 = vsub.s32 3, %v1129
    %v1131 = vrot.slane %v1081, %v1130
    %v1132 = vlaneseq
    %v1133 = vshrl.u32 %v1132, 7
    %v1134 = vsub.s32 4, %v1133
    %v1135 = vrot.slane %v1081, %v1134
    %v1136 = vlaneseq
    %v1137 = vshrl.u32 %v1136, 7
    %v1138 = vsub.s32 5, %v1137
    %v1139 = vrot.slane %v1081, %v1138
    %v1140 = vlaneseq
    %v1141 = vshrl.u32 %v1140, 7
    %v1142 = vsub.s32 6, %v1141
    %v1143 = vrot.slane %v1081, %v1142
    %v1144 = vlaneseq
    %v1145 = vshrl.u32 %v1144, 7
    %v1146 = vsub.s32 7, %v1145
    %v1147 = vrot.slane %v1081, %v1146
    %v1196 = vunpack.c.l.b16 %v1048
    %v1197 = vunpack.c.h.b16 %v1048
    %v1198 = vunpack.c.l.b16 %v1049
    %v1199 = vunpack.c.h.b16 %v1049
    %v1200 = vunpack.c.l.b16 %v1050
    %v1201 = vunpack.c.h.b16 %v1050
    %v1202 = vunpack.c.l.b16 %v1051
    %v1203 = vunpack.c.h.b16 %v1051
    %v1204 = vunpack.c.l.b16 %v1052
    %v1205 = vunpack.c.h.b16 %v1052
    %v1206 = vunpack.c.l.b16 %v1053
    %v1207 = vunpack.c.h.b16 %v1053
    %v1208 = vunpack.c.l.b16 %v1054
    %v1209 = vunpack.c.h.b16 %v1054
    %v1210 = vunpack.c.l.b16 %v1055
    %v1211 = vunpack.c.h.b16 %v1055
    %v1212 = vunpack.c.l.b16 %v1056
    %v1213 = vunpack.c.h.b16 %v1056
    %v1214 = vunpack.c.l.b16 %v1057
    %v1215 = vunpack.c.h.b16 %v1057
    %v1216 = vunpack.c.l.b16 %v1058
    %v1217 = vunpack.c.h.b16 %v1058
    %v1218 = vunpack.c.l.b16 %v1059
    %v1219 = vunpack.c.h.b16 %v1059
    %v1220 = vunpack.c.l.b16 %v1060
    %v1221 = vunpack.c.h.b16 %v1060
    %v1222 = vunpack.c.l.b16 %v1061
    %v1223 = vunpack.c.h.b16 %v1061
    %v1224 = vunpack.c.l.b16 %v1062
    %v1225 = vunpack.c.h.b16 %v1062
    %v1226 = vunpack.c.l.b16 %v1063
    %v1227 = vunpack.c.h.b16 %v1063
    %v1228 = vunpack.c.l.b16 %v1064
    %v1229 = vunpack.c.h.b16 %v1064
    %v1230 = vunpack.c.l.b16 %v1065
    %v1231 = vunpack.c.h.b16 %v1065
    %v1232 = vunpack.c.l.b16 %v1066
    %v1233 = vunpack.c.h.b16 %v1066
    %v1234 = vunpack.c.l.b16 %v1067
    %v1235 = vunpack.c.h.b16 %v1067
    %v1236 = vunpack.c.l.b16 %v1068
    %v1237 = vunpack.c.h.b16 %v1068
    %v1238 = vunpack.c.l.b16 %v1069
    %v1239 = vunpack.c.h.b16 %v1069
    %v1240 = vunpack.c.l.b16 %v1070
    %v1241 = vunpack.c.h.b16 %v1070
    %v1242 = vunpack.c.l.b16 %v1071
    %v1243 = vunpack.c.h.b16 %v1071
    %v1244 = vunpack.c.l.b16 %v1072
    %v1245 = vunpack.c.h.b16 %v1072
    %v1246 = vunpack.c.l.b16 %v1073
    %v1247 = vunpack.c.h.b16 %v1073
    %v1248 = vunpack.c.l.b16 %v1074
    %v1249 = vunpack.c.h.b16 %v1074
    %v1250 = vunpack.c.l.b16 %v1075
    %v1251 = vunpack.c.h.b16 %v1075
    %v1252 = vunpack.c.l.b16 %v1076
    %v1253 = vunpack.c.h.b16 %v1076
    %v1254 = vunpack.c.l.b16 %v1077
    %v1255 = vunpack.c.h.b16 %v1077
    %v1256 = vunpack.c.l.b16 %v1078
    %v1257 = vunpack.c.h.b16 %v1078
    %v1258 = vunpack.c.l.b16 %v1079
    %v1259 = vunpack.c.h.b16 %v1079
    %v1260 = vpack.c.b16 %v1212, %v1196
    %v1261 = vpack.c.b16 %v1213, %v1197
    %v1262 = vpack.c.b16 %v1214, %v1198
    %v1263 = vpack.c.b16 %v1215, %v1199
    %v1264 = vpack.c.b16 %v1216, %v1200
    %v1265 = vpack.c.b16 %v1217, %v1201
    %v1266 = vpack.c.b16 %v1218, %v1202
    %v1267 = vpack.c.b16 %v1219, %v1203
    %v1268 = vpack.c.b16 %v1220, %v1204
    %v1269 = vpack.c.b16 %v1221, %v1205
    %v1270 = vpack.c.b16 %v1222, %v1206
    %v1271 = vpack.c.b16 %v1223, %v1207
    %v1272 = vpack.c.b16 %v1224, %v1208
    %v1273 = vpack.c.b16 %v1225, %v1209
    %v1274 = vpack.c.b16 %v1226, %v1210
    %v1275 = vpack.c.b16 %v1227, %v1211
    %v1276 = vpack.c.b16 %v1244, %v1228
    %v1277 = vpack.c.b16 %v1245, %v1229
    %v1278 = vpack.c.b16 %v1246, %v1230
    %v1279 = vpack.c.b16 %v1247, %v1231
    %v1280 = vpack.c.b16 %v1248, %v1232
    %v1281 = vpack.c.b16 %v1249, %v1233
    %v1282 = vpack.c.b16 %v1250, %v1234
    %v1283 = vpack.c.b16 %v1251, %v1235
    %v1284 = vpack.c.b16 %v1252, %v1236
    %v1285 = vpack.c.b16 %v1253, %v1237
    %v1286 = vpack.c.b16 %v1254, %v1238
    %v1287 = vpack.c.b16 %v1255, %v1239
    %v1288 = vpack.c.b16 %v1256, %v1240
    %v1289 = vpack.c.b16 %v1257, %v1241
    %v1290 = vpack.c.b16 %v1258, %v1242
    %v1291 = vpack.c.b16 %v1259, %v1243
    %v1325 = vsel %vm176, %v1047, 0
    %1327 = vmatprep.subr.bf16.mxu0 %v1261
    %1328 = vmatpush1.bf16.msra.mxu0 %v1260
    %1329 = vmatprep.subr.bf16.mxu0 %v1277
    %1330 = vmatpush1.bf16.msra.mxu0 %v1276
    %1331 = vmatprep.subr.bf16.mxu0 0
    %1332 = vmatpush1.bf16.msra.mxu0 0
    %1333 = vmatprep.subr.bf16.mxu0 0
    %1334 = vmatpush1.bf16.msra.mxu0 0
    %1335 = vmatprep.subr.bf16.mxu0 0
    %1336 = vmatpush1.bf16.msra.mxu0 0
    %1337 = vmatprep.subr.bf16.mxu0 0
    %1338 = vmatpush1.bf16.msra.mxu0 0
    %1339 = vmatprep.subr.bf16.mxu0 0
    %1340 = vmatpush1.bf16.msra.mxu0 0
    %1341 = vmatprep.subr.bf16.mxu0 0
    %1342 = vmatpush1.bf16.msra.mxu0 0
    %1343 = vmatprep.subr.bf16.mxu0 0
    %1344 = vmatpush1.bf16.msra.mxu0 0
    %1345 = vmatprep.subr.bf16.mxu0 0
    %1346 = vmatpush1.bf16.msra.mxu0 0
    %1347 = vmatprep.subr.bf16.mxu0 0
    %1348 = vmatpush1.bf16.msra.mxu0 0
    %1349 = vmatprep.subr.bf16.mxu0 0
    %1350 = vmatpush1.bf16.msra.mxu0 0
    %1351 = vmatprep.subr.bf16.mxu0 0
    %1352 = vmatpush1.bf16.msra.mxu0 0
    %1353 = vmatprep.subr.bf16.mxu0 0
    %1354 = vmatpush1.bf16.msra.mxu0 0
    %1355 = vmatprep.subr.bf16.mxu0 0
    %1356 = vmatpush1.bf16.msra.mxu0 0
    %1357 = vmatprep.subr.bf16.mxu0 0
    %1358 = vmatpush1.bf16.msra.mxu0 0
    %1359 = vmatprep.mubr.bf16.mxu0 0
    %1360 = vmatmul.mubr.bf16.gmra.mrb[0].mxu0 %v1325
    %v1361 = vpop.f32.mrb[0].mxu0
    %v1362 = vadd.f32 %v1087, %v1361
    %v1363 = vpop.f32.mrb[0].mxu0
    %v1364 = vadd.f32 %v1091, %v1363
    %v1365 = vpop.f32.mrb[0].mxu0
    %v1366 = vadd.f32 %v1087, %v1365
    %v1367 = vpop.f32.mrb[0].mxu0
    %v1368 = vadd.f32 %v1091, %v1367
    %1369 = vdwg.mxu0
    %1370 = vmatprep.subr.bf16.mxu0 %v1263
    %1371 = vmatpush1.bf16.msra.mxu0 %v1262
    %1372 = vmatprep.subr.bf16.mxu0 %v1279
    %1373 = vmatpush1.bf16.msra.mxu0 %v1278
    %1374 = vmatprep.subr.bf16.mxu0 0
    %1375 = vmatpush1.bf16.msra.mxu0 0
    %1376 = vmatprep.subr.bf16.mxu0 0
    %1377 = vmatpush1.bf16.msra.mxu0 0
    %1378 = vmatprep.subr.bf16.mxu0 0
    %1379 = vmatpush1.bf16.msra.mxu0 0
    %1380 = vmatprep.subr.bf16.mxu0 0
    %1381 = vmatpush1.bf16.msra.mxu0 0
    %1382 = vmatprep.subr.bf16.mxu0 0
    %1383 = vmatpush1.bf16.msra.mxu0 0
    %1384 = vmatprep.subr.bf16.mxu0 0
    %1385 = vmatpush1.bf16.msra.mxu0 0
    %1386 = vmatprep.subr.bf16.mxu0 0
    %1387 = vmatpush1.bf16.msra.mxu0 0
    %1388 = vmatprep.subr.bf16.mxu0 0
    %1389 = vmatpush1.bf16.msra.mxu0 0
    %1390 = vmatprep.subr.bf16.mxu0 0
    %1391 = vmatpush1.bf16.msra.mxu0 0
    %1392 = vmatprep.subr.bf16.mxu0 0
    %1393 = vmatpush1.bf16.msra.mxu0 0
    %1394 = vmatprep.subr.bf16.mxu0 0
    %1395 = vmatpush1.bf16.msra.mxu0 0
    %1396 = vmatprep.subr.bf16.mxu0 0
    %1397 = vmatpush1.bf16.msra.mxu0 0
    %1398 = vmatprep.subr.bf16.mxu0 0
    %1399 = vmatpush1.bf16.msra.mxu0 0
    %1400 = vmatprep.subr.bf16.mxu0 0
    %1401 = vmatpush1.bf16.msra.mxu0 0
    %1402 = vmatprep.mubr.bf16.mxu0 0
    %1403 = vmatmul.mubr.bf16.gmra.mrb[0].mxu0 %v1325
    %v1404 = vpop.f32.mrb[0].mxu0
    %v1405 = vadd.f32 %v1095, %v1404
    %v1406 = vpop.f32.mrb[0].mxu0
    %v1407 = vadd.f32 %v1099, %v1406
    %v1408 = vpop.f32.mrb[0].mxu0
    %v1409 = vadd.f32 %v1095, %v1408
    %v1410 = vpop.f32.mrb[0].mxu0
    %v1411 = vadd.f32 %v1099, %v1410
    %1412 = vdwg.mxu0
    %1413 = vmatprep.subr.bf16.mxu0 %v1265
    %1414 = vmatpush1.bf16.msra.mxu0 %v1264
    %1415 = vmatprep.subr.bf16.mxu0 %v1281
    %1416 = vmatpush1.bf16.msra.mxu0 %v1280
    %1417 = vmatprep.subr.bf16.mxu0 0
    %1418 = vmatpush1.bf16.msra.mxu0 0
    %1419 = vmatprep.subr.bf16.mxu0 0
    %1420 = vmatpush1.bf16.msra.mxu0 0
    %1421 = vmatprep.subr.bf16.mxu0 0
    %1422 = vmatpush1.bf16.msra.mxu0 0
    %1423 = vmatprep.subr.bf16.mxu0 0
    %1424 = vmatpush1.bf16.msra.mxu0 0
    %1425 = vmatprep.subr.bf16.mxu0 0
    %1426 = vmatpush1.bf16.msra.mxu0 0
    %1427 = vmatprep.subr.bf16.mxu0 0
    %1428 = vmatpush1.bf16.msra.mxu0 0
    %1429 = vmatprep.subr.bf16.mxu0 0
    %1430 = vmatpush1.bf16.msra.mxu0 0
    %1431 = vmatprep.subr.bf16.mxu0 0
    %1432 = vmatpush1.bf16.msra.mxu0 0
    %1433 = vmatprep.subr.bf16.mxu0 0
    %1434 = vmatpush1.bf16.msra.mxu0 0
    %1435 = vmatprep.subr.bf16.mxu0 0
    %1436 = vmatpush1.bf16.msra.mxu0 0
    %1437 = vmatprep.subr.bf16.mxu0 0
    %1438 = vmatpush1.bf16.msra.mxu0 0
    %1439 = vmatprep.subr.bf16.mxu0 0
    %1440 = vmatpush1.bf16.msra.mxu0 0
    %1441 = vmatprep.subr.bf16.mxu0 0
    %1442 = vmatpush1.bf16.msra.mxu0 0
    %1443 = vmatprep.subr.bf16.mxu0 0
    %1444 = vmatpush1.bf16.msra.mxu0 0
    %1445 = vmatprep.mubr.bf16.mxu0 0
    %1446 = vmatmul.mubr.bf16.gmra.mrb[0].mxu0 %v1325
    %v1447 = vpop.f32.mrb[0].mxu0
    %v1448 = vadd.f32 %v1103, %v1447
    %v1449 = vpop.f32.mrb[0].mxu0
    %v1450 = vadd.f32 %v1107, %v1449
    %v1451 = vpop.f32.mrb[0].mxu0
    %v1452 = vadd.f32 %v1103, %v1451
    %v1453 = vpop.f32.mrb[0].mxu0
    %v1454 = vadd.f32 %v1107, %v1453
    %1455 = vdwg.mxu0
    %1456 = vmatprep.subr.bf16.mxu0 %v1267
    %1457 = vmatpush1.bf16.msra.mxu0 %v1266
    %1458 = vmatprep.subr.bf16.mxu0 %v1283
    %1459 = vmatpush1.bf16.msra.mxu0 %v1282
    %1460 = vmatprep.subr.bf16.mxu0 0
    %1461 = vmatpush1.bf16.msra.mxu0 0
    %1462 = vmatprep.subr.bf16.mxu0 0
    %1463 = vmatpush1.bf16.msra.mxu0 0
    %1464 = vmatprep.subr.bf16.mxu0 0
    %1465 = vmatpush1.bf16.msra.mxu0 0
    %1466 = vmatprep.subr.bf16.mxu0 0
    %1467 = vmatpush1.bf16.msra.mxu0 0
    %1468 = vmatprep.subr.bf16.mxu0 0
    %1469 = vmatpush1.bf16.msra.mxu0 0
    %1470 = vmatprep.subr.bf16.mxu0 0
    %1471 = vmatpush1.bf16.msra.mxu0 0
    %1472 = vmatprep.subr.bf16.mxu0 0
    %1473 = vmatpush1.bf16.msra.mxu0 0
    %1474 = vmatprep.subr.bf16.mxu0 0
    %1475 = vmatpush1.bf16.msra.mxu0 0
    %1476 = vmatprep.subr.bf16.mxu0 0
    %1477 = vmatpush1.bf16.msra.mxu0 0
    %1478 = vmatprep.subr.bf16.mxu0 0
    %1479 = vmatpush1.bf16.msra.mxu0 0
    %1480 = vmatprep.subr.bf16.mxu0 0
    %1481 = vmatpush1.bf16.msra.mxu0 0
    %1482 = vmatprep.subr.bf16.mxu0 0
    %1483 = vmatpush1.bf16.msra.mxu0 0
    %1484 = vmatprep.subr.bf16.mxu0 0
    %1485 = vmatpush1.bf16.msra.mxu0 0
    %1486 = vmatprep.subr.bf16.mxu0 0
    %1487 = vmatpush1.bf16.msra.mxu0 0
    %1488 = vmatprep.mubr.bf16.mxu0 0
    %1489 = vmatmul.mubr.bf16.gmra.mrb[0].mxu0 %v1325
    %v1490 = vpop.f32.mrb[0].mxu0
    %v1491 = vadd.f32 %v1111, %v1490
    %v1492 = vpop.f32.mrb[0].mxu0
    %v1493 = vadd.f32 %v1115, %v1492
    %v1494 = vpop.f32.mrb[0].mxu0
    %v1495 = vadd.f32 %v1111, %v1494
    %v1496 = vpop.f32.mrb[0].mxu0
    %v1497 = vadd.f32 %v1115, %v1496
    %1498 = vdwg.mxu0
    %1499 = vmatprep.subr.bf16.mxu0 %v1269
    %1500 = vmatpush1.bf16.msra.mxu0 %v1268
    %1501 = vmatprep.subr.bf16.mxu0 %v1285
    %1502 = vmatpush1.bf16.msra.mxu0 %v1284
    %1503 = vmatprep.subr.bf16.mxu0 0
    %1504 = vmatpush1.bf16.msra.mxu0 0
    %1505 = vmatprep.subr.bf16.mxu0 0
    %1506 = vmatpush1.bf16.msra.mxu0 0
    %1507 = vmatprep.subr.bf16.mxu0 0
    %1508 = vmatpush1.bf16.msra.mxu0 0
    %1509 = vmatprep.subr.bf16.mxu0 0
    %1510 = vmatpush1.bf16.msra.mxu0 0
    %1511 = vmatprep.subr.bf16.mxu0 0
    %1512 = vmatpush1.bf16.msra.mxu0 0
    %1513 = vmatprep.subr.bf16.mxu0 0
    %1514 = vmatpush1.bf16.msra.mxu0 0
    %1515 = vmatprep.subr.bf16.mxu0 0
    %1516 = vmatpush1.bf16.msra.mxu0 0
    %1517 = vmatprep.subr.bf16.mxu0 0
    %1518 = vmatpush1.bf16.msra.mxu0 0
    %1519 = vmatprep.subr.bf16.mxu0 0
    %1520 = vmatpush1.bf16.msra.mxu0 0
    %1521 = vmatprep.subr.bf16.mxu0 0
    %1522 = vmatpush1.bf16.msra.mxu0 0
    %1523 = vmatprep.subr.bf16.mxu0 0
    %1524 = vmatpush1.bf16.msra.mxu0 0
    %1525 = vmatprep.subr.bf16.mxu0 0
    %1526 = vmatpush1.bf16.msra.mxu0 0
    %1527 = vmatprep.subr.bf16.mxu0 0
    %1528 = vmatpush1.bf16.msra.mxu0 0
    %1529 = vmatprep.subr.bf16.mxu0 0
    %1530 = vmatpush1.bf16.msra.mxu0 0
    %1531 = vmatprep.mubr.bf16.mxu0 0
    %1532 = vmatmul.mubr.bf16.gmra.mrb[0].mxu0 %v1325
    %v1533 = vpop.f32.mrb[0].mxu0
    %v1534 = vadd.f32 %v1119, %v1533
    %v1535 = vpop.f32.mrb[0].mxu0
    %v1536 = vadd.f32 %v1123, %v1535
    %v1537 = vpop.f32.mrb[0].mxu0
    %v1538 = vadd.f32 %v1119, %v1537
    %v1539 = vpop.f32.mrb[0].mxu0
    %v1540 = vadd.f32 %v1123, %v1539
    %1541 = vdwg.mxu0
    %1542 = vmatprep.subr.bf16.mxu0 %v1271
    %1543 = vmatpush1.bf16.msra.mxu0 %v1270
    %1544 = vmatprep.subr.bf16.mxu0 %v1287
    %1545 = vmatpush1.bf16.msra.mxu0 %v1286
    %1546 = vmatprep.subr.bf16.mxu0 0
    %1547 = vmatpush1.bf16.msra.mxu0 0
    %1548 = vmatprep.subr.bf16.mxu0 0
    %1549 = vmatpush1.bf16.msra.mxu0 0
    %1550 = vmatprep.subr.bf16.mxu0 0
    %1551 = vmatpush1.bf16.msra.mxu0 0
    %1552 = vmatprep.subr.bf16.mxu0 0
    %1553 = vmatpush1.bf16.msra.mxu0 0
    %1554 = vmatprep.subr.bf16.mxu0 0
    %1555 = vmatpush1.bf16.msra.mxu0 0
    %1556 = vmatprep.subr.bf16.mxu0 0
    %1557 = vmatpush1.bf16.msra.mxu0 0
    %1558 = vmatprep.subr.bf16.mxu0 0
    %1559 = vmatpush1.bf16.msra.mxu0 0
    %1560 = vmatprep.subr.bf16.mxu0 0
    %1561 = vmatpush1.bf16.msra.mxu0 0
    %1562 = vmatprep.subr.bf16.mxu0 0
    %1563 = vmatpush1.bf16.msra.mxu0 0
    %1564 = vmatprep.subr.bf16.mxu0 0
    %1565 = vmatpush1.bf16.msra.mxu0 0
    %1566 = vmatprep.subr.bf16.mxu0 0
    %1567 = vmatpush1.bf16.msra.mxu0 0
    %1568 = vmatprep.subr.bf16.mxu0 0
    %1569 = vmatpush1.bf16.msra.mxu0 0
    %1570 = vmatprep.subr.bf16.mxu0 0
    %1571 = vmatpush1.bf16.msra.mxu0 0
    %1572 = vmatprep.subr.bf16.mxu0 0
    %1573 = vmatpush1.bf16.msra.mxu0 0
    %1574 = vmatprep.mubr.bf16.mxu0 0
    %1575 = vmatmul.mubr.bf16.gmra.mrb[0].mxu0 %v1325
    %v1576 = vpop.f32.mrb[0].mxu0
    %v1577 = vadd.f32 %v1127, %v1576
    %v1578 = vpop.f32.mrb[0].mxu0
    %v1579 = vadd.f32 %v1131, %v1578
    %v1580 = vpop.f32.mrb[0].mxu0
    %v1581 = vadd.f32 %v1127, %v1580
    %v1582 = vpop.f32.mrb[0].mxu0
    %v1583 = vadd.f32 %v1131, %v1582
    %1584 = vdwg.mxu0
    %1585 = vmatprep.subr.bf16.mxu0 %v1273
    %1586 = vmatpush1.bf16.msra.mxu0 %v1272
    %1587 = vmatprep.subr.bf16.mxu0 %v1289
    %1588 = vmatpush1.bf16.msra.mxu0 %v1288
    %1589 = vmatprep.subr.bf16.mxu0 0
    %1590 = vmatpush1.bf16.msra.mxu0 0
    %1591 = vmatprep.subr.bf16.mxu0 0
    %1592 = vmatpush1.bf16.msra.mxu0 0
    %1593 = vmatprep.subr.bf16.mxu0 0
    %1594 = vmatpush1.bf16.msra.mxu0 0
    %1595 = vmatprep.subr.bf16.mxu0 0
    %1596 = vmatpush1.bf16.msra.mxu0 0
    %1597 = vmatprep.subr.bf16.mxu0 0
    %1598 = vmatpush1.bf16.msra.mxu0 0
    %1599 = vmatprep.subr.bf16.mxu0 0
    %1600 = vmatpush1.bf16.msra.mxu0 0
    %1601 = vmatprep.subr.bf16.mxu0 0
    %1602 = vmatpush1.bf16.msra.mxu0 0
    %1603 = vmatprep.subr.bf16.mxu0 0
    %1604 = vmatpush1.bf16.msra.mxu0 0
    %1605 = vmatprep.subr.bf16.mxu0 0
    %1606 = vmatpush1.bf16.msra.mxu0 0
    %1607 = vmatprep.subr.bf16.mxu0 0
    %1608 = vmatpush1.bf16.msra.mxu0 0
    %1609 = vmatprep.subr.bf16.mxu0 0
    %1610 = vmatpush1.bf16.msra.mxu0 0
    %1611 = vmatprep.subr.bf16.mxu0 0
    %1612 = vmatpush1.bf16.msra.mxu0 0
    %1613 = vmatprep.subr.bf16.mxu0 0
    %1614 = vmatpush1.bf16.msra.mxu0 0
    %1615 = vmatprep.subr.bf16.mxu0 0
    %1616 = vmatpush1.bf16.msra.mxu0 0
    %1617 = vmatprep.mubr.bf16.mxu0 0
    %1618 = vmatmul.mubr.bf16.gmra.mrb[0].mxu0 %v1325
    %v1619 = vpop.f32.mrb[0].mxu0
    %v1620 = vadd.f32 %v1135, %v1619
    %v1621 = vpop.f32.mrb[0].mxu0
    %v1622 = vadd.f32 %v1139, %v1621
    %v1623 = vpop.f32.mrb[0].mxu0
    %v1624 = vadd.f32 %v1135, %v1623
    %v1625 = vpop.f32.mrb[0].mxu0
    %v1626 = vadd.f32 %v1139, %v1625
    %1627 = vdwg.mxu0
    %1628 = vmatprep.subr.bf16.mxu0 %v1275
    %1629 = vmatpush1.bf16.msra.mxu0 %v1274
    %1630 = vmatprep.subr.bf16.mxu0 %v1291
    %1631 = vmatpush1.bf16.msra.mxu0 %v1290
    %1632 = vmatprep.subr.bf16.mxu0 0
    %1633 = vmatpush1.bf16.msra.mxu0 0
    %1634 = vmatprep.subr.bf16.mxu0 0
    %1635 = vmatpush1.bf16.msra.mxu0 0
    %1636 = vmatprep.subr.bf16.mxu0 0
    %1637 = vmatpush1.bf16.msra.mxu0 0
    %1638 = vmatprep.subr.bf16.mxu0 0
    %1639 = vmatpush1.bf16.msra.mxu0 0
    %1640 = vmatprep.subr.bf16.mxu0 0
    %1641 = vmatpush1.bf16.msra.mxu0 0
    %1642 = vmatprep.subr.bf16.mxu0 0
    %1643 = vmatpush1.bf16.msra.mxu0 0
    %1644 = vmatprep.subr.bf16.mxu0 0
    %1645 = vmatpush1.bf16.msra.mxu0 0
    %1646 = vmatprep.subr.bf16.mxu0 0
    %1647 = vmatpush1.bf16.msra.mxu0 0
    %1648 = vmatprep.subr.bf16.mxu0 0
    %1649 = vmatpush1.bf16.msra.mxu0 0
    %1650 = vmatprep.subr.bf16.mxu0 0
    %1651 = vmatpush1.bf16.msra.mxu0 0
    %1652 = vmatprep.subr.bf16.mxu0 0
    %1653 = vmatpush1.bf16.msra.mxu0 0
    %1654 = vmatprep.subr.bf16.mxu0 0
    %1655 = vmatpush1.bf16.msra.mxu0 0
    %1656 = vmatprep.subr.bf16.mxu0 0
    %1657 = vmatpush1.bf16.msra.mxu0 0
    %1658 = vmatprep.subr.bf16.mxu0 0
    %1659 = vmatpush1.bf16.msra.mxu0 0
    %1660 = vmatprep.mubr.bf16.mxu0 0
    %1661 = vmatmul.mubr.bf16.gmra.mrb[0].mxu0 %v1325
    %v1662 = vpop.f32.mrb[0].mxu0
    %v1663 = vadd.f32 %v1143, %v1662
    %v1664 = vpop.f32.mrb[0].mxu0
    %v1665 = vadd.f32 %v1147, %v1664
    %v1666 = vpop.f32.mrb[0].mxu0
    %v1667 = vadd.f32 %v1143, %v1666
    %v1668 = vpop.f32.mrb[0].mxu0
    %v1669 = vadd.f32 %v1147, %v1668
    %1670 = vdwg.mxu0
    %v1671 = vmax.f32 %v1362, 0.0
    %v1672 = vmax.f32 %v1364, 0.0
    %v1673 = vmax.f32 %v1405, 0.0
    %v1674 = vmax.f32 %v1407, 0.0
    %v1675 = vmax.f32 %v1448, 0.0
    %v1676 = vmax.f32 %v1450, 0.0
    %v1677 = vmax.f32 %v1491, 0.0
    %v1678 = vmax.f32 %v1493, 0.0
    %v1679 = vmax.f32 %v1534, 0.0
    %v1680 = vmax.f32 %v1536, 0.0
    %v1681 = vmax.f32 %v1577, 0.0
    %v1682 = vmax.f32 %v1579, 0.0
    %v1683 = vmax.f32 %v1620, 0.0
    %v1684 = vmax.f32 %v1622, 0.0
    %v1685 = vmax.f32 %v1663, 0.0
    %v1686 = vmax.f32 %v1665, 0.0
    %v1687 = vmax.f32 %v1366, 0.0
    %v1688 = vmax.f32 %v1368, 0.0
    %v1689 = vmax.f32 %v1409, 0.0
    %v1690 = vmax.f32 %v1411, 0.0
    %v1691 = vmax.f32 %v1452, 0.0
    %v1692 = vmax.f32 %v1454, 0.0
    %v1693 = vmax.f32 %v1495, 0.0
    %v1694 = vmax.f32 %v1497, 0.0
    %v1695 = vmax.f32 %v1538, 0.0
    %v1696 = vmax.f32 %v1540, 0.0
    %v1697 = vmax.f32 %v1581, 0.0
    %v1698 = vmax.f32 %v1583, 0.0
    %v1699 = vmax.f32 %v1624, 0.0
    %v1700 = vmax.f32 %v1626, 0.0
    %v1701 = vmax.f32 %v1667, 0.0
    %v1702 = vmax.f32 %v1669, 0.0
    %v1703 = vpack.c.bf16 %v1687, %v1671
    %v1704 = vpack.c.bf16 %v1688, %v1672
    %v1705 = vpack.c.bf16 %v1689, %v1673
    %v1706 = vpack.c.bf16 %v1690, %v1674
    %v1707 = vpack.c.bf16 %v1691, %v1675
    %v1708 = vpack.c.bf16 %v1692, %v1676
    %v1709 = vpack.c.bf16 %v1693, %v1677
    %v1710 = vpack.c.bf16 %v1694, %v1678
    %v1711 = vpack.c.bf16 %v1695, %v1679
    %v1712 = vpack.c.bf16 %v1696, %v1680
    %v1713 = vpack.c.bf16 %v1697, %v1681
    %v1714 = vpack.c.bf16 %v1698, %v1682
    %v1715 = vpack.c.bf16 %v1699, %v1683
    %v1716 = vpack.c.bf16 %v1700, %v1684
    %v1717 = vpack.c.bf16 %v1701, %v1685
    %v1718 = vpack.c.bf16 %v1702, %v1686
    %v1719 = vld [vmem:[%s11] sm:$0xf]
    %v1720 = vld [vmem:[%s11 + $0x4] sm:$0xf]
    %v1721 = vld [vmem:[%s11 + $0x8] sm:$0xf]
    %v1722 = vld [vmem:[%s11 + $0xc] sm:$0xf]
    %v1723 = vld [vmem:[%s11 + $0x10] sm:$0xf]
    %v1724 = vld [vmem:[%s11 + $0x14] sm:$0xf]
    %v1725 = vld [vmem:[%s11 + $0x18] sm:$0xf]
    %v1726 = vld [vmem:[%s11 + $0x1c] sm:$0xf]
    %v1727 = vld [vmem:[%s11 + $0x20] sm:$0xf]
    %v1728 = vld [vmem:[%s11 + $0x24] sm:$0xf]
    %v1729 = vld [vmem:[%s11 + $0x28] sm:$0xf]
    %v1730 = vld [vmem:[%s11 + $0x2c] sm:$0xf]
    %v1731 = vld [vmem:[%s11 + $0x30] sm:$0xf]
    %v1732 = vld [vmem:[%s11 + $0x34] sm:$0xf]
    %v1733 = vld [vmem:[%s11 + $0x38] sm:$0xf]
    %v1734 = vld [vmem:[%s11 + $0x3c] sm:$0xf]
    %v1735 = vld [vmem:[%s11 + $0x40] sm:$0xf]
    %v1736 = vld [vmem:[%s11 + $0x44] sm:$0xf]
    %v1737 = vld [vmem:[%s11 + $0x48] sm:$0xf]
    %v1738 = vld [vmem:[%s11 + $0x4c] sm:$0xf]
    %v1739 = vld [vmem:[%s11 + $0x50] sm:$0xf]
    %v1740 = vld [vmem:[%s11 + $0x54] sm:$0xf]
    %v1741 = vld [vmem:[%s11 + $0x58] sm:$0xf]
    %v1742 = vld [vmem:[%s11 + $0x5c] sm:$0xf]
    %v1743 = vld [vmem:[%s11 + $0x60] sm:$0xf]
    %v1744 = vld [vmem:[%s11 + $0x64] sm:$0xf]
    %v1745 = vld [vmem:[%s11 + $0x68] sm:$0xf]
    %v1746 = vld [vmem:[%s11 + $0x6c] sm:$0xf]
    %v1747 = vld [vmem:[%s11 + $0x70] sm:$0xf]
    %v1748 = vld [vmem:[%s11 + $0x74] sm:$0xf]
    %v1749 = vld [vmem:[%s11 + $0x78] sm:$0xf]
    %v1750 = vld [vmem:[%s11 + $0x7c] sm:$0xf]
    %v1751 = vld [vmem:[%s11 + $0x80] sm:$0xf]
    %v1752 = vld [vmem:[%s11 + $0x84] sm:$0xf]
    %v1753 = vld [vmem:[%s11 + $0x88] sm:$0xf]
    %v1754 = vld [vmem:[%s11 + $0x8c] sm:$0xf]
    %v1755 = vld [vmem:[%s11 + $0x90] sm:$0xf]
    %v1756 = vld [vmem:[%s11 + $0x94] sm:$0xf]
    %v1757 = vld [vmem:[%s11 + $0x98] sm:$0xf]
    %v1758 = vld [vmem:[%s11 + $0x9c] sm:$0xf]
    %v1759 = vld [vmem:[%s11 + $0xa0] sm:$0xf]
    %v1760 = vld [vmem:[%s11 + $0xa4] sm:$0xf]
    %v1761 = vld [vmem:[%s11 + $0xa8] sm:$0xf]
    %v1762 = vld [vmem:[%s11 + $0xac] sm:$0xf]
    %v1763 = vld [vmem:[%s11 + $0xb0] sm:$0xf]
    %v1764 = vld [vmem:[%s11 + $0xb4] sm:$0xf]
    %v1765 = vld [vmem:[%s11 + $0xb8] sm:$0xf]
    %v1766 = vld [vmem:[%s11 + $0xbc] sm:$0xf]
    %v1767 = vld [vmem:[%s11 + $0xc0] sm:$0xf]
    %v1768 = vld [vmem:[%s11 + $0xc4] sm:$0xf]
    %v1769 = vld [vmem:[%s11 + $0xc8] sm:$0xf]
    %v1770 = vld [vmem:[%s11 + $0xcc] sm:$0xf]
    %v1771 = vld [vmem:[%s11 + $0xd0] sm:$0xf]
    %v1772 = vld [vmem:[%s11 + $0xd4] sm:$0xf]
    %v1773 = vld [vmem:[%s11 + $0xd8] sm:$0xf]
    %v1774 = vld [vmem:[%s11 + $0xdc] sm:$0xf]
    %v1775 = vld [vmem:[%s11 + $0xe0] sm:$0xf]
    %v1776 = vld [vmem:[%s11 + $0xe4] sm:$0xf]
    %v1777 = vld [vmem:[%s11 + $0xe8] sm:$0xf]
    %v1778 = vld [vmem:[%s11 + $0xec] sm:$0xf]
    %v1779 = vld [vmem:[%s11 + $0xf0] sm:$0xf]
    %v1780 = vld [vmem:[%s11 + $0xf4] sm:$0xf]
    %v1781 = vld [vmem:[%s11 + $0xf8] sm:$0xf]
    %v1782 = vld [vmem:[%s11 + $0xfc] sm:$0xf]
    %v1783 = vld [vmem:[%s11 + $0x100] sm:$0xf]
    %v1784 = vld [vmem:[%s11 + $0x104] sm:$0xf]
    %v1785 = vld [vmem:[%s11 + $0x108] sm:$0xf]
    %v1786 = vld [vmem:[%s11 + $0x10c] sm:$0xf]
    %v1787 = vld [vmem:[%s11 + $0x110] sm:$0xf]
    %v1788 = vld [vmem:[%s11 + $0x114] sm:$0xf]
    %v1789 = vld [vmem:[%s11 + $0x118] sm:$0xf]
    %v1790 = vld [vmem:[%s11 + $0x11c] sm:$0xf]
    %v1791 = vld [vmem:[%s11 + $0x120] sm:$0xf]
    %v1792 = vld [vmem:[%s11 + $0x124] sm:$0xf]
    %v1793 = vld [vmem:[%s11 + $0x128] sm:$0xf]
    %v1794 = vld [vmem:[%s11 + $0x12c] sm:$0xf]
    %v1795 = vld [vmem:[%s11 + $0x130] sm:$0xf]
    %v1796 = vld [vmem:[%s11 + $0x134] sm:$0xf]
    %v1797 = vld [vmem:[%s11 + $0x138] sm:$0xf]
    %v1798 = vld [vmem:[%s11 + $0x13c] sm:$0xf]
    %v1799 = vld [vmem:[%s11 + $0x140] sm:$0xf]
    %v1800 = vld [vmem:[%s11 + $0x144] sm:$0xf]
    %v1801 = vld [vmem:[%s11 + $0x148] sm:$0xf]
    %v1802 = vld [vmem:[%s11 + $0x14c] sm:$0xf]
    %v1803 = vld [vmem:[%s11 + $0x150] sm:$0xf]
    %v1804 = vld [vmem:[%s11 + $0x154] sm:$0xf]
    %v1805 = vld [vmem:[%s11 + $0x158] sm:$0xf]
    %v1806 = vld [vmem:[%s11 + $0x15c] sm:$0xf]
    %v1807 = vld [vmem:[%s11 + $0x160] sm:$0xf]
    %v1808 = vld [vmem:[%s11 + $0x164] sm:$0xf]
    %v1809 = vld [vmem:[%s11 + $0x168] sm:$0xf]
    %v1810 = vld [vmem:[%s11 + $0x16c] sm:$0xf]
    %v1811 = vld [vmem:[%s11 + $0x170] sm:$0xf]
    %v1812 = vld [vmem:[%s11 + $0x174] sm:$0xf]
    %v1813 = vld [vmem:[%s11 + $0x178] sm:$0xf]
    %v1814 = vld [vmem:[%s11 + $0x17c] sm:$0xf]
    %v1815 = vld [vmem:[%s11 + $0x180] sm:$0xf]
    %v1816 = vld [vmem:[%s11 + $0x184] sm:$0xf]
    %v1817 = vld [vmem:[%s11 + $0x188] sm:$0xf]
    %v1818 = vld [vmem:[%s11 + $0x18c] sm:$0xf]
    %v1819 = vld [vmem:[%s11 + $0x190] sm:$0xf]
    %v1820 = vld [vmem:[%s11 + $0x194] sm:$0xf]
    %v1821 = vld [vmem:[%s11 + $0x198] sm:$0xf]
    %v1822 = vld [vmem:[%s11 + $0x19c] sm:$0xf]
    %v1823 = vld [vmem:[%s11 + $0x1a0] sm:$0xf]
    %v1824 = vld [vmem:[%s11 + $0x1a4] sm:$0xf]
    %v1825 = vld [vmem:[%s11 + $0x1a8] sm:$0xf]
    %v1826 = vld [vmem:[%s11 + $0x1ac] sm:$0xf]
    %v1827 = vld [vmem:[%s11 + $0x1b0] sm:$0xf]
    %v1828 = vld [vmem:[%s11 + $0x1b4] sm:$0xf]
    %v1829 = vld [vmem:[%s11 + $0x1b8] sm:$0xf]
    %v1830 = vld [vmem:[%s11 + $0x1bc] sm:$0xf]
    %v1831 = vld [vmem:[%s11 + $0x1c0] sm:$0xf]
    %v1832 = vld [vmem:[%s11 + $0x1c4] sm:$0xf]
    %v1833 = vld [vmem:[%s11 + $0x1c8] sm:$0xf]
    %v1834 = vld [vmem:[%s11 + $0x1cc] sm:$0xf]
    %v1835 = vld [vmem:[%s11 + $0x1d0] sm:$0xf]
    %v1836 = vld [vmem:[%s11 + $0x1d4] sm:$0xf]
    %v1837 = vld [vmem:[%s11 + $0x1d8] sm:$0xf]
    %v1838 = vld [vmem:[%s11 + $0x1dc] sm:$0xf]
    %v1839 = vld [vmem:[%s11 + $0x1e0] sm:$0xf]
    %v1840 = vld [vmem:[%s11 + $0x1e4] sm:$0xf]
    %v1841 = vld [vmem:[%s11 + $0x1e8] sm:$0xf]
    %v1842 = vld [vmem:[%s11 + $0x1ec] sm:$0xf]
    %v1843 = vld [vmem:[%s11 + $0x1f0] sm:$0xf]
    %v1844 = vld [vmem:[%s11 + $0x1f4] sm:$0xf]
    %v1845 = vld [vmem:[%s11 + $0x1f8] sm:$0xf]
    %v1846 = vld [vmem:[%s11 + $0x1fc] sm:$0xf]
    %v1847 = vld [vmem:[%s11 + $0x200] sm:$0xf]
    %v1848 = vld [vmem:[%s11 + $0x204] sm:$0xf]
    %v1849 = vld [vmem:[%s11 + $0x208] sm:$0xf]
    %v1850 = vld [vmem:[%s11 + $0x20c] sm:$0xf]
    %v1851 = vld [vmem:[%s11 + $0x210] sm:$0xf]
    %v1852 = vld [vmem:[%s11 + $0x214] sm:$0xf]
    %v1853 = vld [vmem:[%s11 + $0x218] sm:$0xf]
    %v1854 = vld [vmem:[%s11 + $0x21c] sm:$0xf]
    %v1855 = vld [vmem:[%s11 + $0x220] sm:$0xf]
    %v1856 = vld [vmem:[%s11 + $0x224] sm:$0xf]
    %v1857 = vld [vmem:[%s11 + $0x228] sm:$0xf]
    %v1858 = vld [vmem:[%s11 + $0x22c] sm:$0xf]
    %v1859 = vld [vmem:[%s11 + $0x230] sm:$0xf]
    %v1860 = vld [vmem:[%s11 + $0x234] sm:$0xf]
    %v1861 = vld [vmem:[%s11 + $0x238] sm:$0xf]
    %v1862 = vld [vmem:[%s11 + $0x23c] sm:$0xf]
    %v1863 = vld [vmem:[%s11 + $0x240] sm:$0xf]
    %v1864 = vld [vmem:[%s11 + $0x244] sm:$0xf]
    %v1865 = vld [vmem:[%s11 + $0x248] sm:$0xf]
    %v1866 = vld [vmem:[%s11 + $0x24c] sm:$0xf]
    %v1867 = vld [vmem:[%s11 + $0x250] sm:$0xf]
    %v1868 = vld [vmem:[%s11 + $0x254] sm:$0xf]
    %v1869 = vld [vmem:[%s11 + $0x258] sm:$0xf]
    %v1870 = vld [vmem:[%s11 + $0x25c] sm:$0xf]
    %v1871 = vld [vmem:[%s11 + $0x260] sm:$0xf]
    %v1872 = vld [vmem:[%s11 + $0x264] sm:$0xf]
    %v1873 = vld [vmem:[%s11 + $0x268] sm:$0xf]
    %v1874 = vld [vmem:[%s11 + $0x26c] sm:$0xf]
    %v1875 = vld [vmem:[%s11 + $0x270] sm:$0xf]
    %v1876 = vld [vmem:[%s11 + $0x274] sm:$0xf]
    %v1877 = vld [vmem:[%s11 + $0x278] sm:$0xf]
    %v1878 = vld [vmem:[%s11 + $0x27c] sm:$0xf]
    %v1879 = vld [vmem:[%s11 + $0x280] sm:$0xf]
    %v1880 = vld [vmem:[%s11 + $0x284] sm:$0xf]
    %v1881 = vld [vmem:[%s11 + $0x288] sm:$0xf]
    %v1882 = vld [vmem:[%s11 + $0x28c] sm:$0xf]
    %v1883 = vld [vmem:[%s11 + $0x290] sm:$0xf]
    %v1884 = vld [vmem:[%s11 + $0x294] sm:$0xf]
    %v1885 = vld [vmem:[%s11 + $0x298] sm:$0xf]
    %v1886 = vld [vmem:[%s11 + $0x29c] sm:$0xf]
    %v1887 = vld [vmem:[%s11 + $0x2a0] sm:$0xf]
    %v1888 = vld [vmem:[%s11 + $0x2a4] sm:$0xf]
    %v1889 = vld [vmem:[%s11 + $0x2a8] sm:$0xf]
    %v1890 = vld [vmem:[%s11 + $0x2ac] sm:$0xf]
    %v1891 = vld [vmem:[%s11 + $0x2b0] sm:$0xf]
    %v1892 = vld [vmem:[%s11 + $0x2b4] sm:$0xf]
    %v1893 = vld [vmem:[%s11 + $0x2b8] sm:$0xf]
    %v1894 = vld [vmem:[%s11 + $0x2bc] sm:$0xf]
    %v1895 = vld [vmem:[%s11 + $0x2c0] sm:$0xf]
    %v1896 = vld [vmem:[%s11 + $0x2c4] sm:$0xf]
    %v1897 = vld [vmem:[%s11 + $0x2c8] sm:$0xf]
    %v1898 = vld [vmem:[%s11 + $0x2cc] sm:$0xf]
    %v1899 = vld [vmem:[%s11 + $0x2d0] sm:$0xf]
    %v1900 = vld [vmem:[%s11 + $0x2d4] sm:$0xf]
    %v1901 = vld [vmem:[%s11 + $0x2d8] sm:$0xf]
    %v1902 = vld [vmem:[%s11 + $0x2dc] sm:$0xf]
    %v1903 = vld [vmem:[%s11 + $0x2e0] sm:$0xf]
    %v1904 = vld [vmem:[%s11 + $0x2e4] sm:$0xf]
    %v1905 = vld [vmem:[%s11 + $0x2e8] sm:$0xf]
    %v1906 = vld [vmem:[%s11 + $0x2ec] sm:$0xf]
    %v1907 = vld [vmem:[%s11 + $0x2f0] sm:$0xf]
    %v1908 = vld [vmem:[%s11 + $0x2f4] sm:$0xf]
    %v1909 = vld [vmem:[%s11 + $0x2f8] sm:$0xf]
    %v1910 = vld [vmem:[%s11 + $0x2fc] sm:$0xf]
    %v1911 = vld [vmem:[%s11 + $0x300] sm:$0xf]
    %v1912 = vld [vmem:[%s11 + $0x304] sm:$0xf]
    %v1913 = vld [vmem:[%s11 + $0x308] sm:$0xf]
    %v1914 = vld [vmem:[%s11 + $0x30c] sm:$0xf]
    %v1915 = vld [vmem:[%s11 + $0x310] sm:$0xf]
    %v1916 = vld [vmem:[%s11 + $0x314] sm:$0xf]
    %v1917 = vld [vmem:[%s11 + $0x318] sm:$0xf]
    %v1918 = vld [vmem:[%s11 + $0x31c] sm:$0xf]
    %v1919 = vld [vmem:[%s11 + $0x320] sm:$0xf]
    %v1920 = vld [vmem:[%s11 + $0x324] sm:$0xf]
    %v1921 = vld [vmem:[%s11 + $0x328] sm:$0xf]
    %v1922 = vld [vmem:[%s11 + $0x32c] sm:$0xf]
    %v1923 = vld [vmem:[%s11 + $0x330] sm:$0xf]
    %v1924 = vld [vmem:[%s11 + $0x334] sm:$0xf]
    %v1925 = vld [vmem:[%s11 + $0x338] sm:$0xf]
    %v1926 = vld [vmem:[%s11 + $0x33c] sm:$0xf]
    %v1927 = vld [vmem:[%s11 + $0x340] sm:$0xf]
    %v1928 = vld [vmem:[%s11 + $0x344] sm:$0xf]
    %v1929 = vld [vmem:[%s11 + $0x348] sm:$0xf]
    %v1930 = vld [vmem:[%s11 + $0x34c] sm:$0xf]
    %v1931 = vld [vmem:[%s11 + $0x350] sm:$0xf]
    %v1932 = vld [vmem:[%s11 + $0x354] sm:$0xf]
    %v1933 = vld [vmem:[%s11 + $0x358] sm:$0xf]
    %v1934 = vld [vmem:[%s11 + $0x35c] sm:$0xf]
    %v1935 = vld [vmem:[%s11 + $0x360] sm:$0xf]
    %v1936 = vld [vmem:[%s11 + $0x364] sm:$0xf]
    %v1937 = vld [vmem:[%s11 + $0x368] sm:$0xf]
    %v1938 = vld [vmem:[%s11 + $0x36c] sm:$0xf]
    %v1939 = vld [vmem:[%s11 + $0x370] sm:$0xf]
    %v1940 = vld [vmem:[%s11 + $0x374] sm:$0xf]
    %v1941 = vld [vmem:[%s11 + $0x378] sm:$0xf]
    %v1942 = vld [vmem:[%s11 + $0x37c] sm:$0xf]
    %v1943 = vld [vmem:[%s11 + $0x380] sm:$0xf]
    %v1944 = vld [vmem:[%s11 + $0x384] sm:$0xf]
    %v1945 = vld [vmem:[%s11 + $0x388] sm:$0xf]
    %v1946 = vld [vmem:[%s11 + $0x38c] sm:$0xf]
    %v1947 = vld [vmem:[%s11 + $0x390] sm:$0xf]
    %v1948 = vld [vmem:[%s11 + $0x394] sm:$0xf]
    %v1949 = vld [vmem:[%s11 + $0x398] sm:$0xf]
    %v1950 = vld [vmem:[%s11 + $0x39c] sm:$0xf]
    %v1951 = vld [vmem:[%s11 + $0x3a0] sm:$0xf]
    %v1952 = vld [vmem:[%s11 + $0x3a4] sm:$0xf]
    %v1953 = vld [vmem:[%s11 + $0x3a8] sm:$0xf]
    %v1954 = vld [vmem:[%s11 + $0x3ac] sm:$0xf]
    %v1955 = vld [vmem:[%s11 + $0x3b0] sm:$0xf]
    %v1956 = vld [vmem:[%s11 + $0x3b4] sm:$0xf]
    %v1957 = vld [vmem:[%s11 + $0x3b8] sm:$0xf]
    %v1958 = vld [vmem:[%s11 + $0x3bc] sm:$0xf]
    %v1959 = vld [vmem:[%s11 + $0x3c0] sm:$0xf]
    %v1960 = vld [vmem:[%s11 + $0x3c4] sm:$0xf]
    %v1961 = vld [vmem:[%s11 + $0x3c8] sm:$0xf]
    %v1962 = vld [vmem:[%s11 + $0x3cc] sm:$0xf]
    %v1963 = vld [vmem:[%s11 + $0x3d0] sm:$0xf]
    %v1964 = vld [vmem:[%s11 + $0x3d4] sm:$0xf]
    %v1965 = vld [vmem:[%s11 + $0x3d8] sm:$0xf]
    %v1966 = vld [vmem:[%s11 + $0x3dc] sm:$0xf]
    %v1967 = vld [vmem:[%s11 + $0x3e0] sm:$0xf]
    %v1968 = vld [vmem:[%s11 + $0x3e4] sm:$0xf]
    %v1969 = vld [vmem:[%s11 + $0x3e8] sm:$0xf]
    %v1970 = vld [vmem:[%s11 + $0x3ec] sm:$0xf]
    %v1971 = vld [vmem:[%s11 + $0x3f0] sm:$0xf]
    %v1972 = vld [vmem:[%s11 + $0x3f4] sm:$0xf]
    %v1973 = vld [vmem:[%s11 + $0x3f8] sm:$0xf]
    %v1974 = vld [vmem:[%s11 + $0x3fc] sm:$0xf]
    %v1975 = vld [vmem:[%s12] sm:$0x1]
    %v1977 = vlaneseq
    %v1978 = vshrl.u32 %v1977, 7
    %v1979 = vsub.s32 0, %v1978
    %v1980 = vrot.slane %v1975, %v1979
    %v2238 = vunpack.c.l.b16 %v1719
    %v2239 = vunpack.c.l.b16 %v1720
    %v2240 = vunpack.c.l.b16 %v1721
    %v2241 = vunpack.c.l.b16 %v1722
    %v2242 = vunpack.c.l.b16 %v1723
    %v2243 = vunpack.c.l.b16 %v1724
    %v2244 = vunpack.c.l.b16 %v1725
    %v2245 = vunpack.c.l.b16 %v1726
    %v2246 = vunpack.c.l.b16 %v1727
    %v2247 = vunpack.c.l.b16 %v1728
    %v2248 = vunpack.c.l.b16 %v1729
    %v2249 = vunpack.c.l.b16 %v1730
    %v2250 = vunpack.c.l.b16 %v1731
    %v2251 = vunpack.c.l.b16 %v1732
    %v2252 = vunpack.c.l.b16 %v1733
    %v2253 = vunpack.c.l.b16 %v1734
    %v2254 = vunpack.c.l.b16 %v1735
    %v2255 = vunpack.c.l.b16 %v1736
    %v2256 = vunpack.c.l.b16 %v1737
    %v2257 = vunpack.c.l.b16 %v1738
    %v2258 = vunpack.c.l.b16 %v1739
    %v2259 = vunpack.c.l.b16 %v1740
    %v2260 = vunpack.c.l.b16 %v1741
    %v2261 = vunpack.c.l.b16 %v1742
    %v2262 = vunpack.c.l.b16 %v1743
    %v2263 = vunpack.c.l.b16 %v1744
    %v2264 = vunpack.c.l.b16 %v1745
    %v2265 = vunpack.c.l.b16 %v1746
    %v2266 = vunpack.c.l.b16 %v1747
    %v2267 = vunpack.c.l.b16 %v1748
    %v2268 = vunpack.c.l.b16 %v1749
    %v2269 = vunpack.c.l.b16 %v1750
    %v2270 = vunpack.c.l.b16 %v1751
    %v2271 = vunpack.c.l.b16 %v1752
    %v2272 = vunpack.c.l.b16 %v1753
    %v2273 = vunpack.c.l.b16 %v1754
    %v2274 = vunpack.c.l.b16 %v1755
    %v2275 = vunpack.c.l.b16 %v1756
    %v2276 = vunpack.c.l.b16 %v1757
    %v2277 = vunpack.c.l.b16 %v1758
    %v2278 = vunpack.c.l.b16 %v1759
    %v2279 = vunpack.c.l.b16 %v1760
    %v2280 = vunpack.c.l.b16 %v1761
    %v2281 = vunpack.c.l.b16 %v1762
    %v2282 = vunpack.c.l.b16 %v1763
    %v2283 = vunpack.c.l.b16 %v1764
    %v2284 = vunpack.c.l.b16 %v1765
    %v2285 = vunpack.c.l.b16 %v1766
    %v2286 = vunpack.c.l.b16 %v1767
    %v2287 = vunpack.c.l.b16 %v1768
    %v2288 = vunpack.c.l.b16 %v1769
    %v2289 = vunpack.c.l.b16 %v1770
    %v2290 = vunpack.c.l.b16 %v1771
    %v2291 = vunpack.c.l.b16 %v1772
    %v2292 = vunpack.c.l.b16 %v1773
    %v2293 = vunpack.c.l.b16 %v1774
    %v2294 = vunpack.c.l.b16 %v1775
    %v2295 = vunpack.c.l.b16 %v1776
    %v2296 = vunpack.c.l.b16 %v1777
    %v2297 = vunpack.c.l.b16 %v1778
    %v2298 = vunpack.c.l.b16 %v1779
    %v2299 = vunpack.c.l.b16 %v1780
    %v2300 = vunpack.c.l.b16 %v1781
    %v2301 = vunpack.c.l.b16 %v1782
    %v2302 = vunpack.c.l.b16 %v1783
    %v2303 = vunpack.c.l.b16 %v1784
    %v2304 = vunpack.c.l.b16 %v1785
    %v2305 = vunpack.c.l.b16 %v1786
    %v2306 = vunpack.c.l.b16 %v1787
    %v2307 = vunpack.c.l.b16 %v1788
    %v2308 = vunpack.c.l.b16 %v1789
    %v2309 = vunpack.c.l.b16 %v1790
    %v2310 = vunpack.c.l.b16 %v1791
    %v2311 = vunpack.c.l.b16 %v1792
    %v2312 = vunpack.c.l.b16 %v1793
    %v2313 = vunpack.c.l.b16 %v1794
    %v2314 = vunpack.c.l.b16 %v1795
    %v2315 = vunpack.c.l.b16 %v1796
    %v2316 = vunpack.c.l.b16 %v1797
    %v2317 = vunpack.c.l.b16 %v1798
    %v2318 = vunpack.c.l.b16 %v1799
    %v2319 = vunpack.c.l.b16 %v1800
    %v2320 = vunpack.c.l.b16 %v1801
    %v2321 = vunpack.c.l.b16 %v1802
    %v2322 = vunpack.c.l.b16 %v1803
    %v2323 = vunpack.c.l.b16 %v1804
    %v2324 = vunpack.c.l.b16 %v1805
    %v2325 = vunpack.c.l.b16 %v1806
    %v2326 = vunpack.c.l.b16 %v1807
    %v2327 = vunpack.c.l.b16 %v1808
    %v2328 = vunpack.c.l.b16 %v1809
    %v2329 = vunpack.c.l.b16 %v1810
    %v2330 = vunpack.c.l.b16 %v1811
    %v2331 = vunpack.c.l.b16 %v1812
    %v2332 = vunpack.c.l.b16 %v1813
    %v2333 = vunpack.c.l.b16 %v1814
    %v2334 = vunpack.c.l.b16 %v1815
    %v2335 = vunpack.c.l.b16 %v1816
    %v2336 = vunpack.c.l.b16 %v1817
    %v2337 = vunpack.c.l.b16 %v1818
    %v2338 = vunpack.c.l.b16 %v1819
    %v2339 = vunpack.c.l.b16 %v1820
    %v2340 = vunpack.c.l.b16 %v1821
    %v2341 = vunpack.c.l.b16 %v1822
    %v2342 = vunpack.c.l.b16 %v1823
    %v2343 = vunpack.c.l.b16 %v1824
    %v2344 = vunpack.c.l.b16 %v1825
    %v2345 = vunpack.c.l.b16 %v1826
    %v2346 = vunpack.c.l.b16 %v1827
    %v2347 = vunpack.c.l.b16 %v1828
    %v2348 = vunpack.c.l.b16 %v1829
    %v2349 = vunpack.c.l.b16 %v1830
    %v2350 = vunpack.c.l.b16 %v1831
    %v2351 = vunpack.c.l.b16 %v1832
    %v2352 = vunpack.c.l.b16 %v1833
    %v2353 = vunpack.c.l.b16 %v1834
    %v2354 = vunpack.c.l.b16 %v1835
    %v2355 = vunpack.c.l.b16 %v1836
    %v2356 = vunpack.c.l.b16 %v1837
    %v2357 = vunpack.c.l.b16 %v1838
    %v2358 = vunpack.c.l.b16 %v1839
    %v2359 = vunpack.c.l.b16 %v1840
    %v2360 = vunpack.c.l.b16 %v1841
    %v2361 = vunpack.c.l.b16 %v1842
    %v2362 = vunpack.c.l.b16 %v1843
    %v2363 = vunpack.c.l.b16 %v1844
    %v2364 = vunpack.c.l.b16 %v1845
    %v2365 = vunpack.c.l.b16 %v1846
    %v2366 = vunpack.c.l.b16 %v1847
    %v2367 = vunpack.c.l.b16 %v1848
    %v2368 = vunpack.c.l.b16 %v1849
    %v2369 = vunpack.c.l.b16 %v1850
    %v2370 = vunpack.c.l.b16 %v1851
    %v2371 = vunpack.c.l.b16 %v1852
    %v2372 = vunpack.c.l.b16 %v1853
    %v2373 = vunpack.c.l.b16 %v1854
    %v2374 = vunpack.c.l.b16 %v1855
    %v2375 = vunpack.c.l.b16 %v1856
    %v2376 = vunpack.c.l.b16 %v1857
    %v2377 = vunpack.c.l.b16 %v1858
    %v2378 = vunpack.c.l.b16 %v1859
    %v2379 = vunpack.c.l.b16 %v1860
    %v2380 = vunpack.c.l.b16 %v1861
    %v2381 = vunpack.c.l.b16 %v1862
    %v2382 = vunpack.c.l.b16 %v1863
    %v2383 = vunpack.c.l.b16 %v1864
    %v2384 = vunpack.c.l.b16 %v1865
    %v2385 = vunpack.c.l.b16 %v1866
    %v2386 = vunpack.c.l.b16 %v1867
    %v2387 = vunpack.c.l.b16 %v1868
    %v2388 = vunpack.c.l.b16 %v1869
    %v2389 = vunpack.c.l.b16 %v1870
    %v2390 = vunpack.c.l.b16 %v1871
    %v2391 = vunpack.c.l.b16 %v1872
    %v2392 = vunpack.c.l.b16 %v1873
    %v2393 = vunpack.c.l.b16 %v1874
    %v2394 = vunpack.c.l.b16 %v1875
    %v2395 = vunpack.c.l.b16 %v1876
    %v2396 = vunpack.c.l.b16 %v1877
    %v2397 = vunpack.c.l.b16 %v1878
    %v2398 = vunpack.c.l.b16 %v1879
    %v2399 = vunpack.c.l.b16 %v1880
    %v2400 = vunpack.c.l.b16 %v1881
    %v2401 = vunpack.c.l.b16 %v1882
    %v2402 = vunpack.c.l.b16 %v1883
    %v2403 = vunpack.c.l.b16 %v1884
    %v2404 = vunpack.c.l.b16 %v1885
    %v2405 = vunpack.c.l.b16 %v1886
    %v2406 = vunpack.c.l.b16 %v1887
    %v2407 = vunpack.c.l.b16 %v1888
    %v2408 = vunpack.c.l.b16 %v1889
    %v2409 = vunpack.c.l.b16 %v1890
    %v2410 = vunpack.c.l.b16 %v1891
    %v2411 = vunpack.c.l.b16 %v1892
    %v2412 = vunpack.c.l.b16 %v1893
    %v2413 = vunpack.c.l.b16 %v1894
    %v2414 = vunpack.c.l.b16 %v1895
    %v2415 = vunpack.c.l.b16 %v1896
    %v2416 = vunpack.c.l.b16 %v1897
    %v2417 = vunpack.c.l.b16 %v1898
    %v2418 = vunpack.c.l.b16 %v1899
    %v2419 = vunpack.c.l.b16 %v1900
    %v2420 = vunpack.c.l.b16 %v1901
    %v2421 = vunpack.c.l.b16 %v1902
    %v2422 = vunpack.c.l.b16 %v1903
    %v2423 = vunpack.c.l.b16 %v1904
    %v2424 = vunpack.c.l.b16 %v1905
    %v2425 = vunpack.c.l.b16 %v1906
    %v2426 = vunpack.c.l.b16 %v1907
    %v2427 = vunpack.c.l.b16 %v1908
    %v2428 = vunpack.c.l.b16 %v1909
    %v2429 = vunpack.c.l.b16 %v1910
    %v2430 = vunpack.c.l.b16 %v1911
    %v2431 = vunpack.c.l.b16 %v1912
    %v2432 = vunpack.c.l.b16 %v1913
    %v2433 = vunpack.c.l.b16 %v1914
    %v2434 = vunpack.c.l.b16 %v1915
    %v2435 = vunpack.c.l.b16 %v1916
    %v2436 = vunpack.c.l.b16 %v1917
    %v2437 = vunpack.c.l.b16 %v1918
    %v2438 = vunpack.c.l.b16 %v1919
    %v2439 = vunpack.c.l.b16 %v1920
    %v2440 = vunpack.c.l.b16 %v1921
    %v2441 = vunpack.c.l.b16 %v1922
    %v2442 = vunpack.c.l.b16 %v1923
    %v2443 = vunpack.c.l.b16 %v1924
    %v2444 = vunpack.c.l.b16 %v1925
    %v2445 = vunpack.c.l.b16 %v1926
    %v2446 = vunpack.c.l.b16 %v1927
    %v2447 = vunpack.c.l.b16 %v1928
    %v2448 = vunpack.c.l.b16 %v1929
    %v2449 = vunpack.c.l.b16 %v1930
    %v2450 = vunpack.c.l.b16 %v1931
    %v2451 = vunpack.c.l.b16 %v1932
    %v2452 = vunpack.c.l.b16 %v1933
    %v2453 = vunpack.c.l.b16 %v1934
    %v2454 = vunpack.c.l.b16 %v1935
    %v2455 = vunpack.c.l.b16 %v1936
    %v2456 = vunpack.c.l.b16 %v1937
    %v2457 = vunpack.c.l.b16 %v1938
    %v2458 = vunpack.c.l.b16 %v1939
    %v2459 = vunpack.c.l.b16 %v1940
    %v2460 = vunpack.c.l.b16 %v1941
    %v2461 = vunpack.c.l.b16 %v1942
    %v2462 = vunpack.c.l.b16 %v1943
    %v2463 = vunpack.c.l.b16 %v1944
    %v2464 = vunpack.c.l.b16 %v1945
    %v2465 = vunpack.c.l.b16 %v1946
    %v2466 = vunpack.c.l.b16 %v1947
    %v2467 = vunpack.c.l.b16 %v1948
    %v2468 = vunpack.c.l.b16 %v1949
    %v2469 = vunpack.c.l.b16 %v1950
    %v2470 = vunpack.c.l.b16 %v1951
    %v2471 = vunpack.c.l.b16 %v1952
    %v2472 = vunpack.c.l.b16 %v1953
    %v2473 = vunpack.c.l.b16 %v1954
    %v2474 = vunpack.c.l.b16 %v1955
    %v2475 = vunpack.c.l.b16 %v1956
    %v2476 = vunpack.c.l.b16 %v1957
    %v2477 = vunpack.c.l.b16 %v1958
    %v2478 = vunpack.c.l.b16 %v1959
    %v2479 = vunpack.c.l.b16 %v1960
    %v2480 = vunpack.c.l.b16 %v1961
    %v2481 = vunpack.c.l.b16 %v1962
    %v2482 = vunpack.c.l.b16 %v1963
    %v2483 = vunpack.c.l.b16 %v1964
    %v2484 = vunpack.c.l.b16 %v1965
    %v2485 = vunpack.c.l.b16 %v1966
    %v2486 = vunpack.c.l.b16 %v1967
    %v2487 = vunpack.c.l.b16 %v1968
    %v2488 = vunpack.c.l.b16 %v1969
    %v2489 = vunpack.c.l.b16 %v1970
    %v2490 = vunpack.c.l.b16 %v1971
    %v2491 = vunpack.c.l.b16 %v1972
    %v2492 = vunpack.c.l.b16 %v1973
    %v2493 = vunpack.c.l.b16 %v1974
    %v2494 = vpack.c.b16 %v2239, %v2238
    %v2495 = vpack.c.b16 %v2241, %v2240
    %v2496 = vpack.c.b16 %v2243, %v2242
    %v2497 = vpack.c.b16 %v2245, %v2244
    %v2498 = vpack.c.b16 %v2247, %v2246
    %v2499 = vpack.c.b16 %v2249, %v2248
    %v2500 = vpack.c.b16 %v2251, %v2250
    %v2501 = vpack.c.b16 %v2253, %v2252
    %v2502 = vpack.c.b16 %v2255, %v2254
    %v2503 = vpack.c.b16 %v2257, %v2256
    %v2504 = vpack.c.b16 %v2259, %v2258
    %v2505 = vpack.c.b16 %v2261, %v2260
    %v2506 = vpack.c.b16 %v2263, %v2262
    %v2507 = vpack.c.b16 %v2265, %v2264
    %v2508 = vpack.c.b16 %v2267, %v2266
    %v2509 = vpack.c.b16 %v2269, %v2268
    %v2510 = vpack.c.b16 %v2271, %v2270
    %v2511 = vpack.c.b16 %v2273, %v2272
    %v2512 = vpack.c.b16 %v2275, %v2274
    %v2513 = vpack.c.b16 %v2277, %v2276
    %v2514 = vpack.c.b16 %v2279, %v2278
    %v2515 = vpack.c.b16 %v2281, %v2280
    %v2516 = vpack.c.b16 %v2283, %v2282
    %v2517 = vpack.c.b16 %v2285, %v2284
    %v2518 = vpack.c.b16 %v2287, %v2286
    %v2519 = vpack.c.b16 %v2289, %v2288
    %v2520 = vpack.c.b16 %v2291, %v2290
    %v2521 = vpack.c.b16 %v2293, %v2292
    %v2522 = vpack.c.b16 %v2295, %v2294
    %v2523 = vpack.c.b16 %v2297, %v2296
    %v2524 = vpack.c.b16 %v2299, %v2298
    %v2525 = vpack.c.b16 %v2301, %v2300
    %v2526 = vpack.c.b16 %v2303, %v2302
    %v2527 = vpack.c.b16 %v2305, %v2304
    %v2528 = vpack.c.b16 %v2307, %v2306
    %v2529 = vpack.c.b16 %v2309, %v2308
    %v2530 = vpack.c.b16 %v2311, %v2310
    %v2531 = vpack.c.b16 %v2313, %v2312
    %v2532 = vpack.c.b16 %v2315, %v2314
    %v2533 = vpack.c.b16 %v2317, %v2316
    %v2534 = vpack.c.b16 %v2319, %v2318
    %v2535 = vpack.c.b16 %v2321, %v2320
    %v2536 = vpack.c.b16 %v2323, %v2322
    %v2537 = vpack.c.b16 %v2325, %v2324
    %v2538 = vpack.c.b16 %v2327, %v2326
    %v2539 = vpack.c.b16 %v2329, %v2328
    %v2540 = vpack.c.b16 %v2331, %v2330
    %v2541 = vpack.c.b16 %v2333, %v2332
    %v2542 = vpack.c.b16 %v2335, %v2334
    %v2543 = vpack.c.b16 %v2337, %v2336
    %v2544 = vpack.c.b16 %v2339, %v2338
    %v2545 = vpack.c.b16 %v2341, %v2340
    %v2546 = vpack.c.b16 %v2343, %v2342
    %v2547 = vpack.c.b16 %v2345, %v2344
    %v2548 = vpack.c.b16 %v2347, %v2346
    %v2549 = vpack.c.b16 %v2349, %v2348
    %v2550 = vpack.c.b16 %v2351, %v2350
    %v2551 = vpack.c.b16 %v2353, %v2352
    %v2552 = vpack.c.b16 %v2355, %v2354
    %v2553 = vpack.c.b16 %v2357, %v2356
    %v2554 = vpack.c.b16 %v2359, %v2358
    %v2555 = vpack.c.b16 %v2361, %v2360
    %v2556 = vpack.c.b16 %v2363, %v2362
    %v2557 = vpack.c.b16 %v2365, %v2364
    %v2558 = vpack.c.b16 %v2367, %v2366
    %v2559 = vpack.c.b16 %v2369, %v2368
    %v2560 = vpack.c.b16 %v2371, %v2370
    %v2561 = vpack.c.b16 %v2373, %v2372
    %v2562 = vpack.c.b16 %v2375, %v2374
    %v2563 = vpack.c.b16 %v2377, %v2376
    %v2564 = vpack.c.b16 %v2379, %v2378
    %v2565 = vpack.c.b16 %v2381, %v2380
    %v2566 = vpack.c.b16 %v2383, %v2382
    %v2567 = vpack.c.b16 %v2385, %v2384
    %v2568 = vpack.c.b16 %v2387, %v2386
    %v2569 = vpack.c.b16 %v2389, %v2388
    %v2570 = vpack.c.b16 %v2391, %v2390
    %v2571 = vpack.c.b16 %v2393, %v2392
    %v2572 = vpack.c.b16 %v2395, %v2394
    %v2573 = vpack.c.b16 %v2397, %v2396
    %v2574 = vpack.c.b16 %v2399, %v2398
    %v2575 = vpack.c.b16 %v2401, %v2400
    %v2576 = vpack.c.b16 %v2403, %v2402
    %v2577 = vpack.c.b16 %v2405, %v2404
    %v2578 = vpack.c.b16 %v2407, %v2406
    %v2579 = vpack.c.b16 %v2409, %v2408
    %v2580 = vpack.c.b16 %v2411, %v2410
    %v2581 = vpack.c.b16 %v2413, %v2412
    %v2582 = vpack.c.b16 %v2415, %v2414
    %v2583 = vpack.c.b16 %v2417, %v2416
    %v2584 = vpack.c.b16 %v2419, %v2418
    %v2585 = vpack.c.b16 %v2421, %v2420
    %v2586 = vpack.c.b16 %v2423, %v2422
    %v2587 = vpack.c.b16 %v2425, %v2424
    %v2588 = vpack.c.b16 %v2427, %v2426
    %v2589 = vpack.c.b16 %v2429, %v2428
    %v2590 = vpack.c.b16 %v2431, %v2430
    %v2591 = vpack.c.b16 %v2433, %v2432
    %v2592 = vpack.c.b16 %v2435, %v2434
    %v2593 = vpack.c.b16 %v2437, %v2436
    %v2594 = vpack.c.b16 %v2439, %v2438
    %v2595 = vpack.c.b16 %v2441, %v2440
    %v2596 = vpack.c.b16 %v2443, %v2442
    %v2597 = vpack.c.b16 %v2445, %v2444
    %v2598 = vpack.c.b16 %v2447, %v2446
    %v2599 = vpack.c.b16 %v2449, %v2448
    %v2600 = vpack.c.b16 %v2451, %v2450
    %v2601 = vpack.c.b16 %v2453, %v2452
    %v2602 = vpack.c.b16 %v2455, %v2454
    %v2603 = vpack.c.b16 %v2457, %v2456
    %v2604 = vpack.c.b16 %v2459, %v2458
    %v2605 = vpack.c.b16 %v2461, %v2460
    %v2606 = vpack.c.b16 %v2463, %v2462
    %v2607 = vpack.c.b16 %v2465, %v2464
    %v2608 = vpack.c.b16 %v2467, %v2466
    %v2609 = vpack.c.b16 %v2469, %v2468
    %v2610 = vpack.c.b16 %v2471, %v2470
    %v2611 = vpack.c.b16 %v2473, %v2472
    %v2612 = vpack.c.b16 %v2475, %v2474
    %v2613 = vpack.c.b16 %v2477, %v2476
    %v2614 = vpack.c.b16 %v2479, %v2478
    %v2615 = vpack.c.b16 %v2481, %v2480
    %v2616 = vpack.c.b16 %v2483, %v2482
    %v2617 = vpack.c.b16 %v2485, %v2484
    %v2618 = vpack.c.b16 %v2487, %v2486
    %v2619 = vpack.c.b16 %v2489, %v2488
    %v2620 = vpack.c.b16 %v2491, %v2490
    %v2621 = vpack.c.b16 %v2493, %v2492
    %2750 = vmatprep.subr.bf16.mxu0 0
    %2751 = vmatpush1.bf16.msra.mxu0 %v2494
    %2752 = vmatprep.subr.bf16.mxu0 0
    %2753 = vmatpush1.bf16.msra.mxu0 %v2495
    %2754 = vmatprep.subr.bf16.mxu0 0
    %2755 = vmatpush1.bf16.msra.mxu0 %v2496
    %2756 = vmatprep.subr.bf16.mxu0 0
    %2757 = vmatpush1.bf16.msra.mxu0 %v2497
    %2758 = vmatprep.subr.bf16.mxu0 0
    %2759 = vmatpush1.bf16.msra.mxu0 %v2498
    %2760 = vmatprep.subr.bf16.mxu0 0
    %2761 = vmatpush1.bf16.msra.mxu0 %v2499
    %2762 = vmatprep.subr.bf16.mxu0 0
    %2763 = vmatpush1.bf16.msra.mxu0 %v2500
    %2764 = vmatprep.subr.bf16.mxu0 0
    %2765 = vmatpush1.bf16.msra.mxu0 %v2501
    %2766 = vmatprep.subr.bf16.mxu0 0
    %2767 = vmatpush1.bf16.msra.mxu0 %v2502
    %2768 = vmatprep.subr.bf16.mxu0 0
    %2769 = vmatpush1.bf16.msra.mxu0 %v2503
    %2770 = vmatprep.subr.bf16.mxu0 0
    %2771 = vmatpush1.bf16.msra.mxu0 %v2504
    %2772 = vmatprep.subr.bf16.mxu0 0
    %2773 = vmatpush1.bf16.msra.mxu0 %v2505
    %2774 = vmatprep.subr.bf16.mxu0 0
    %2775 = vmatpush1.bf16.msra.mxu0 %v2506
    %2776 = vmatprep.subr.bf16.mxu0 0
    %2777 = vmatpush1.bf16.msra.mxu0 %v2507
    %2778 = vmatprep.subr.bf16.mxu0 0
    %2779 = vmatpush1.bf16.msra.mxu0 %v2508
    %2780 = vmatprep.subr.bf16.mxu0 0
    %2781 = vmatpush1.bf16.msra.mxu0 %v2509
    %2782 = vmatprep.mubr.bf16.mxu0 %v1704
    %2783 = vmatmul.mubr.bf16.gmra.mrb[0].mxu0 %v1703
    %v2784 = vpop.f32.mrb[0].mxu0
    %v2785 = vadd.f32 %v1980, %v2784
    %v2786 = vpop.f32.mrb[0].mxu0
    %v2787 = vpop.f32.mrb[0].mxu0
    %v2788 = vadd.f32 %v1980, %v2787
    %v2789 = vpop.f32.mrb[0].mxu0
    %2790 = vdwg.mxu0
    %2791 = vmatprep.subr.bf16.mxu0 0
    %2792 = vmatpush1.bf16.msra.mxu0 %v2510
    %2793 = vmatprep.subr.bf16.mxu0 0
    %2794 = vmatpush1.bf16.msra.mxu0 %v2511
    %2795 = vmatprep.subr.bf16.mxu0 0
    %2796 = vmatpush1.bf16.msra.mxu0 %v2512
    %2797 = vmatprep.subr.bf16.mxu0 0
    %2798 = vmatpush1.bf16.msra.mxu0 %v2513
    %2799 = vmatprep.subr.bf16.mxu0 0
    %2800 = vmatpush1.bf16.msra.mxu0 %v2514
    %2801 = vmatprep.subr.bf16.mxu0 0
    %2802 = vmatpush1.bf16.msra.mxu0 %v2515
    %2803 = vmatprep.subr.bf16.mxu0 0
    %2804 = vmatpush1.bf16.msra.mxu0 %v2516
    %2805 = vmatprep.subr.bf16.mxu0 0
    %2806 = vmatpush1.bf16.msra.mxu0 %v2517
    %2807 = vmatprep.subr.bf16.mxu0 0
    %2808 = vmatpush1.bf16.msra.mxu0 %v2518
    %2809 = vmatprep.subr.bf16.mxu0 0
    %2810 = vmatpush1.bf16.msra.mxu0 %v2519
    %2811 = vmatprep.subr.bf16.mxu0 0
    %2812 = vmatpush1.bf16.msra.mxu0 %v2520
    %2813 = vmatprep.subr.bf16.mxu0 0
    %2814 = vmatpush1.bf16.msra.mxu0 %v2521
    %2815 = vmatprep.subr.bf16.mxu0 0
    %2816 = vmatpush1.bf16.msra.mxu0 %v2522
    %2817 = vmatprep.subr.bf16.mxu0 0
    %2818 = vmatpush1.bf16.msra.mxu0 %v2523
    %2819 = vmatprep.subr.bf16.mxu0 0
    %2820 = vmatpush1.bf16.msra.mxu0 %v2524
    %2821 = vmatprep.subr.bf16.mxu0 0
    %2822 = vmatpush1.bf16.msra.mxu0 %v2525
    %2823 = vmatprep.mubr.bf16.mxu0 %v1706
    %2824 = vmatmul.mubr.bf16.gmra.mrb[0].mxu0 %v1705
    %v2825 = vpop.f32.mrb[0].mxu0
    %v2826 = vadd.f32 %v2785, %v2825
    %v2827 = vpop.f32.mrb[0].mxu0
    %v2828 = vpop.f32.mrb[0].mxu0
    %v2829 = vadd.f32 %v2788, %v2828
    %v2830 = vpop.f32.mrb[0].mxu0
    %2831 = vdwg.mxu0
    %2832 = vmatprep.subr.bf16.mxu0 0
    %2833 = vmatpush1.bf16.msra.mxu0 %v2526
    %2834 = vmatprep.subr.bf16.mxu0 0
    %2835 = vmatpush1.bf16.msra.mxu0 %v2527
    %2836 = vmatprep.subr.bf16.mxu0 0
    %2837 = vmatpush1.bf16.msra.mxu0 %v2528
    %2838 = vmatprep.subr.bf16.mxu0 0
    %2839 = vmatpush1.bf16.msra.mxu0 %v2529
    %2840 = vmatprep.subr.bf16.mxu0 0
    %2841 = vmatpush1.bf16.msra.mxu0 %v2530
    %2842 = vmatprep.subr.bf16.mxu0 0
    %2843 = vmatpush1.bf16.msra.mxu0 %v2531
    %2844 = vmatprep.subr.bf16.mxu0 0
    %2845 = vmatpush1.bf16.msra.mxu0 %v2532
    %2846 = vmatprep.subr.bf16.mxu0 0
    %2847 = vmatpush1.bf16.msra.mxu0 %v2533
    %2848 = vmatprep.subr.bf16.mxu0 0
    %2849 = vmatpush1.bf16.msra.mxu0 %v2534
    %2850 = vmatprep.subr.bf16.mxu0 0
    %2851 = vmatpush1.bf16.msra.mxu0 %v2535
    %2852 = vmatprep.subr.bf16.mxu0 0
    %2853 = vmatpush1.bf16.msra.mxu0 %v2536
    %2854 = vmatprep.subr.bf16.mxu0 0
    %2855 = vmatpush1.bf16.msra.mxu0 %v2537
    %2856 = vmatprep.subr.bf16.mxu0 0
    %2857 = vmatpush1.bf16.msra.mxu0 %v2538
    %2858 = vmatprep.subr.bf16.mxu0 0
    %2859 = vmatpush1.bf16.msra.mxu0 %v2539
    %2860 = vmatprep.subr.bf16.mxu0 0
    %2861 = vmatpush1.bf16.msra.mxu0 %v2540
    %2862 = vmatprep.subr.bf16.mxu0 0
    %2863 = vmatpush1.bf16.msra.mxu0 %v2541
    %2864 = vmatprep.mubr.bf16.mxu0 %v1708
    %2865 = vmatmul.mubr.bf16.gmra.mrb[0].mxu0 %v1707
    %v2866 = vpop.f32.mrb[0].mxu0
    %v2867 = vadd.f32 %v2826, %v2866
    %v2868 = vpop.f32.mrb[0].mxu0
    %v2869 = vpop.f32.mrb[0].mxu0
    %v2870 = vadd.f32 %v2829, %v2869
    %v2871 = vpop.f32.mrb[0].mxu0
    %2872 = vdwg.mxu0
    %2873 = vmatprep.subr.bf16.mxu0 0
    %2874 = vmatpush1.bf16.msra.mxu0 %v2542
    %2875 = vmatprep.subr.bf16.mxu0 0
    %2876 = vmatpush1.bf16.msra.mxu0 %v2543
    %2877 = vmatprep.subr.bf16.mxu0 0
    %2878 = vmatpush1.bf16.msra.mxu0 %v2544
    %2879 = vmatprep.subr.bf16.mxu0 0
    %2880 = vmatpush1.bf16.msra.mxu0 %v2545
    %2881 = vmatprep.subr.bf16.mxu0 0
    %2882 = vmatpush1.bf16.msra.mxu0 %v2546
    %2883 = vmatprep.subr.bf16.mxu0 0
    %2884 = vmatpush1.bf16.msra.mxu0 %v2547
    %2885 = vmatprep.subr.bf16.mxu0 0
    %2886 = vmatpush1.bf16.msra.mxu0 %v2548
    %2887 = vmatprep.subr.bf16.mxu0 0
    %2888 = vmatpush1.bf16.msra.mxu0 %v2549
    %2889 = vmatprep.subr.bf16.mxu0 0
    %2890 = vmatpush1.bf16.msra.mxu0 %v2550
    %2891 = vmatprep.subr.bf16.mxu0 0
    %2892 = vmatpush1.bf16.msra.mxu0 %v2551
    %2893 = vmatprep.subr.bf16.mxu0 0
    %2894 = vmatpush1.bf16.msra.mxu0 %v2552
    %2895 = vmatprep.subr.bf16.mxu0 0
    %2896 = vmatpush1.bf16.msra.mxu0 %v2553
    %2897 = vmatprep.subr.bf16.mxu0 0
    %2898 = vmatpush1.bf16.msra.mxu0 %v2554
    %2899 = vmatprep.subr.bf16.mxu0 0
    %2900 = vmatpush1.bf16.msra.mxu0 %v2555
    %2901 = vmatprep.subr.bf16.mxu0 0
    %2902 = vmatpush1.bf16.msra.mxu0 %v2556
    %2903 = vmatprep.subr.bf16.mxu0 0
    %2904 = vmatpush1.bf16.msra.mxu0 %v2557
    %2905 = vmatprep.mubr.bf16.mxu0 %v1710
    %2906 = vmatmul.mubr.bf16.gmra.mrb[0].mxu0 %v1709
    %v2907 = vpop.f32.mrb[0].mxu0
    %v2908 = vadd.f32 %v2867, %v2907
    %v2909 = vpop.f32.mrb[0].mxu0
    %v2910 = vpop.f32.mrb[0].mxu0
    %v2911 = vadd.f32 %v2870, %v2910
    %v2912 = vpop.f32.mrb[0].mxu0
    %2913 = vdwg.mxu0
    %2914 = vmatprep.subr.bf16.mxu0 0
    %2915 = vmatpush1.bf16.msra.mxu0 %v2558
    %2916 = vmatprep.subr.bf16.mxu0 0
    %2917 = vmatpush1.bf16.msra.mxu0 %v2559
    %2918 = vmatprep.subr.bf16.mxu0 0
    %2919 = vmatpush1.bf16.msra.mxu0 %v2560
    %2920 = vmatprep.subr.bf16.mxu0 0
    %2921 = vmatpush1.bf16.msra.mxu0 %v2561
    %2922 = vmatprep.subr.bf16.mxu0 0
    %2923 = vmatpush1.bf16.msra.mxu0 %v2562
    %2924 = vmatprep.subr.bf16.mxu0 0
    %2925 = vmatpush1.bf16.msra.mxu0 %v2563
    %2926 = vmatprep.subr.bf16.mxu0 0
    %2927 = vmatpush1.bf16.msra.mxu0 %v2564
    %2928 = vmatprep.subr.bf16.mxu0 0
    %2929 = vmatpush1.bf16.msra.mxu0 %v2565
    %2930 = vmatprep.subr.bf16.mxu0 0
    %2931 = vmatpush1.bf16.msra.mxu0 %v2566
    %2932 = vmatprep.subr.bf16.mxu0 0
    %2933 = vmatpush1.bf16.msra.mxu0 %v2567
    %2934 = vmatprep.subr.bf16.mxu0 0
    %2935 = vmatpush1.bf16.msra.mxu0 %v2568
    %2936 = vmatprep.subr.bf16.mxu0 0
    %2937 = vmatpush1.bf16.msra.mxu0 %v2569
    %2938 = vmatprep.subr.bf16.mxu0 0
    %2939 = vmatpush1.bf16.msra.mxu0 %v2570
    %2940 = vmatprep.subr.bf16.mxu0 0
    %2941 = vmatpush1.bf16.msra.mxu0 %v2571
    %2942 = vmatprep.subr.bf16.mxu0 0
    %2943 = vmatpush1.bf16.msra.mxu0 %v2572
    %2944 = vmatprep.subr.bf16.mxu0 0
    %2945 = vmatpush1.bf16.msra.mxu0 %v2573
    %2946 = vmatprep.mubr.bf16.mxu0 %v1712
    %2947 = vmatmul.mubr.bf16.gmra.mrb[0].mxu0 %v1711
    %v2948 = vpop.f32.mrb[0].mxu0
    %v2949 = vadd.f32 %v2908, %v2948
    %v2950 = vpop.f32.mrb[0].mxu0
    %v2951 = vpop.f32.mrb[0].mxu0
    %v2952 = vadd.f32 %v2911, %v2951
    %v2953 = vpop.f32.mrb[0].mxu0
    %2954 = vdwg.mxu0
    %2955 = vmatprep.subr.bf16.mxu0 0
    %2956 = vmatpush1.bf16.msra.mxu0 %v2574
    %2957 = vmatprep.subr.bf16.mxu0 0
    %2958 = vmatpush1.bf16.msra.mxu0 %v2575
    %2959 = vmatprep.subr.bf16.mxu0 0
    %2960 = vmatpush1.bf16.msra.mxu0 %v2576
    %2961 = vmatprep.subr.bf16.mxu0 0
    %2962 = vmatpush1.bf16.msra.mxu0 %v2577
    %2963 = vmatprep.subr.bf16.mxu0 0
    %2964 = vmatpush1.bf16.msra.mxu0 %v2578
    %2965 = vmatprep.subr.bf16.mxu0 0
    %2966 = vmatpush1.bf16.msra.mxu0 %v2579
    %2967 = vmatprep.subr.bf16.mxu0 0
    %2968 = vmatpush1.bf16.msra.mxu0 %v2580
    %2969 = vmatprep.subr.bf16.mxu0 0
    %2970 = vmatpush1.bf16.msra.mxu0 %v2581
    %2971 = vmatprep.subr.bf16.mxu0 0
    %2972 = vmatpush1.bf16.msra.mxu0 %v2582
    %2973 = vmatprep.subr.bf16.mxu0 0
    %2974 = vmatpush1.bf16.msra.mxu0 %v2583
    %2975 = vmatprep.subr.bf16.mxu0 0
    %2976 = vmatpush1.bf16.msra.mxu0 %v2584
    %2977 = vmatprep.subr.bf16.mxu0 0
    %2978 = vmatpush1.bf16.msra.mxu0 %v2585
    %2979 = vmatprep.subr.bf16.mxu0 0
    %2980 = vmatpush1.bf16.msra.mxu0 %v2586
    %2981 = vmatprep.subr.bf16.mxu0 0
    %2982 = vmatpush1.bf16.msra.mxu0 %v2587
    %2983 = vmatprep.subr.bf16.mxu0 0
    %2984 = vmatpush1.bf16.msra.mxu0 %v2588
    %2985 = vmatprep.subr.bf16.mxu0 0
    %2986 = vmatpush1.bf16.msra.mxu0 %v2589
    %2987 = vmatprep.mubr.bf16.mxu0 %v1714
    %2988 = vmatmul.mubr.bf16.gmra.mrb[0].mxu0 %v1713
    %v2989 = vpop.f32.mrb[0].mxu0
    %v2990 = vadd.f32 %v2949, %v2989
    %v2991 = vpop.f32.mrb[0].mxu0
    %v2992 = vpop.f32.mrb[0].mxu0
    %v2993 = vadd.f32 %v2952, %v2992
    %v2994 = vpop.f32.mrb[0].mxu0
    %2995 = vdwg.mxu0
    %2996 = vmatprep.subr.bf16.mxu0 0
    %2997 = vmatpush1.bf16.msra.mxu0 %v2590
    %2998 = vmatprep.subr.bf16.mxu0 0
    %2999 = vmatpush1.bf16.msra.mxu0 %v2591
    %3000 = vmatprep.subr.bf16.mxu0 0
    %3001 = vmatpush1.bf16.msra.mxu0 %v2592
    %3002 = vmatprep.subr.bf16.mxu0 0
    %3003 = vmatpush1.bf16.msra.mxu0 %v2593
    %3004 = vmatprep.subr.bf16.mxu0 0
    %3005 = vmatpush1.bf16.msra.mxu0 %v2594
    %3006 = vmatprep.subr.bf16.mxu0 0
    %3007 = vmatpush1.bf16.msra.mxu0 %v2595
    %3008 = vmatprep.subr.bf16.mxu0 0
    %3009 = vmatpush1.bf16.msra.mxu0 %v2596
    %3010 = vmatprep.subr.bf16.mxu0 0
    %3011 = vmatpush1.bf16.msra.mxu0 %v2597
    %3012 = vmatprep.subr.bf16.mxu0 0
    %3013 = vmatpush1.bf16.msra.mxu0 %v2598
    %3014 = vmatprep.subr.bf16.mxu0 0
    %3015 = vmatpush1.bf16.msra.mxu0 %v2599
    %3016 = vmatprep.subr.bf16.mxu0 0
    %3017 = vmatpush1.bf16.msra.mxu0 %v2600
    %3018 = vmatprep.subr.bf16.mxu0 0
    %3019 = vmatpush1.bf16.msra.mxu0 %v2601
    %3020 = vmatprep.subr.bf16.mxu0 0
    %3021 = vmatpush1.bf16.msra.mxu0 %v2602
    %3022 = vmatprep.subr.bf16.mxu0 0
    %3023 = vmatpush1.bf16.msra.mxu0 %v2603
    %3024 = vmatprep.subr.bf16.mxu0 0
    %3025 = vmatpush1.bf16.msra.mxu0 %v2604
    %3026 = vmatprep.subr.bf16.mxu0 0
    %3027 = vmatpush1.bf16.msra.mxu0 %v2605
    %3028 = vmatprep.mubr.bf16.mxu0 %v1716
    %3029 = vmatmul.mubr.bf16.gmra.mrb[0].mxu0 %v1715
    %v3030 = vpop.f32.mrb[0].mxu0
    %v3031 = vadd.f32 %v2990, %v3030
    %v3032 = vpop.f32.mrb[0].mxu0
    %v3033 = vpop.f32.mrb[0].mxu0
    %v3034 = vadd.f32 %v2993, %v3033
    %v3035 = vpop.f32.mrb[0].mxu0
    %3036 = vdwg.mxu0
    %3037 = vmatprep.subr.bf16.mxu0 0
    %3038 = vmatpush1.bf16.msra.mxu0 %v2606
    %3039 = vmatprep.subr.bf16.mxu0 0
    %3040 = vmatpush1.bf16.msra.mxu0 %v2607
    %3041 = vmatprep.subr.bf16.mxu0 0
    %3042 = vmatpush1.bf16.msra.mxu0 %v2608
    %3043 = vmatprep.subr.bf16.mxu0 0
    %3044 = vmatpush1.bf16.msra.mxu0 %v2609
    %3045 = vmatprep.subr.bf16.mxu0 0
    %3046 = vmatpush1.bf16.msra.mxu0 %v2610
    %3047 = vmatprep.subr.bf16.mxu0 0
    %3048 = vmatpush1.bf16.msra.mxu0 %v2611
    %3049 = vmatprep.subr.bf16.mxu0 0
    %3050 = vmatpush1.bf16.msra.mxu0 %v2612
    %3051 = vmatprep.subr.bf16.mxu0 0
    %3052 = vmatpush1.bf16.msra.mxu0 %v2613
    %3053 = vmatprep.subr.bf16.mxu0 0
    %3054 = vmatpush1.bf16.msra.mxu0 %v2614
    %3055 = vmatprep.subr.bf16.mxu0 0
    %3056 = vmatpush1.bf16.msra.mxu0 %v2615
    %3057 = vmatprep.subr.bf16.mxu0 0
    %3058 = vmatpush1.bf16.msra.mxu0 %v2616
    %3059 = vmatprep.subr.bf16.mxu0 0
    %3060 = vmatpush1.bf16.msra.mxu0 %v2617
    %3061 = vmatprep.subr.bf16.mxu0 0
    %3062 = vmatpush1.bf16.msra.mxu0 %v2618
    %3063 = vmatprep.subr.bf16.mxu0 0
    %3064 = vmatpush1.bf16.msra.mxu0 %v2619
    %3065 = vmatprep.subr.bf16.mxu0 0
    %3066 = vmatpush1.bf16.msra.mxu0 %v2620
    %3067 = vmatprep.subr.bf16.mxu0 0
    %3068 = vmatpush1.bf16.msra.mxu0 %v2621
    %3069 = vmatprep.mubr.bf16.mxu0 %v1718
    %3070 = vmatmul.mubr.bf16.gmra.mrb[0].mxu0 %v1717
    %v3071 = vpop.f32.mrb[0].mxu0
    %v3072 = vadd.f32 %v3031, %v3071
    %v3073 = vpop.f32.mrb[0].mxu0
    %v3074 = vpop.f32.mrb[0].mxu0
    %v3075 = vadd.f32 %v3034, %v3074
    %v3076 = vpop.f32.mrb[0].mxu0
    %3077 = vdwg.mxu0
    %v3078 = vadd.f32 %v1045, %v3072
    %v3079 = vadd.f32 %v1046, %v3075
    %v3080 = vld [vmem:[%s13] sm:$0x1]
    %v3081 = vld [vmem:[%s14] sm:$0x1]
    %v3082 = vsel %vm176, %v3078, 0.0
    %3083 = vadd.xlane.f32.xlu0 %v3082
    %v3084 = vpop.xlane.xlu0 %3083
    %v3085 = vsel %vm176, %v3079, 0.0
    %3086 = vadd.xlane.f32.xlu0 %v3085
    %v3087 = vpop.xlane.xlu0 %3086
    %v3088 = vmul.f32 %v3084, %v1010
    %v3089 = vmul.f32 %v3087, %v1010
    %v3090 = vsub.f32 %v3078, %v3088
    %v3091 = vsub.f32 %v3079, %v3089
    %v3092 = vmul.f32 %v3090, %v3090
    %v3093 = vmul.f32 %v3091, %v3091
    %v3094 = vsel %vm176, %v3092, 0.0
    %3095 = vadd.xlane.f32.xlu0 %v3094
    %v3096 = vpop.xlane.xlu0 %3095
    %v3097 = vsel %vm176, %v3093, 0.0
    %3098 = vadd.xlane.f32.xlu0 %v3097
    %v3099 = vpop.xlane.xlu0 %3098
    %v3100 = vmul.f32 %v3096, %v1010
    %v3101 = vmul.f32 %v3099, %v1010
    %v3102 = vadd.f32 %v3100, 1e-05
    %v3103 = vadd.f32 %v3101, 1e-05
    %v3104 = vrsqrt.pop %v3102
    %v3105 = vrsqrt.pop %v3103
    %v3106 = vmul.f32 %v3090, %v3104
    %v3107 = vmul.f32 %v3091, %v3105
    %v3109 = vlaneseq
    %v3110 = vshrl.u32 %v3109, 7
    %v3111 = vsub.s32 0, %v3110
    %v3112 = vrot.slane %v3080, %v3111
    %v3114 = vmul.f32 %v3106, %v3112
    %v3115 = vmul.f32 %v3107, %v3112
    %v3117 = vlaneseq
    %v3118 = vshrl.u32 %v3117, 7
    %v3119 = vsub.s32 0, %v3118
    %v3120 = vrot.slane %v3081, %v3119
    %v3122 = vadd.f32 %v3114, %v3120
    %v3123 = vadd.f32 %v3115, %v3120
    %v3124 = vld [vmem:[%s15] sm:$0x1]
    %v3125 = vld [vmem:[#allocation2] sm:$0x1]
    %3127 = vset.pattern.permute.xlu0 0
    %3128 = vperm.xlu0 %3127, %v3125
    %v3129 = vpop.permute.xlu0 %3128
    %v3131 = vlaneseq
    %v3132 = vshrl.u32 %v3131, 7
    %v3133 = vsub.s32 0, %v3132
    %v3134 = vrot.slane %v3129, %v3133
    %v3136 = vsel %vm176, %v3124, 0
    %v3139 = vsel %vm176, %v3122, 0
    %v3142 = vsel %vm176, %v3123, 0
    %3144 = vmatprep.subr.mxu0 0.0
    %3145 = vmatpush1.xpose.msra.mxu0 %v3139
    %3146 = vmatprep.subr.mxu0 0.0
    %3147 = vmatpush1.xpose.msra.mxu0 %v3142
    %3148 = vmatprep.subr.mxu0 0.0
    %3149 = vmatpush1.xpose.msra.mxu0 0.0
    %3150 = vmatprep.subr.mxu0 0.0
    %3151 = vmatpush1.xpose.msra.mxu0 0.0
    %3152 = vmatprep.subr.mxu0 0.0
    %3153 = vmatpush1.xpose.msra.mxu0 0.0
    %3154 = vmatprep.subr.mxu0 0.0
    %3155 = vmatpush1.xpose.msra.mxu0 0.0
    %3156 = vmatprep.subr.mxu0 0.0
    %3157 = vmatpush1.xpose.msra.mxu0 0.0
    %3158 = vmatprep.subr.mxu0 0.0
    %3159 = vmatpush1.xpose.msra.mxu0 0.0
    %3160 = vmatprep.subr.mxu0 0.0
    %3161 = vmatpush1.xpose.msra.mxu0 0.0
    %3162 = vmatprep.subr.mxu0 0.0
    %3163 = vmatpush1.xpose.msra.mxu0 0.0
    %3164 = vmatprep.subr.mxu0 0.0
    %3165 = vmatpush1.xpose.msra.mxu0 0.0
    %3166 = vmatprep.subr.mxu0 0.0
    %3167 = vmatpush1.xpose.msra.mxu0 0.0
    %3168 = vmatprep.subr.mxu0 0.0
    %3169 = vmatpush1.xpose.msra.mxu0 0.0
    %3170 = vmatprep.subr.mxu0 0.0
    %3171 = vmatpush1.xpose.msra.mxu0 0.0
    %3172 = vmatprep.subr.mxu0 0.0
    %3173 = vmatpush1.xpose.msra.mxu0 0.0
    %3174 = vmatprep.subr.mxu0 0.0
    %3175 = vmatpush1.xpose.msra.mxu0 0.0
    %3176 = vmatprep.subr.mxu0 0.0
    %3177 = vmatpush1.xpose.msra.mxu0 0.0
    %3178 = vmatprep.subr.mxu0 0.0
    %3179 = vmatpush1.xpose.msra.mxu0 0.0
    %3180 = vmatprep.subr.mxu0 0.0
    %3181 = vmatpush1.xpose.msra.mxu0 0.0
    %3182 = vmatprep.subr.mxu0 0.0
    %3183 = vmatpush1.xpose.msra.mxu0 0.0
    %3184 = vmatprep.subr.mxu0 0.0
    %3185 = vmatpush1.xpose.msra.mxu0 0.0
    %3186 = vmatprep.subr.mxu0 0.0
    %3187 = vmatpush1.xpose.msra.mxu0 0.0
    %3188 = vmatprep.subr.mxu0 0.0
    %3189 = vmatpush1.xpose.msra.mxu0 0.0
    %3190 = vmatprep.subr.mxu0 0.0
    %3191 = vmatpush1.xpose.msra.mxu0 0.0
    %3192 = vmatprep.subr.mxu0 0.0
    %3193 = vmatpush1.xpose.msra.mxu0 0.0
    %3194 = vmatprep.subr.mxu0 0.0
    %3195 = vmatpush1.xpose.msra.mxu0 0.0
    %3196 = vmatprep.subr.mxu0 0.0
    %3197 = vmatpush1.xpose.msra.mxu0 0.0
    %3198 = vmatprep.subr.mxu0 0.0
    %3199 = vmatpush1.xpose.msra.mxu0 0.0
    %3200 = vmatprep.subr.mxu0 0.0
    %3201 = vmatpush1.xpose.msra.mxu0 0.0
    %3202 = vmatprep.subr.mxu0 0.0
    %3203 = vmatpush1.xpose.msra.mxu0 0.0
    %3204 = vmatprep.subr.mxu0 0.0
    %3205 = vmatpush1.xpose.msra.mxu0 0.0
    %3206 = vmatprep.subr.mxu0 0.0
    %3207 = vmatpush1.xpose.msra.mxu0 0.0
    %3208 = vmatprep.mubr.f32.mxu0 0.0
    %3209 = vmatmul.mubr.f32.gmra.mrb[0].mxu0 %v3136
    %v3210 = vpop.f32.mrb[0].mxu0
    %v3211 = vadd.f32 %v3134, %v3210
    %v3212 = vpop.f32.mrb[0].mxu0
    %3213 = vdwg.mxu0
    %vm3214 = vcmask 122880
    %3215 = vst.msk [vmem:[#allocation3] sm:$0x1] %vm3214, %v3211
    // Predicated region
    $region86: #{tpu_custom_call.1} parent=1 // pred_check
      _
    $region87: #{tpu_custom_call.1} parent=1 // pred_check_branch
      %3217 = sbr.rel (0) target = $region89
    $region88: #{tpu_custom_call.1} parent=1 // pred_region
      %s3219 = ssub.s32 16, 16
      %3220 = vsyncadd [#allocation4], %s3219
      %s3222 = sshll.u32 [#allocation3], 4
      %s3223 = int_to_ptr.vmem [resolvable:$true] %s3222
      %3225 = dma.vmem_to_hbm [thread:$0]  %s3223, 16, %s21, [#allocation4]
    $region89: #{tpu_custom_call.1} parent=1 // pred_fallthru
      _
    // Predicated region
    $region90: #{tpu_custom_call.1} parent=1 // pred_check
      _
    $region91: #{tpu_custom_call.1} parent=1 // pred_check_branch
      %3227 = sbr.rel (0) target = $region93
    $region92: #{tpu_custom_call.1} parent=1 // pred_region
      %3228 = dma.done [#allocation4], 16
    $region93: #{tpu_custom_call.1} parent=1 // pred_fallthru
      _
    %3229 = vsyncpa [#allocation4], 1

</llo_original>
